<compile_context>
chip_gen: v7x
topology: tpu7x:2x2x1
jax: 0.10.0
libtpu: 0.0.40
codegen_flags: <defaults>
</compile_context>

<pallas_src>
import functools

import jax
import jax.numpy as jnp
from jax.experimental import pallas as pl
from jax.experimental.pallas import tpu as pltpu


def _upsample_conv_kernel(x_ref, w_ref, b_ref, o_ref):
    # x_ref: (1, TH+2, W+2, Cin)      zero-padded input row-tile (compute dtype)
    # w_ref: (2, 2, 2, 2*Cin, Cout)   folded phase weights, indexed [a, b, u]
    # b_ref: (1, Cout)                bias (f32)
    # o_ref: (1, 2, 2, Cout, TH*W)    phase outputs, transposed so lanes = TH*W
    _, th2, wp, cin = x_ref.shape
    w = wp - 2                        # original-resolution width of the tile
    th = th2 - 2                      # output phase-rows of the tile
    x = x_ref[0]                      # (TH+2, W+2, Cin)
    bias = b_ref[...]                 # (1, Cout) f32

    # The only sublane-unaligned copies: 3 column-shifted slabs, computed once and
    # reused by both column phases (perf review item: 3 relayouts instead of 9).
    xs = [x[:, c:c + w, :] for c in range(3)]                   # each (TH+2, W, Cin)

    for b in range(2):                # column phase
        # kw-fused im2col patch: channels = [col shift b, col shift b+1] -> K = 2*Cin.
        patch = jnp.concatenate([xs[b], xs[b + 1]], axis=-1)    # (TH+2, W, 2*Cin)
        patch = patch.reshape(th2 * w, 2 * cin)                 # free when W % 8 == 0
        for a in range(2):            # row phase
            # Two row taps (offsets a, a+1) -> two MXU matmuls, f32 accumulation.
            acc = jnp.dot(patch[(a + 0) * w:(a + 0) * w + th * w, :],
                          w_ref[a, b, 0], preferred_element_type=jnp.float32)
            acc = acc + jnp.dot(patch[(a + 1) * w:(a + 1) * w + th * w, :],
                                w_ref[a, b, 1], preferred_element_type=jnp.float32)
            acc = acc + bias                                    # (TH*W, Cout) f32
            # Lane-dense store: long spatial axis on lanes (XLU transpose is cheap).
            o_ref[0, a, b] = acc.T.astype(o_ref.dtype)          # (Cout, TH*W)


# Which of the 3 original taps fold onto the 2 window offsets, per phase parity.
_OFFSET_TAPS = (((0,), (1, 2)),   # phase 0: offset u=0 <- tap 0 ; u=1 <- taps 1, 2
                ((0, 1), (2,)))   # phase 1: offset u=0 <- taps 0, 1 ; u=1 <- tap 2


def _fold_weights(w_hwio, compute_dtype):
    """Fold 3x3 taps into 4 phase kernels, kw taps fused into the K dim.

    Returns (2, 2, 2, 2*Cin, Cout): entry [a, b, u] is the weight for row offset u of
    phase (a, b); its first Cin rows act on column shift b+0 and the last Cin rows on
    column shift b+1 (matching the in-kernel channel concat).
    """
    per_a = []
    for a in range(2):
        per_b = []
        for b in range(2):
            per_u = []
            for u in range(2):
                blocks = []
                for v in range(2):
                    m = jnp.zeros(w_hwio.shape[2:], w_hwio.dtype)
                    for kh in _OFFSET_TAPS[a][u]:
                        for kw_ in _OFFSET_TAPS[b][v]:
                            m = m + w_hwio[kh, kw_]
                    blocks.append(m)                            # (Cin, Cout)
                per_u.append(jnp.concatenate(blocks, axis=0))   # (2*Cin, Cout)
            per_b.append(jnp.stack(per_u))
        per_a.append(jnp.stack(per_b))
    return jnp.stack(per_a).astype(compute_dtype)               # (2, 2, 2, 2*Cin, Cout)


def _pick_row_tile(h, w, cin, cout, cd_bytes, out_bytes):
    """Largest divisor of H keeping the per-step working set to a few MiB."""
    per_row = ((w + 2) * cin * cd_bytes          # input tile rows
               + 7 * w * cin * cd_bytes          # 3 shifted slabs + 2 fused patches
               + 4 * w * cout * out_bytes        # 4 phase output rows
               + 2 * w * cout * 4)               # live f32 accumulator
    budget = 4 * 1024 * 1024
    th = max(1, min(h, budget // max(per_row, 1)))
    while h % th:
        th -= 1
    return th


@functools.partial(jax.jit, static_argnames=("compute_dtype", "row_tile"))
def upsample_forward(x_nchw, w_hwio, bias, *, compute_dtype=jnp.bfloat16, row_tile=None):
    """Equivalent of UpSample.forward: nearest-2x upsample then Conv2d 3x3 (SAME)."""
    B, C, H, W = x_nchw.shape
    Cout = w_hwio.shape[-1]
    out_dtype = x_nchw.dtype
    cd_bytes = jnp.dtype(compute_dtype).itemsize
    out_bytes = jnp.dtype(out_dtype).itemsize

    th = row_tile if row_tile is not None else _pick_row_tile(H, W, C, Cout, cd_bytes,
                                                              out_bytes)
    th = max(1, min(int(th), H))
    while H % th:                     # need an exact divisor of H
        th -= 1
    nt = H // th
    n = B * nt

    # Glue at ORIGINAL resolution only (no 4x upsampled intermediate): NCHW -> NHWC,
    # 1-pixel zero pad, split H into row tiles with a 2-row halo, cast to bf16.
    x_nhwc = jnp.transpose(x_nchw, (0, 2, 3, 1))                   # (B, H, W, C)
    x_pad = jnp.pad(x_nhwc, ((0, 0), (1, 1), (1, 1), (0, 0)))      # (B, H+2, W+2, C)
    if nt == 1:
        x_tiles = x_pad[:, None]                                   # (B, 1, H+2, W+2, C)
    else:
        rows = (jnp.arange(nt) * th)[:, None] + jnp.arange(th + 2)[None, :]
        x_tiles = x_pad[:, rows]                                   # (B, nT, TH+2, W+2, C)
    x_tiles = x_tiles.reshape(n, th + 2, W + 2, C).astype(compute_dtype)

    w_fold = _fold_weights(w_hwio, compute_dtype)                  # (2, 2, 2, 2C, Cout)
    b2d = bias.reshape(1, Cout).astype(jnp.float32)

    # Explicit VMEM budget derived from the chosen tile sizes (v7x: 64 MiB physical).
    est = (2 * (th + 2) * (W + 2) * C * cd_bytes        # double-buffered input tile
           + 2 * 4 * th * W * Cout * out_bytes          # double-buffered output tile
           + 8 * 2 * C * Cout * cd_bytes                # folded weights
           + 7 * (th + 2) * W * C * cd_bytes            # shifted slabs + patches
           + 2 * th * W * Cout * 4)                     # f32 accumulator
    vmem_limit = int(min(48 * 1024 * 1024, max(32 * 1024 * 1024, 4 * est)))

    out_k = pl.pallas_call(
        _upsample_conv_kernel,
        out_shape=jax.ShapeDtypeStruct((n, 2, 2, Cout, th * W), out_dtype),
        grid=(n,),
        in_specs=[
            pl.BlockSpec((1, th + 2, W + 2, C), lambda i: (i, 0, 0, 0)),
            pl.BlockSpec((2, 2, 2, 2 * C, Cout), lambda i: (0, 0, 0, 0, 0)),
            pl.BlockSpec((1, Cout), lambda i: (0, 0)),
        ],
        out_specs=pl.BlockSpec((1, 2, 2, Cout, th * W), lambda i: (i, 0, 0, 0, 0)),
        compiler_params=pltpu.CompilerParams(
            dimension_semantics=("parallel",),      # B*nT tiles shard across TCs (v7x)
            vmem_limit_bytes=vmem_limit,
        ),
    )(x_tiles, w_fold, b2d)

    # Single output pass (needed anyway for NCHW): un-interleave phases + row tiles.
    out = out_k.reshape(B, nt, 2, 2, Cout, th, W)
    out = jnp.transpose(out, (0, 4, 1, 5, 2, 6, 3))                # (B,Cout,nT,TH,2,W,2)
    return out.reshape(B, Cout, 2 * H, 2 * W)


def _reference(x_nchw, w_hwio, bias):
    # Pure-JAX reference: nearest 2x upsample + SAME 3x3 conv (NHWC/HWIO), f32.
    x_up = jnp.repeat(jnp.repeat(x_nchw, 2, axis=2), 2, axis=3)
    x_nhwc = jnp.transpose(x_up, (0, 2, 3, 1))
    out = jax.lax.conv_general_dilated(
        x_nhwc, w_hwio, window_strides=(1, 1), padding="SAME",
        dimension_numbers=("NHWC", "HWIO", "NHWC"))
    out = out + bias[None, None, None, :]
    return jnp.transpose(out, (0, 3, 1, 2))


if __name__ == "__main__":
    key = jax.random.PRNGKey(0)
    kx, kw, kb = jax.random.split(key, 3)

    B, C, H, W = 2, 4, 16, 16
    x = jax.random.normal(kx, (B, C, H, W), dtype=jnp.float32)

    # Conv2d(C, C, 3) parameters kept directly in HWIO layout:
    # w_hwio[kh, kw, cin, cout] == w_torch[cout, cin, kh, kw].
    fan_in = C * 3 * 3
    bound = 1.0 / (fan_in ** 0.5)
    w_hwio = jax.random.uniform(kw, (3, 3, C, C), jnp.float32, -bound, bound)
    bias = jax.random.uniform(kb, (C,), jnp.float32, -bound, bound)

    ref = _reference(x, w_hwio, bias)

    # f32 compute path: validates the 4-phase (pixel-shuffle) decomposition exactly.
    out_f32 = jax.block_until_ready(
        upsample_forward(x, w_hwio, bias, compute_dtype=jnp.float32))
    assert out_f32.shape == (B, C, 2 * H, 2 * W)
    assert jnp.allclose(out_f32, ref, atol=1e-4, rtol=1e-4)

    # Default bf16 MXU path (per perf review; f32 accumulation => slightly looser tol).
    out_bf16 = jax.block_until_ready(upsample_forward(x, w_hwio, bias))
    assert out_bf16.shape == (B, C, 2 * H, 2 * W)
    assert jnp.allclose(out_bf16, ref, atol=3e-2, rtol=3e-2)

    # Row-tiled path (nT = 2) to exercise the halo'd spatial tiling used on v7x.
    out_tiled = jax.block_until_ready(upsample_forward(x, w_hwio, bias, row_tile=8))
    assert jnp.allclose(out_tiled, ref, atol=3e-2, rtol=3e-2)

    print("KERNEL_OK")
</pallas_src>

<mosaic_0001>
module attributes {stable_mosaic.version = 11 : i64} {
  func.func @_upsample_conv_kernel(%arg0: i32, %arg1: memref<1x18x18x4xf32, #tpu.memory_space<vmem>>, %arg2: memref<2x2x2x8x4xf32, #tpu.memory_space<vmem>>, %arg3: memref<1x4xf32, #tpu.memory_space<vmem>>, %arg4: memref<1x2x2x4x256xf32, #tpu.memory_space<vmem>>) attributes {dimension_semantics = [#tpu.dimension_semantics<parallel>], iteration_bounds = array<i64: 2>, scalar_prefetch = 0 : i64, scratch_operands = 0 : i64, tpu.core_type = #tpu.core_type<tc>, window_params = [{transform_indices = @transform_0, window_bounds = array<i64: 1, 18, 18, 4>}, {pipeline_mode = #tpu.pipeline_mode<synchronous>, transform_indices = @transform_1, window_bounds = array<i64: 2, 2, 2, 8, 4>}, {pipeline_mode = #tpu.pipeline_mode<synchronous>, transform_indices = @transform_2, window_bounds = array<i64: 1, 4>}, {transform_indices = @transform_3, window_bounds = array<i64: 1, 2, 2, 4, 256>}]} {
    %c0 = arith.constant 0 : index
    %c0_0 = arith.constant 0 : index
    %c0_1 = arith.constant 0 : index
    %c0_2 = arith.constant 0 : index
    %0 = vector.load %arg1[%c0, %c0_0, %c0_1, %c0_2] : memref<1x18x18x4xf32, #tpu.memory_space<vmem>>, vector<1x18x18x4xf32>
    %1 = vector.shape_cast %0 : vector<1x18x18x4xf32> to vector<18x18x4xf32>
    %c0_3 = arith.constant 0 : index
    %c0_4 = arith.constant 0 : index
    %2 = vector.load %arg3[%c0_3, %c0_4] : memref<1x4xf32, #tpu.memory_space<vmem>>, vector<1x4xf32>
    %3 = vector.extract_strided_slice %1 {offsets = [0, 0, 0], sizes = [18, 16, 4], strides = [1, 1, 1]} : vector<18x18x4xf32> to vector<18x16x4xf32>
    %4 = vector.extract_strided_slice %1 {offsets = [0, 1, 0], sizes = [18, 16, 4], strides = [1, 1, 1]} : vector<18x18x4xf32> to vector<18x16x4xf32>
    %5 = vector.extract_strided_slice %1 {offsets = [0, 2, 0], sizes = [18, 16, 4], strides = [1, 1, 1]} : vector<18x18x4xf32> to vector<18x16x4xf32>
    %6 = tpu.concatenate %3, %4 in 2 : vector<18x16x4xf32>, vector<18x16x4xf32> -> vector<18x16x8xf32>
    %7 = vector.shape_cast %6 : vector<18x16x8xf32> to vector<288x8xf32>
    %8 = vector.extract_strided_slice %7 {offsets = [0, 0], sizes = [256, 8], strides = [1, 1]} : vector<288x8xf32> to vector<256x8xf32>
    %c0_5 = arith.constant 0 : index
    %c0_6 = arith.constant 0 : index
    %c0_7 = arith.constant 0 : index
    %c0_8 = arith.constant 0 : index
    %c0_9 = arith.constant 0 : index
    %9 = vector.load %arg2[%c0_5, %c0_6, %c0_7, %c0_8, %c0_9] : memref<2x2x2x8x4xf32, #tpu.memory_space<vmem>>, vector<1x1x1x8x4xf32>
    %10 = vector.shape_cast %9 : vector<1x1x1x8x4xf32> to vector<8x4xf32>
    %cst = arith.constant dense<0.000000e+00> : vector<256x4xf32>
    %11 = tpu.matmul %8, %10, %cst {dimension_numbers = #tpu.dot_dimension_numbers<[1], [0], [0], [1], [0, 0, 1, 1], [], []>} : vector<256x8xf32>, vector<8x4xf32>, vector<256x4xf32> -> vector<256x4xf32>
    %12 = vector.extract_strided_slice %7 {offsets = [16, 0], sizes = [256, 8], strides = [1, 1]} : vector<288x8xf32> to vector<256x8xf32>
    %c0_10 = arith.constant 0 : index
    %c0_11 = arith.constant 0 : index
    %c1 = arith.constant 1 : index
    %c0_12 = arith.constant 0 : index
    %c0_13 = arith.constant 0 : index
    %13 = vector.load %arg2[%c0_10, %c0_11, %c1, %c0_12, %c0_13] : memref<2x2x2x8x4xf32, #tpu.memory_space<vmem>>, vector<1x1x1x8x4xf32>
    %14 = vector.shape_cast %13 : vector<1x1x1x8x4xf32> to vector<8x4xf32>
    %cst_14 = arith.constant dense<0.000000e+00> : vector<256x4xf32>
    %15 = tpu.matmul %12, %14, %cst_14 {dimension_numbers = #tpu.dot_dimension_numbers<[1], [0], [0], [1], [0, 0, 1, 1], [], []>} : vector<256x8xf32>, vector<8x4xf32>, vector<256x4xf32> -> vector<256x4xf32>
    %16 = arith.addf %11, %15 : vector<256x4xf32>
    %17 = vector.broadcast %2 : vector<1x4xf32> to vector<256x4xf32>
    %18 = arith.addf %16, %17 : vector<256x4xf32>
    %19 = tpu.transpose %18, [1, 0] : vector<256x4xf32> -> vector<4x256xf32>
    %c0_15 = arith.constant 0 : index
    %c0_16 = arith.constant 0 : index
    %c0_17 = arith.constant 0 : index
    %c0_18 = arith.constant 0 : index
    %c0_19 = arith.constant 0 : index
    %20 = vector.load %arg4[%c0_15, %c0_16, %c0_17, %c0_18, %c0_19] : memref<1x2x2x4x256xf32, #tpu.memory_space<vmem>>, vector<1x1x1x4x256xf32>
    %21 = vector.shape_cast %20 : vector<1x1x1x4x256xf32> to vector<4x256xf32>
    %22 = vector.shape_cast %19 : vector<4x256xf32> to vector<1x1x1x4x256xf32>
    tpu.vector_store %arg4[%c0_15, %c0_16, %c0_17, %c0_18, %c0_19], %22 {strides = array<i32>} : memref<1x2x2x4x256xf32, #tpu.memory_space<vmem>>, vector<1x1x1x4x256xf32>,
    %23 = vector.extract_strided_slice %7 {offsets = [16, 0], sizes = [256, 8], strides = [1, 1]} : vector<288x8xf32> to vector<256x8xf32>
    %c1_20 = arith.constant 1 : index
    %c0_21 = arith.constant 0 : index
    %c0_22 = arith.constant 0 : index
    %c0_23 = arith.constant 0 : index
    %c0_24 = arith.constant 0 : index
    %24 = vector.load %arg2[%c1_20, %c0_21, %c0_22, %c0_23, %c0_24] : memref<2x2x2x8x4xf32, #tpu.memory_space<vmem>>, vector<1x1x1x8x4xf32>
    %25 = vector.shape_cast %24 : vector<1x1x1x8x4xf32> to vector<8x4xf32>
    %cst_25 = arith.constant dense<0.000000e+00> : vector<256x4xf32>
    %26 = tpu.matmul %23, %25, %cst_25 {dimension_numbers = #tpu.dot_dimension_numbers<[1], [0], [0], [1], [0, 0, 1, 1], [], []>} : vector<256x8xf32>, vector<8x4xf32>, vector<256x4xf32> -> vector<256x4xf32>
    %27 = vector.extract_strided_slice %7 {offsets = [32, 0], sizes = [256, 8], strides = [1, 1]} : vector<288x8xf32> to vector<256x8xf32>
    %c1_26 = arith.constant 1 : index
    %c0_27 = arith.constant 0 : index
    %c1_28 = arith.constant 1 : index
    %c0_29 = arith.constant 0 : index
    %c0_30 = arith.constant 0 : index
    %28 = vector.load %arg2[%c1_26, %c0_27, %c1_28, %c0_29, %c0_30] : memref<2x2x2x8x4xf32, #tpu.memory_space<vmem>>, vector<1x1x1x8x4xf32>
    %29 = vector.shape_cast %28 : vector<1x1x1x8x4xf32> to vector<8x4xf32>
    %cst_31 = arith.constant dense<0.000000e+00> : vector<256x4xf32>
    %30 = tpu.matmul %27, %29, %cst_31 {dimension_numbers = #tpu.dot_dimension_numbers<[1], [0], [0], [1], [0, 0, 1, 1], [], []>} : vector<256x8xf32>, vector<8x4xf32>, vector<256x4xf32> -> vector<256x4xf32>
    %31 = arith.addf %26, %30 : vector<256x4xf32>
    %32 = vector.broadcast %2 : vector<1x4xf32> to vector<256x4xf32>
    %33 = arith.addf %31, %32 : vector<256x4xf32>
    %34 = tpu.transpose %33, [1, 0] : vector<256x4xf32> -> vector<4x256xf32>
    %c0_32 = arith.constant 0 : index
    %c1_33 = arith.constant 1 : index
    %c0_34 = arith.constant 0 : index
    %c0_35 = arith.constant 0 : index
    %c0_36 = arith.constant 0 : index
    %35 = vector.load %arg4[%c0_32, %c1_33, %c0_34, %c0_35, %c0_36] : memref<1x2x2x4x256xf32, #tpu.memory_space<vmem>>, vector<1x1x1x4x256xf32>
    %36 = vector.shape_cast %35 : vector<1x1x1x4x256xf32> to vector<4x256xf32>
    %37 = vector.shape_cast %34 : vector<4x256xf32> to vector<1x1x1x4x256xf32>
    tpu.vector_store %arg4[%c0_32, %c1_33, %c0_34, %c0_35, %c0_36], %37 {strides = array<i32>} : memref<1x2x2x4x256xf32, #tpu.memory_space<vmem>>, vector<1x1x1x4x256xf32>,
    %38 = tpu.concatenate %4, %5 in 2 : vector<18x16x4xf32>, vector<18x16x4xf32> -> vector<18x16x8xf32>
    %39 = vector.shape_cast %38 : vector<18x16x8xf32> to vector<288x8xf32>
    %40 = vector.extract_strided_slice %39 {offsets = [0, 0], sizes = [256, 8], strides = [1, 1]} : vector<288x8xf32> to vector<256x8xf32>
    %c0_37 = arith.constant 0 : index
    %c1_38 = arith.constant 1 : index
    %c0_39 = arith.constant 0 : index
    %c0_40 = arith.constant 0 : index
    %c0_41 = arith.constant 0 : index
    %41 = vector.load %arg2[%c0_37, %c1_38, %c0_39, %c0_40, %c0_41] : memref<2x2x2x8x4xf32, #tpu.memory_space<vmem>>, vector<1x1x1x8x4xf32>
    %42 = vector.shape_cast %41 : vector<1x1x1x8x4xf32> to vector<8x4xf32>
    %cst_42 = arith.constant dense<0.000000e+00> : vector<256x4xf32>
    %43 = tpu.matmul %40, %42, %cst_42 {dimension_numbers = #tpu.dot_dimension_numbers<[1], [0], [0], [1], [0, 0, 1, 1], [], []>} : vector<256x8xf32>, vector<8x4xf32>, vector<256x4xf32> -> vector<256x4xf32>
    %44 = vector.extract_strided_slice %39 {offsets = [16, 0], sizes = [256, 8], strides = [1, 1]} : vector<288x8xf32> to vector<256x8xf32>
    %c0_43 = arith.constant 0 : index
    %c1_44 = arith.constant 1 : index
    %c1_45 = arith.constant 1 : index
    %c0_46 = arith.constant 0 : index
    %c0_47 = arith.constant 0 : index
    %45 = vector.load %arg2[%c0_43, %c1_44, %c1_45, %c0_46, %c0_47] : memref<2x2x2x8x4xf32, #tpu.memory_space<vmem>>, vector<1x1x1x8x4xf32>
    %46 = vector.shape_cast %45 : vector<1x1x1x8x4xf32> to vector<8x4xf32>
    %cst_48 = arith.constant dense<0.000000e+00> : vector<256x4xf32>
    %47 = tpu.matmul %44, %46, %cst_48 {dimension_numbers = #tpu.dot_dimension_numbers<[1], [0], [0], [1], [0, 0, 1, 1], [], []>} : vector<256x8xf32>, vector<8x4xf32>, vector<256x4xf32> -> vector<256x4xf32>
    %48 = arith.addf %43, %47 : vector<256x4xf32>
    %49 = vector.broadcast %2 : vector<1x4xf32> to vector<256x4xf32>
    %50 = arith.addf %48, %49 : vector<256x4xf32>
    %51 = tpu.transpose %50, [1, 0] : vector<256x4xf32> -> vector<4x256xf32>
    %c0_49 = arith.constant 0 : index
    %c0_50 = arith.constant 0 : index
    %c1_51 = arith.constant 1 : index
    %c0_52 = arith.constant 0 : index
    %c0_53 = arith.constant 0 : index
    %52 = vector.load %arg4[%c0_49, %c0_50, %c1_51, %c0_52, %c0_53] : memref<1x2x2x4x256xf32, #tpu.memory_space<vmem>>, vector<1x1x1x4x256xf32>
    %53 = vector.shape_cast %52 : vector<1x1x1x4x256xf32> to vector<4x256xf32>
    %54 = vector.shape_cast %51 : vector<4x256xf32> to vector<1x1x1x4x256xf32>
    tpu.vector_store %arg4[%c0_49, %c0_50, %c1_51, %c0_52, %c0_53], %54 {strides = array<i32>} : memref<1x2x2x4x256xf32, #tpu.memory_space<vmem>>, vector<1x1x1x4x256xf32>,
    %55 = vector.extract_strided_slice %39 {offsets = [16, 0], sizes = [256, 8], strides = [1, 1]} : vector<288x8xf32> to vector<256x8xf32>
    %c1_54 = arith.constant 1 : index
    %c1_55 = arith.constant 1 : index
    %c0_56 = arith.constant 0 : index
    %c0_57 = arith.constant 0 : index
    %c0_58 = arith.constant 0 : index
    %56 = vector.load %arg2[%c1_54, %c1_55, %c0_56, %c0_57, %c0_58] : memref<2x2x2x8x4xf32, #tpu.memory_space<vmem>>, vector<1x1x1x8x4xf32>
    %57 = vector.shape_cast %56 : vector<1x1x1x8x4xf32> to vector<8x4xf32>
    %cst_59 = arith.constant dense<0.000000e+00> : vector<256x4xf32>
    %58 = tpu.matmul %55, %57, %cst_59 {dimension_numbers = #tpu.dot_dimension_numbers<[1], [0], [0], [1], [0, 0, 1, 1], [], []>} : vector<256x8xf32>, vector<8x4xf32>, vector<256x4xf32> -> vector<256x4xf32>
    %59 = vector.extract_strided_slice %39 {offsets = [32, 0], sizes = [256, 8], strides = [1, 1]} : vector<288x8xf32> to vector<256x8xf32>
    %c1_60 = arith.constant 1 : index
    %c1_61 = arith.constant 1 : index
    %c1_62 = arith.constant 1 : index
    %c0_63 = arith.constant 0 : index
    %c0_64 = arith.constant 0 : index
    %60 = vector.load %arg2[%c1_60, %c1_61, %c1_62, %c0_63, %c0_64] : memref<2x2x2x8x4xf32, #tpu.memory_space<vmem>>, vector<1x1x1x8x4xf32>
    %61 = vector.shape_cast %60 : vector<1x1x1x8x4xf32> to vector<8x4xf32>
    %cst_65 = arith.constant dense<0.000000e+00> : vector<256x4xf32>
    %62 = tpu.matmul %59, %61, %cst_65 {dimension_numbers = #tpu.dot_dimension_numbers<[1], [0], [0], [1], [0, 0, 1, 1], [], []>} : vector<256x8xf32>, vector<8x4xf32>, vector<256x4xf32> -> vector<256x4xf32>
    %63 = arith.addf %58, %62 : vector<256x4xf32>
    %64 = vector.broadcast %2 : vector<1x4xf32> to vector<256x4xf32>
    %65 = arith.addf %63, %64 : vector<256x4xf32>
    %66 = tpu.transpose %65, [1, 0] : vector<256x4xf32> -> vector<4x256xf32>
    %c0_66 = arith.constant 0 : index
    %c1_67 = arith.constant 1 : index
    %c1_68 = arith.constant 1 : index
    %c0_69 = arith.constant 0 : index
    %c0_70 = arith.constant 0 : index
    %67 = vector.load %arg4[%c0_66, %c1_67, %c1_68, %c0_69, %c0_70] : memref<1x2x2x4x256xf32, #tpu.memory_space<vmem>>, vector<1x1x1x4x256xf32>
    %68 = vector.shape_cast %67 : vector<1x1x1x4x256xf32> to vector<4x256xf32>
    %69 = vector.shape_cast %66 : vector<4x256xf32> to vector<1x1x1x4x256xf32>
    tpu.vector_store %arg4[%c0_66, %c1_67, %c1_68, %c0_69, %c0_70], %69 {strides = array<i32>} : memref<1x2x2x4x256xf32, #tpu.memory_space<vmem>>, vector<1x1x1x4x256xf32>,
    return
  }
  func.func @transform_0(%arg0: i32) -> (i32, i32, i32, i32) {
    %c0_i32 = arith.constant 0 : i32
    %c0_i32_0 = arith.constant 0 : i32
    %c0_i32_1 = arith.constant 0 : i32
    %c0_i32_2 = arith.constant 0 : i32
    return %arg0, %c0_i32, %c0_i32_0, %c0_i32_1 : i32, i32, i32, i32
  }
  func.func @transform_1(%arg0: i32) -> (i32, i32, i32, i32, i32) {
    %c0_i32 = arith.constant 0 : i32
    %c0_i32_0 = arith.constant 0 : i32
    %c0_i32_1 = arith.constant 0 : i32
    %c0_i32_2 = arith.constant 0 : i32
    %c0_i32_3 = arith.constant 0 : i32
    %c0_i32_4 = arith.constant 0 : i32
    return %c0_i32, %c0_i32_0, %c0_i32_1, %c0_i32_2, %c0_i32_3 : i32, i32, i32, i32, i32
  }
  func.func @transform_2(%arg0: i32) -> (i32, i32) {
    %c0_i32 = arith.constant 0 : i32
    %c0_i32_0 = arith.constant 0 : i32
    %c0_i32_1 = arith.constant 0 : i32
    return %c0_i32, %c0_i32_0 : i32, i32
  }
  func.func @transform_3(%arg0: i32) -> (i32, i32, i32, i32, i32) {
    %c0_i32 = arith.constant 0 : i32
    %c0_i32_0 = arith.constant 0 : i32
    %c0_i32_1 = arith.constant 0 : i32
    %c0_i32_2 = arith.constant 0 : i32
    %c0_i32_3 = arith.constant 0 : i32
    return %arg0, %c0_i32, %c0_i32_0, %c0_i32_1, %c0_i32_2 : i32, i32, i32, i32, i32
  }
}

</mosaic_0001>

<llo_original>
// kernel: upsample_forward.1
$region0: #{upsample_forward.1}
  #allocation0 [shape = 'u32[]', space=smem, size = 0x4, offset = 0x4, fixed_abs, tag = 'smem constant byte address 0x4 - core index']
  #allocation1 [shape = 'u32[144,128]{1,0:T(1,128)}', space=vmem, size = 0x12000, scoped, tag = 'internal scratch']
  %s0 = inlined_call_operand.vmem [shape: f32[2,18,18,4], index: 0, kind: input, shape index: {}]
  %s1 = inlined_call_operand.vmem [shape: f32[2,2,2,8,4], index: 1, kind: input, shape index: {}]
  %s2 = inlined_call_operand.vmem [shape: f32[1,4], index: 2, kind: input, shape index: {}]
  %s3 = inlined_call_operand.vmem [shape: f32[2,2,2,4,256], index: 3, kind: output, shape index: {}]
  %s4 = sld [smem:[#allocation0]]
  $region45: #{upsample_forward.1} parent=0
    _
  %s6 = ssub.s32 1, %s4
  %s7 = scalar_select 0, %s6, %s4
  loop: start=0, step=1, limit=4
  $region2: #{upsample_forward.1} parent=0 // loop_pre_header
    _
  $region3: #{upsample_forward.1} parent=0 // loop_header
    %s9 = sphi 0, %s13
    %p10 = scmp.ge.s32.totalorder %s9, 4
    %s19 = sphi 0, %s21
    %s22 = sphi 0, %s19
    %s23 = sphi 0, %s22
    %s39 = sphi 0, %s23
    %s43 = sphi 0, %s43
    %s45 = sphi 0, %s43
    %s46 = sphi 0, %s45
    %s60 = sphi 0, %s46
    %s64 = sphi 0, %s64
    %s66 = sphi 0, %s64
    %s67 = sphi 0, %s66
    %s81 = sphi 0, %s67
    %s87 = sphi 0, %s89
    %s90 = sphi 0, %s87
    %s91 = sphi 0, %s90
    %s107 = sphi 0, %s91
  $region4: #{upsample_forward.1} parent=0 // loop_header_branch
    %12 = sbr.rel (%p10) target = $region8
  $region5: #{upsample_forward.1} parent=0 // loop_body
    %s14 = ssub.s32 %s9, 1
    %s15 = ssub.s32 %s9, 2
    %s16 = sadd.s32 %s9, 1
    %s17 = ssub.s32 %s9, %s16
    %p18 = scmp.eq.s32.totalorder %s17, 0
    %s20 = sadd.s32 %s19, 1
    %s21 = scalar_select %p18, %s19, %s20
    %p24 = pneg %p18
    %p25 = scmp.eq.s32.totalorder %s9, 1
    %p26 = por %p24, %p25
    %p27 = scmp.ne.s32.totalorder %s19, %s22
    %p28 = scmp.eq.s32.totalorder %s9, 0
    %p29 = por %p27, %p28
    %p30 = scmp.ne.s32.totalorder %s19, %s22
    %p31 = scmp.eq.s32.totalorder %s14, 1
    %p32 = por %p30, %p31
    %p33 = scmp.ne.s32.totalorder %s22, %s23
    %p34 = scmp.eq.s32.totalorder %s14, 0
    %p35 = por %p33, %p34
    %p36 = scmp.ne.s32.totalorder %s22, %s23
    %p37 = scmp.eq.s32.totalorder %s15, 1
    %p38 = por %p36, %p37
    %p40 = scmp.ne.s32.totalorder %s23, %s39
    %p41 = scmp.eq.s32.totalorder %s15, 0
    %p42 = por %p40, %p41
    %s44 = sadd.s32 %s43, 1
    %p47 = scmp.eq.s32.totalorder %s9, 1
    %p48 = scmp.ne.s32.totalorder %s43, %s45
    %p49 = scmp.eq.s32.totalorder %s9, 0
    %p50 = por %p48, %p49
    %p51 = scmp.ne.s32.totalorder %s43, %s45
    %p52 = scmp.eq.s32.totalorder %s14, 1
    %p53 = por %p51, %p52
    %p54 = scmp.ne.s32.totalorder %s45, %s46
    %p55 = scmp.eq.s32.totalorder %s14, 0
    %p56 = por %p54, %p55
    %p57 = scmp.ne.s32.totalorder %s45, %s46
    %p58 = scmp.eq.s32.totalorder %s15, 1
    %p59 = por %p57, %p58
    %p61 = scmp.ne.s32.totalorder %s46, %s60
    %p62 = scmp.eq.s32.totalorder %s15, 0
    %p63 = por %p61, %p62
    %s65 = sadd.s32 %s64, 1
    %p68 = scmp.eq.s32.totalorder %s9, 1
    %p69 = scmp.ne.s32.totalorder %s64, %s66
    %p70 = scmp.eq.s32.totalorder %s9, 0
    %p71 = por %p69, %p70
    %p72 = scmp.ne.s32.totalorder %s64, %s66
    %p73 = scmp.eq.s32.totalorder %s14, 1
    %p74 = por %p72, %p73
    %p75 = scmp.ne.s32.totalorder %s66, %s67
    %p76 = scmp.eq.s32.totalorder %s14, 0
    %p77 = por %p75, %p76
    %p78 = scmp.ne.s32.totalorder %s66, %s67
    %p79 = scmp.eq.s32.totalorder %s15, 1
    %p80 = por %p78, %p79
    %p82 = scmp.ne.s32.totalorder %s67, %s81
    %p83 = scmp.eq.s32.totalorder %s15, 0
    %p84 = por %p82, %p83
    %s85 = ssub.s32 %s9, %s16
    %p86 = scmp.eq.s32.totalorder %s85, 0
    %s88 = sadd.s32 %s87, 1
    %s89 = scalar_select %p86, %s87, %s88
    %p92 = pneg %p86
    %p93 = scmp.eq.s32.totalorder %s9, 1
    %p94 = por %p92, %p93
    %p95 = scmp.ne.s32.totalorder %s87, %s90
    %p96 = scmp.eq.s32.totalorder %s9, 0
    %p97 = por %p95, %p96
    %p98 = scmp.ne.s32.totalorder %s87, %s90
    %p99 = scmp.eq.s32.totalorder %s14, 1
    %p100 = por %p98, %p99
    %p101 = scmp.ne.s32.totalorder %s90, %s91
    %p102 = scmp.eq.s32.totalorder %s14, 0
    %p103 = por %p101, %p102
    %p104 = scmp.ne.s32.totalorder %s90, %s91
    %p105 = scmp.eq.s32.totalorder %s15, 1
    %p106 = por %p104, %p105
    %p108 = scmp.ne.s32.totalorder %s91, %s107
    %p109 = scmp.eq.s32.totalorder %s15, 0
    %p110 = por %p108, %p109
    %p111 = scmp.le.s32.totalorder 1, %s9
    %p112 = scmp.lt.s32.totalorder %s9, 3
    %p113 = pnand %p111, %p112
    %p114 = pneg %p113
    // Predicated region
    $region9: #{upsample_forward.1} parent=5 // pred_check
      _
    $region10: #{upsample_forward.1} parent=5 // pred_check_branch
      %116 = sbr.rel (%p113) target = $region12
    $region11: #{upsample_forward.1} parent=5 // pred_region
      %s117 = ssub.s32 %s9, 1
      // Predicated region
      $region13: #{upsample_forward.1} parent=11 // pred_check
        %p118 = pneg %p56
      $region14: #{upsample_forward.1} parent=11 // pred_check_branch
        %120 = sbr.rel (%p118) target = $region16
      $region15: #{upsample_forward.1} parent=11 // pred_region
        _
      $region16: #{upsample_forward.1} parent=11 // pred_fallthru
        _
      // Predicated region
      $region17: #{upsample_forward.1} parent=11 // pred_check
        %p121 = pneg %p77
      $region18: #{upsample_forward.1} parent=11 // pred_check_branch
        %123 = sbr.rel (%p121) target = $region20
      $region19: #{upsample_forward.1} parent=11 // pred_region
        _
      $region20: #{upsample_forward.1} parent=11 // pred_fallthru
        _
    $region12: #{upsample_forward.1} parent=5 // pred_fallthru
      _
    %p124 = scmp.lt.s32.totalorder %s9, 2
    // Predicated region
    $region21: #{upsample_forward.1} parent=5 // pred_check
      %p125 = pneg %p124
    $region22: #{upsample_forward.1} parent=5 // pred_check_branch
      %127 = sbr.rel (%p125) target = $region24
    $region23: #{upsample_forward.1} parent=5 // pred_region
      // Predicated region
      $region25: #{upsample_forward.1} parent=23 // pred_check
        %p128 = pneg %p29
      $region26: #{upsample_forward.1} parent=23 // pred_check_branch
        %130 = sbr.rel (%p128) target = $region28
      $region27: #{upsample_forward.1} parent=23 // pred_region
        %p131 = scmp.lt.s32.totalorder %s9, 1
        %s132 = scalar_select %p131, %s9, 1
        %s133 = smul.addr %s132, 54
        %s134 = smul.addr %s133, 8
        %s135 = scalar_lea.vmem %s0, %s134
      $region28: #{upsample_forward.1} parent=23 // pred_fallthru
        _
    $region24: #{upsample_forward.1} parent=5 // pred_fallthru
      _
    %p136 = scmp.le.s32.totalorder 1, %s9
    %p137 = scmp.lt.s32.totalorder %s9, 3
    %p138 = pnand %p136, %p137
    %p139 = pneg %p138
    // Predicated region
    $region29: #{upsample_forward.1} parent=5 // pred_check
      _
    $region30: #{upsample_forward.1} parent=5 // pred_check_branch
      %141 = sbr.rel (%p138) target = $region32
    $region31: #{upsample_forward.1} parent=5 // pred_region
      %s142 = ssub.s32 %s9, 1
      %p143 = scmp.lt.s32.totalorder %s14, 1
      %s144 = scalar_select %p143, %s14, 1
      %s145 = smul.addr %s144, 54
      %s146 = smul.addr %s145, 8
      %s147 = scalar_lea.vmem %s0, %s146
      %p148 = pneg %p35
      %p149 = pneg %p32
      %p150 = pneg %p56
      %p151 = pneg %p53
      %p152 = pneg %p77
      %p153 = pneg %p74
      %p154 = pneg %p103
      %p155 = pneg %p100
      %p156 = scmp.lt.s32.totalorder %s14, 1
      %s157 = scalar_select %p156, %s14, 1
      %s158 = smul.addr %s157, 8
      %s159 = smul.addr %s158, 4
      %s160 = scalar_lea.vmem %s3, %s159
      %p161 = scmp.lt.s32.totalorder %s14, 1
      %s162 = scalar_select %p161, %s14, 1
      %s163 = smul.addr %s162, 54
      %s164 = smul.addr %s163, 8
      %s165 = scalar_lea.vmem %s0, %s164
      %p166 = scmp.lt.s32.totalorder %s14, 1
      %s167 = scalar_select %p166, %s14, 1
      %s168 = smul.addr %s167, 8
      %s169 = smul.addr %s168, 4
      %s170 = scalar_lea.vmem %s3, %s169
      %v171 = vld [vmem:[%s165] sm:$0xff]
      %v172 = vld [vmem:[%s165 + $0x8] sm:$0xff]
      %v173 = vld [vmem:[%s165 + $0x10] sm:$0x3]
      %v174 = vld [vmem:[%s165 + $0x18] sm:$0xff]
      %v175 = vld [vmem:[%s165 + $0x20] sm:$0xff]
      %v176 = vld [vmem:[%s165 + $0x28] sm:$0x3]
      %v177 = vld [vmem:[%s165 + $0x30] sm:$0xff]
      %v178 = vld [vmem:[%s165 + $0x38] sm:$0xff]
      %v179 = vld [vmem:[%s165 + $0x40] sm:$0x3]
      %v180 = vld [vmem:[%s165 + $0x48] sm:$0xff]
      %v181 = vld [vmem:[%s165 + $0x50] sm:$0xff]
      %v182 = vld [vmem:[%s165 + $0x58] sm:$0x3]
      %v183 = vld [vmem:[%s165 + $0x60] sm:$0xff]
      %v184 = vld [vmem:[%s165 + $0x68] sm:$0xff]
      %v185 = vld [vmem:[%s165 + $0x70] sm:$0x3]
      %v186 = vld [vmem:[%s165 + $0x78] sm:$0xff]
      %v187 = vld [vmem:[%s165 + $0x80] sm:$0xff]
      %v188 = vld [vmem:[%s165 + $0x88] sm:$0x3]
      %v189 = vld [vmem:[%s165 + $0x90] sm:$0xff]
      %v190 = vld [vmem:[%s165 + $0x98] sm:$0xff]
      %v191 = vld [vmem:[%s165 + $0xa0] sm:$0x3]
      %v192 = vld [vmem:[%s165 + $0xa8] sm:$0xff]
      %v193 = vld [vmem:[%s165 + $0xb0] sm:$0xff]
      %v194 = vld [vmem:[%s165 + $0xb8] sm:$0x3]
      %v195 = vld [vmem:[%s165 + $0xc0] sm:$0xff]
      %v196 = vld [vmem:[%s165 + $0xc8] sm:$0xff]
      %v197 = vld [vmem:[%s165 + $0xd0] sm:$0x3]
      %v198 = vld [vmem:[%s165 + $0xd8] sm:$0xff]
      %v199 = vld [vmem:[%s165 + $0xe0] sm:$0xff]
      %v200 = vld [vmem:[%s165 + $0xe8] sm:$0x3]
      %v201 = vld [vmem:[%s165 + $0xf0] sm:$0xff]
      %v202 = vld [vmem:[%s165 + $0xf8] sm:$0xff]
      %v203 = vld [vmem:[%s165 + $0x100] sm:$0x3]
      %v204 = vld [vmem:[%s165 + $0x108] sm:$0xff]
      %v205 = vld [vmem:[%s165 + $0x110] sm:$0xff]
      %v206 = vld [vmem:[%s165 + $0x118] sm:$0x3]
      %v207 = vld [vmem:[%s165 + $0x120] sm:$0xff]
      %v208 = vld [vmem:[%s165 + $0x128] sm:$0xff]
      %v209 = vld [vmem:[%s165 + $0x130] sm:$0x3]
      %v210 = vld [vmem:[%s165 + $0x138] sm:$0xff]
      %v211 = vld [vmem:[%s165 + $0x140] sm:$0xff]
      %v212 = vld [vmem:[%s165 + $0x148] sm:$0x3]
      %v213 = vld [vmem:[%s165 + $0x150] sm:$0xff]
      %v214 = vld [vmem:[%s165 + $0x158] sm:$0xff]
      %v215 = vld [vmem:[%s165 + $0x160] sm:$0x3]
      %v216 = vld [vmem:[%s165 + $0x168] sm:$0xff]
      %v217 = vld [vmem:[%s165 + $0x170] sm:$0xff]
      %v218 = vld [vmem:[%s165 + $0x178] sm:$0x3]
      %v219 = vld [vmem:[%s165 + $0x180] sm:$0xff]
      %v220 = vld [vmem:[%s165 + $0x188] sm:$0xff]
      %v221 = vld [vmem:[%s165 + $0x190] sm:$0x3]
      %v222 = vld [vmem:[%s165 + $0x198] sm:$0xff]
      %v223 = vld [vmem:[%s165 + $0x1a0] sm:$0xff]
      %v224 = vld [vmem:[%s165 + $0x1a8] sm:$0x3]
      %v225 = vld [vmem:[%s2] sm:$0x1]
      %vm280 = vcmask 1046528
      %v281 = vrot.slane %v171, 1
      %v282 = vrot.slane %v172, 1
      %v283 = vsel %vm280, %v281, %v282
      %v284 = vrot.slane %v173, 1
      %v285 = vsel %vm280, %v282, %v284
      %v286 = vrot.slane %v174, 1
      %v287 = vrot.slane %v175, 1
      %v288 = vsel %vm280, %v286, %v287
      %v289 = vrot.slane %v176, 1
      %v290 = vsel %vm280, %v287, %v289
      %v291 = vrot.slane %v177, 1
      %v292 = vrot.slane %v178, 1
      %v293 = vsel %vm280, %v291, %v292
      %v294 = vrot.slane %v179, 1
      %v295 = vsel %vm280, %v292, %v294
      %v296 = vrot.slane %v180, 1
      %v297 = vrot.slane %v181, 1
      %v298 = vsel %vm280, %v296, %v297
      %v299 = vrot.slane %v182, 1
      %v300 = vsel %vm280, %v297, %v299
      %v301 = vrot.slane %v183, 1
      %v302 = vrot.slane %v184, 1
      %v303 = vsel %vm280, %v301, %v302
      %v304 = vrot.slane %v185, 1
      %v305 = vsel %vm280, %v302, %v304
      %v306 = vrot.slane %v186, 1
      %v307 = vrot.slane %v187, 1
      %v308 = vsel %vm280, %v306, %v307
      %v309 = vrot.slane %v188, 1
      %v310 = vsel %vm280, %v307, %v309
      %v311 = vrot.slane %v189, 1
      %v312 = vrot.slane %v190, 1
      %v313 = vsel %vm280, %v311, %v312
      %v314 = vrot.slane %v191, 1
      %v315 = vsel %vm280, %v312, %v314
      %v316 = vrot.slane %v192, 1
      %v317 = vrot.slane %v193, 1
      %v318 = vsel %vm280, %v316, %v317
      %v319 = vrot.slane %v194, 1
      %v320 = vsel %vm280, %v317, %v319
      %v321 = vrot.slane %v195, 1
      %v322 = vrot.slane %v196, 1
      %v323 = vsel %vm280, %v321, %v322
      %v324 = vrot.slane %v197, 1
      %v325 = vsel %vm280, %v322, %v324
      %v326 = vrot.slane %v198, 1
      %v327 = vrot.slane %v199, 1
      %v328 = vsel %vm280, %v326, %v327
      %v329 = vrot.slane %v200, 1
      %v330 = vsel %vm280, %v327, %v329
      %v331 = vrot.slane %v201, 1
      %v332 = vrot.slane %v202, 1
      %v333 = vsel %vm280, %v331, %v332
      %v334 = vrot.slane %v203, 1
      %v335 = vsel %vm280, %v332, %v334
      %v336 = vrot.slane %v204, 1
      %v337 = vrot.slane %v205, 1
      %v338 = vsel %vm280, %v336, %v337
      %v339 = vrot.slane %v206, 1
      %v340 = vsel %vm280, %v337, %v339
      %v341 = vrot.slane %v207, 1
      %v342 = vrot.slane %v208, 1
      %v343 = vsel %vm280, %v341, %v342
      %v344 = vrot.slane %v209, 1
      %v345 = vsel %vm280, %v342, %v344
      %v346 = vrot.slane %v210, 1
      %v347 = vrot.slane %v211, 1
      %v348 = vsel %vm280, %v346, %v347
      %v349 = vrot.slane %v212, 1
      %v350 = vsel %vm280, %v347, %v349
      %v351 = vrot.slane %v213, 1
      %v352 = vrot.slane %v214, 1
      %v353 = vsel %vm280, %v351, %v352
      %v354 = vrot.slane %v215, 1
      %v355 = vsel %vm280, %v352, %v354
      %v356 = vrot.slane %v216, 1
      %v357 = vrot.slane %v217, 1
      %v358 = vsel %vm280, %v356, %v357
      %v359 = vrot.slane %v218, 1
      %v360 = vsel %vm280, %v357, %v359
      %v361 = vrot.slane %v219, 1
      %v362 = vrot.slane %v220, 1
      %v363 = vsel %vm280, %v361, %v362
      %v364 = vrot.slane %v221, 1
      %v365 = vsel %vm280, %v362, %v364
      %v366 = vrot.slane %v222, 1
      %v367 = vrot.slane %v223, 1
      %v368 = vsel %vm280, %v366, %v367
      %v369 = vrot.slane %v224, 1
      %v370 = vsel %vm280, %v367, %v369
      %371 = vrot.lane.b32.xlu0 %v283, 4
      %v372 = vpop.permute.xlu0 %371
      %373 = vrot.lane.b32.xlu0 %v285, 4
      %v374 = vpop.permute.xlu0 %373
      %375 = vrot.lane.b32.xlu0 %v288, 4
      %v376 = vpop.permute.xlu0 %375
      %377 = vrot.lane.b32.xlu0 %v290, 4
      %v378 = vpop.permute.xlu0 %377
      %379 = vrot.lane.b32.xlu0 %v293, 4
      %v380 = vpop.permute.xlu0 %379
      %381 = vrot.lane.b32.xlu0 %v295, 4
      %v382 = vpop.permute.xlu0 %381
      %383 = vrot.lane.b32.xlu0 %v298, 4
      %v384 = vpop.permute.xlu0 %383
      %385 = vrot.lane.b32.xlu0 %v300, 4
      %v386 = vpop.permute.xlu0 %385
      %387 = vrot.lane.b32.xlu0 %v303, 4
      %v388 = vpop.permute.xlu0 %387
      %389 = vrot.lane.b32.xlu0 %v305, 4
      %v390 = vpop.permute.xlu0 %389
      %391 = vrot.lane.b32.xlu0 %v308, 4
      %v392 = vpop.permute.xlu0 %391
      %393 = vrot.lane.b32.xlu0 %v310, 4
      %v394 = vpop.permute.xlu0 %393
      %395 = vrot.lane.b32.xlu0 %v313, 4
      %v396 = vpop.permute.xlu0 %395
      %397 = vrot.lane.b32.xlu0 %v315, 4
      %v398 = vpop.permute.xlu0 %397
      %399 = vrot.lane.b32.xlu0 %v318, 4
      %v400 = vpop.permute.xlu0 %399
      %401 = vrot.lane.b32.xlu0 %v320, 4
      %v402 = vpop.permute.xlu0 %401
      %403 = vrot.lane.b32.xlu0 %v323, 4
      %v404 = vpop.permute.xlu0 %403
      %405 = vrot.lane.b32.xlu0 %v325, 4
      %v406 = vpop.permute.xlu0 %405
      %407 = vrot.lane.b32.xlu0 %v328, 4
      %v408 = vpop.permute.xlu0 %407
      %409 = vrot.lane.b32.xlu0 %v330, 4
      %v410 = vpop.permute.xlu0 %409
      %411 = vrot.lane.b32.xlu0 %v333, 4
      %v412 = vpop.permute.xlu0 %411
      %413 = vrot.lane.b32.xlu0 %v335, 4
      %v414 = vpop.permute.xlu0 %413
      %415 = vrot.lane.b32.xlu0 %v338, 4
      %v416 = vpop.permute.xlu0 %415
      %417 = vrot.lane.b32.xlu0 %v340, 4
      %v418 = vpop.permute.xlu0 %417
      %419 = vrot.lane.b32.xlu0 %v343, 4
      %v420 = vpop.permute.xlu0 %419
      %421 = vrot.lane.b32.xlu0 %v345, 4
      %v422 = vpop.permute.xlu0 %421
      %423 = vrot.lane.b32.xlu0 %v348, 4
      %v424 = vpop.permute.xlu0 %423
      %425 = vrot.lane.b32.xlu0 %v350, 4
      %v426 = vpop.permute.xlu0 %425
      %427 = vrot.lane.b32.xlu0 %v353, 4
      %v428 = vpop.permute.xlu0 %427
      %429 = vrot.lane.b32.xlu0 %v355, 4
      %v430 = vpop.permute.xlu0 %429
      %431 = vrot.lane.b32.xlu0 %v358, 4
      %v432 = vpop.permute.xlu0 %431
      %433 = vrot.lane.b32.xlu0 %v360, 4
      %v434 = vpop.permute.xlu0 %433
      %435 = vrot.lane.b32.xlu0 %v363, 4
      %v436 = vpop.permute.xlu0 %435
      %437 = vrot.lane.b32.xlu0 %v365, 4
      %v438 = vpop.permute.xlu0 %437
      %439 = vrot.lane.b32.xlu0 %v368, 4
      %v440 = vpop.permute.xlu0 %439
      %441 = vrot.lane.b32.xlu0 %v370, 4
      %v442 = vpop.permute.xlu0 %441
      %vm479 = vcmask 31744
      %v480 = vsel %vm479, %v171, %v372
      %v481 = vsel %vm479, %v172, %v374
      %v482 = vsel %vm479, %v174, %v376
      %v483 = vsel %vm479, %v175, %v378
      %v484 = vsel %vm479, %v177, %v380
      %v485 = vsel %vm479, %v178, %v382
      %v486 = vsel %vm479, %v180, %v384
      %v487 = vsel %vm479, %v181, %v386
      %v488 = vsel %vm479, %v183, %v388
      %v489 = vsel %vm479, %v184, %v390
      %v490 = vsel %vm479, %v186, %v392
      %v491 = vsel %vm479, %v187, %v394
      %v492 = vsel %vm479, %v189, %v396
      %v493 = vsel %vm479, %v190, %v398
      %v494 = vsel %vm479, %v192, %v400
      %v495 = vsel %vm479, %v193, %v402
      %v496 = vsel %vm479, %v195, %v404
      %v497 = vsel %vm479, %v196, %v406
      %v498 = vsel %vm479, %v198, %v408
      %v499 = vsel %vm479, %v199, %v410
      %v500 = vsel %vm479, %v201, %v412
      %v501 = vsel %vm479, %v202, %v414
      %v502 = vsel %vm479, %v204, %v416
      %v503 = vsel %vm479, %v205, %v418
      %v504 = vsel %vm479, %v207, %v420
      %v505 = vsel %vm479, %v208, %v422
      %v506 = vsel %vm479, %v210, %v424
      %v507 = vsel %vm479, %v211, %v426
      %v508 = vsel %vm479, %v213, %v428
      %v509 = vsel %vm479, %v214, %v430
      %v510 = vsel %vm479, %v216, %v432
      %v511 = vsel %vm479, %v217, %v434
      %v512 = vsel %vm479, %v219, %v436
      %v513 = vsel %vm479, %v220, %v438
      %v514 = vsel %vm479, %v222, %v440
      %v515 = vsel %vm479, %v223, %v442
      %v516 = vld [vmem:[%s1] sm:$0xff]
      %s517 = scalar_lea.vmem %s1, 8
      %v518 = vld [vmem:[%s517] sm:$0xff]
      %vm519 = vcmask 64512
      %v521 = vsel %vm519, %v482, 0
      %v524 = vsel %vm519, %v483, 0
      %v527 = vsel %vm519, %v484, 0
      %v530 = vsel %vm519, %v485, 0
      %v533 = vsel %vm519, %v486, 0
      %v536 = vsel %vm519, %v487, 0
      %v539 = vsel %vm519, %v488, 0
      %v542 = vsel %vm519, %v489, 0
      %v545 = vsel %vm519, %v490, 0
      %v548 = vsel %vm519, %v491, 0
      %v551 = vsel %vm519, %v492, 0
      %v554 = vsel %vm519, %v493, 0
      %v557 = vsel %vm519, %v494, 0
      %v560 = vsel %vm519, %v495, 0
      %v563 = vsel %vm519, %v496, 0
      %v566 = vsel %vm519, %v497, 0
      %v569 = vsel %vm519, %v498, 0
      %v572 = vsel %vm519, %v499, 0
      %v575 = vsel %vm519, %v500, 0
      %v578 = vsel %vm519, %v501, 0
      %v581 = vsel %vm519, %v502, 0
      %v584 = vsel %vm519, %v503, 0
      %v587 = vsel %vm519, %v504, 0
      %v590 = vsel %vm519, %v505, 0
      %v593 = vsel %vm519, %v506, 0
      %v596 = vsel %vm519, %v507, 0
      %v599 = vsel %vm519, %v508, 0
      %v602 = vsel %vm519, %v509, 0
      %v605 = vsel %vm519, %v510, 0
      %v608 = vsel %vm519, %v511, 0
      %v611 = vsel %vm519, %v512, 0
      %v614 = vsel %vm519, %v513, 0
      %616 = vmatprep.subr.mxu0 0.0
      %617 = vmatpush1.msra.mxu0 %v518
      %618 = vmatprep.subr.mxu0 0.0
      %619 = vmatpush1.msra.mxu0 0.0
      %620 = vmatprep.subr.mxu0 0.0
      %621 = vmatpush1.msra.mxu0 0.0
      %622 = vmatprep.subr.mxu0 0.0
      %623 = vmatpush1.msra.mxu0 0.0
      %624 = vmatprep.subr.mxu0 0.0
      %625 = vmatpush1.msra.mxu0 0.0
      %626 = vmatprep.subr.mxu0 0.0
      %627 = vmatpush1.msra.mxu0 0.0
      %628 = vmatprep.subr.mxu0 0.0
      %629 = vmatpush1.msra.mxu0 0.0
      %630 = vmatprep.subr.mxu0 0.0
      %631 = vmatpush1.msra.mxu0 0.0
      %632 = vmatprep.subr.mxu0 0.0
      %633 = vmatpush1.msra.mxu0 0.0
      %634 = vmatprep.subr.mxu0 0.0
      %635 = vmatpush1.msra.mxu0 0.0
      %636 = vmatprep.subr.mxu0 0.0
      %637 = vmatpush1.msra.mxu0 0.0
      %638 = vmatprep.subr.mxu0 0.0
      %639 = vmatpush1.msra.mxu0 0.0
      %640 = vmatprep.subr.mxu0 0.0
      %641 = vmatpush1.msra.mxu0 0.0
      %642 = vmatprep.subr.mxu0 0.0
      %643 = vmatpush1.msra.mxu0 0.0
      %644 = vmatprep.subr.mxu0 0.0
      %645 = vmatpush1.msra.mxu0 0.0
      %646 = vmatprep.subr.mxu0 0.0
      %647 = vmatpush1.msra.mxu0 0.0
      %648 = vmatprep.subr.mxu0 0.0
      %649 = vmatpush1.msra.mxu0 0.0
      %650 = vmatprep.subr.mxu0 0.0
      %651 = vmatpush1.msra.mxu0 0.0
      %652 = vmatprep.subr.mxu0 0.0
      %653 = vmatpush1.msra.mxu0 0.0
      %654 = vmatprep.subr.mxu0 0.0
      %655 = vmatpush1.msra.mxu0 0.0
      %656 = vmatprep.subr.mxu0 0.0
      %657 = vmatpush1.msra.mxu0 0.0
      %658 = vmatprep.subr.mxu0 0.0
      %659 = vmatpush1.msra.mxu0 0.0
      %660 = vmatprep.subr.mxu0 0.0
      %661 = vmatpush1.msra.mxu0 0.0
      %662 = vmatprep.subr.mxu0 0.0
      %663 = vmatpush1.msra.mxu0 0.0
      %664 = vmatprep.subr.mxu0 0.0
      %665 = vmatpush1.msra.mxu0 0.0
      %666 = vmatprep.subr.mxu0 0.0
      %667 = vmatpush1.msra.mxu0 0.0
      %668 = vmatprep.subr.mxu0 0.0
      %669 = vmatpush1.msra.mxu0 0.0
      %670 = vmatprep.subr.mxu0 0.0
      %671 = vmatpush1.msra.mxu0 0.0
      %672 = vmatprep.subr.mxu0 0.0
      %673 = vmatpush1.msra.mxu0 0.0
      %674 = vmatprep.subr.mxu0 0.0
      %675 = vmatpush1.msra.mxu0 0.0
      %676 = vmatprep.subr.mxu0 0.0
      %677 = vmatpush1.msra.mxu0 0.0
      %678 = vmatprep.subr.mxu0 0.0
      %679 = vmatpush1.msra.mxu0 0.0
      %680 = vmatprep.mubr.f32.mxu0 0.0
      %681 = vmatmul.mubr.f32.gmra.mrb[0].mxu0 %v521
      %v682 = vpop.f32.mrb[0].mxu0
      %v683 = vadd.f32 0.0, %v682
      %v684 = vpop.f32.mrb[0].mxu0
      %685 = vmatprep.mubr.f32.mxu0 0.0
      %686 = vmatmul.mubr.f32.gmra.mrb[0].mxu0 %v524
      %v687 = vpop.f32.mrb[0].mxu0
      %v688 = vadd.f32 0.0, %v687
      %v689 = vpop.f32.mrb[0].mxu0
      %690 = vmatprep.mubr.f32.mxu0 0.0
      %691 = vmatmul.mubr.f32.gmra.mrb[0].mxu0 %v527
      %v692 = vpop.f32.mrb[0].mxu0
      %v693 = vadd.f32 0.0, %v692
      %v694 = vpop.f32.mrb[0].mxu0
      %695 = vmatprep.mubr.f32.mxu0 0.0
      %696 = vmatmul.mubr.f32.gmra.mrb[0].mxu0 %v530
      %v697 = vpop.f32.mrb[0].mxu0
      %v698 = vadd.f32 0.0, %v697
      %v699 = vpop.f32.mrb[0].mxu0
      %700 = vmatprep.mubr.f32.mxu0 0.0
      %701 = vmatmul.mubr.f32.gmra.mrb[0].mxu0 %v533
      %v702 = vpop.f32.mrb[0].mxu0
      %v703 = vadd.f32 0.0, %v702
      %v704 = vpop.f32.mrb[0].mxu0
      %705 = vmatprep.mubr.f32.mxu0 0.0
      %706 = vmatmul.mubr.f32.gmra.mrb[0].mxu0 %v536
      %v707 = vpop.f32.mrb[0].mxu0
      %v708 = vadd.f32 0.0, %v707
      %v709 = vpop.f32.mrb[0].mxu0
      %710 = vmatprep.mubr.f32.mxu0 0.0
      %711 = vmatmul.mubr.f32.gmra.mrb[0].mxu0 %v539
      %v712 = vpop.f32.mrb[0].mxu0
      %v713 = vadd.f32 0.0, %v712
      %v714 = vpop.f32.mrb[0].mxu0
      %715 = vmatprep.mubr.f32.mxu0 0.0
      %716 = vmatmul.mubr.f32.gmra.mrb[0].mxu0 %v542
      %v717 = vpop.f32.mrb[0].mxu0
      %v718 = vadd.f32 0.0, %v717
      %v719 = vpop.f32.mrb[0].mxu0
      %720 = vmatprep.mubr.f32.mxu0 0.0
      %721 = vmatmul.mubr.f32.gmra.mrb[0].mxu0 %v545
      %v722 = vpop.f32.mrb[0].mxu0
      %v723 = vadd.f32 0.0, %v722
      %v724 = vpop.f32.mrb[0].mxu0
      %725 = vmatprep.mubr.f32.mxu0 0.0
      %726 = vmatmul.mubr.f32.gmra.mrb[0].mxu0 %v548
      %v727 = vpop.f32.mrb[0].mxu0
      %v728 = vadd.f32 0.0, %v727
      %v729 = vpop.f32.mrb[0].mxu0
      %730 = vmatprep.mubr.f32.mxu0 0.0
      %731 = vmatmul.mubr.f32.gmra.mrb[0].mxu0 %v551
      %v732 = vpop.f32.mrb[0].mxu0
      %v733 = vadd.f32 0.0, %v732
      %v734 = vpop.f32.mrb[0].mxu0
      %735 = vmatprep.mubr.f32.mxu0 0.0
      %736 = vmatmul.mubr.f32.gmra.mrb[0].mxu0 %v554
      %v737 = vpop.f32.mrb[0].mxu0
      %v738 = vadd.f32 0.0, %v737
      %v739 = vpop.f32.mrb[0].mxu0
      %740 = vmatprep.mubr.f32.mxu0 0.0
      %741 = vmatmul.mubr.f32.gmra.mrb[0].mxu0 %v557
      %v742 = vpop.f32.mrb[0].mxu0
      %v743 = vadd.f32 0.0, %v742
      %v744 = vpop.f32.mrb[0].mxu0
      %745 = vmatprep.mubr.f32.mxu0 0.0
      %746 = vmatmul.mubr.f32.gmra.mrb[0].mxu0 %v560
      %v747 = vpop.f32.mrb[0].mxu0
      %v748 = vadd.f32 0.0, %v747
      %v749 = vpop.f32.mrb[0].mxu0
      %750 = vmatprep.mubr.f32.mxu0 0.0
      %751 = vmatmul.mubr.f32.gmra.mrb[0].mxu0 %v563
      %v752 = vpop.f32.mrb[0].mxu0
      %v753 = vadd.f32 0.0, %v752
      %v754 = vpop.f32.mrb[0].mxu0
      %755 = vmatprep.mubr.f32.mxu0 0.0
      %756 = vmatmul.mubr.f32.gmra.mrb[0].mxu0 %v566
      %v757 = vpop.f32.mrb[0].mxu0
      %v758 = vadd.f32 0.0, %v757
      %v759 = vpop.f32.mrb[0].mxu0
      %760 = vmatprep.mubr.f32.mxu0 0.0
      %761 = vmatmul.mubr.f32.gmra.mrb[0].mxu0 %v569
      %v762 = vpop.f32.mrb[0].mxu0
      %v763 = vadd.f32 0.0, %v762
      %v764 = vpop.f32.mrb[0].mxu0
      %765 = vmatprep.mubr.f32.mxu0 0.0
      %766 = vmatmul.mubr.f32.gmra.mrb[0].mxu0 %v572
      %v767 = vpop.f32.mrb[0].mxu0
      %v768 = vadd.f32 0.0, %v767
      %v769 = vpop.f32.mrb[0].mxu0
      %770 = vmatprep.mubr.f32.mxu0 0.0
      %771 = vmatmul.mubr.f32.gmra.mrb[0].mxu0 %v575
      %v772 = vpop.f32.mrb[0].mxu0
      %v773 = vadd.f32 0.0, %v772
      %v774 = vpop.f32.mrb[0].mxu0
      %775 = vmatprep.mubr.f32.mxu0 0.0
      %776 = vmatmul.mubr.f32.gmra.mrb[0].mxu0 %v578
      %v777 = vpop.f32.mrb[0].mxu0
      %v778 = vadd.f32 0.0, %v777
      %v779 = vpop.f32.mrb[0].mxu0
      %780 = vmatprep.mubr.f32.mxu0 0.0
      %781 = vmatmul.mubr.f32.gmra.mrb[0].mxu0 %v581
      %v782 = vpop.f32.mrb[0].mxu0
      %v783 = vadd.f32 0.0, %v782
      %v784 = vpop.f32.mrb[0].mxu0
      %785 = vmatprep.mubr.f32.mxu0 0.0
      %786 = vmatmul.mubr.f32.gmra.mrb[0].mxu0 %v584
      %v787 = vpop.f32.mrb[0].mxu0
      %v788 = vadd.f32 0.0, %v787
      %v789 = vpop.f32.mrb[0].mxu0
      %790 = vmatprep.mubr.f32.mxu0 0.0
      %791 = vmatmul.mubr.f32.gmra.mrb[0].mxu0 %v587
      %v792 = vpop.f32.mrb[0].mxu0
      %v793 = vadd.f32 0.0, %v792
      %v794 = vpop.f32.mrb[0].mxu0
      %795 = vmatprep.mubr.f32.mxu0 0.0
      %796 = vmatmul.mubr.f32.gmra.mrb[0].mxu0 %v590
      %v797 = vpop.f32.mrb[0].mxu0
      %v798 = vadd.f32 0.0, %v797
      %v799 = vpop.f32.mrb[0].mxu0
      %800 = vmatprep.mubr.f32.mxu0 0.0
      %801 = vmatmul.mubr.f32.gmra.mrb[0].mxu0 %v593
      %v802 = vpop.f32.mrb[0].mxu0
      %v803 = vadd.f32 0.0, %v802
      %v804 = vpop.f32.mrb[0].mxu0
      %805 = vmatprep.mubr.f32.mxu0 0.0
      %806 = vmatmul.mubr.f32.gmra.mrb[0].mxu0 %v596
      %v807 = vpop.f32.mrb[0].mxu0
      %v808 = vadd.f32 0.0, %v807
      %v809 = vpop.f32.mrb[0].mxu0
      %810 = vmatprep.mubr.f32.mxu0 0.0
      %811 = vmatmul.mubr.f32.gmra.mrb[0].mxu0 %v599
      %v812 = vpop.f32.mrb[0].mxu0
      %v813 = vadd.f32 0.0, %v812
      %v814 = vpop.f32.mrb[0].mxu0
      %815 = vmatprep.mubr.f32.mxu0 0.0
      %816 = vmatmul.mubr.f32.gmra.mrb[0].mxu0 %v602
      %v817 = vpop.f32.mrb[0].mxu0
      %v818 = vadd.f32 0.0, %v817
      %v819 = vpop.f32.mrb[0].mxu0
      %820 = vmatprep.mubr.f32.mxu0 0.0
      %821 = vmatmul.mubr.f32.gmra.mrb[0].mxu0 %v605
      %v822 = vpop.f32.mrb[0].mxu0
      %v823 = vadd.f32 0.0, %v822
      %v824 = vpop.f32.mrb[0].mxu0
      %825 = vmatprep.mubr.f32.mxu0 0.0
      %826 = vmatmul.mubr.f32.gmra.mrb[0].mxu0 %v608
      %v827 = vpop.f32.mrb[0].mxu0
      %v828 = vadd.f32 0.0, %v827
      %v829 = vpop.f32.mrb[0].mxu0
      %830 = vmatprep.mubr.f32.mxu0 0.0
      %831 = vmatmul.mubr.f32.gmra.mrb[0].mxu0 %v611
      %v832 = vpop.f32.mrb[0].mxu0
      %v833 = vadd.f32 0.0, %v832
      %v834 = vpop.f32.mrb[0].mxu0
      %835 = vmatprep.mubr.f32.mxu0 0.0
      %836 = vmatmul.mubr.f32.gmra.mrb[0].mxu0 %v614
      %v837 = vpop.f32.mrb[0].mxu0
      %v838 = vadd.f32 0.0, %v837
      %v839 = vpop.f32.mrb[0].mxu0
      %840 = vdwg.mxu0
      %v842 = vsel %vm519, %v480, 0
      %v845 = vsel %vm519, %v481, 0
      %847 = vmatprep.subr.mxu0 0.0
      %848 = vmatpush1.msra.mxu0 %v516
      %849 = vmatprep.subr.mxu0 0.0
      %850 = vmatpush1.msra.mxu0 0.0
      %851 = vmatprep.subr.mxu0 0.0
      %852 = vmatpush1.msra.mxu0 0.0
      %853 = vmatprep.subr.mxu0 0.0
      %854 = vmatpush1.msra.mxu0 0.0
      %855 = vmatprep.subr.mxu0 0.0
      %856 = vmatpush1.msra.mxu0 0.0
      %857 = vmatprep.subr.mxu0 0.0
      %858 = vmatpush1.msra.mxu0 0.0
      %859 = vmatprep.subr.mxu0 0.0
      %860 = vmatpush1.msra.mxu0 0.0
      %861 = vmatprep.subr.mxu0 0.0
      %862 = vmatpush1.msra.mxu0 0.0
      %863 = vmatprep.subr.mxu0 0.0
      %864 = vmatpush1.msra.mxu0 0.0
      %865 = vmatprep.subr.mxu0 0.0
      %866 = vmatpush1.msra.mxu0 0.0
      %867 = vmatprep.subr.mxu0 0.0
      %868 = vmatpush1.msra.mxu0 0.0
      %869 = vmatprep.subr.mxu0 0.0
      %870 = vmatpush1.msra.mxu0 0.0
      %871 = vmatprep.subr.mxu0 0.0
      %872 = vmatpush1.msra.mxu0 0.0
      %873 = vmatprep.subr.mxu0 0.0
      %874 = vmatpush1.msra.mxu0 0.0
      %875 = vmatprep.subr.mxu0 0.0
      %876 = vmatpush1.msra.mxu0 0.0
      %877 = vmatprep.subr.mxu0 0.0
      %878 = vmatpush1.msra.mxu0 0.0
      %879 = vmatprep.subr.mxu0 0.0
      %880 = vmatpush1.msra.mxu0 0.0
      %881 = vmatprep.subr.mxu0 0.0
      %882 = vmatpush1.msra.mxu0 0.0
      %883 = vmatprep.subr.mxu0 0.0
      %884 = vmatpush1.msra.mxu0 0.0
      %885 = vmatprep.subr.mxu0 0.0
      %886 = vmatpush1.msra.mxu0 0.0
      %887 = vmatprep.subr.mxu0 0.0
      %888 = vmatpush1.msra.mxu0 0.0
      %889 = vmatprep.subr.mxu0 0.0
      %890 = vmatpush1.msra.mxu0 0.0
      %891 = vmatprep.subr.mxu0 0.0
      %892 = vmatpush1.msra.mxu0 0.0
      %893 = vmatprep.subr.mxu0 0.0
      %894 = vmatpush1.msra.mxu0 0.0
      %895 = vmatprep.subr.mxu0 0.0
      %896 = vmatpush1.msra.mxu0 0.0
      %897 = vmatprep.subr.mxu0 0.0
      %898 = vmatpush1.msra.mxu0 0.0
      %899 = vmatprep.subr.mxu0 0.0
      %900 = vmatpush1.msra.mxu0 0.0
      %901 = vmatprep.subr.mxu0 0.0
      %902 = vmatpush1.msra.mxu0 0.0
      %903 = vmatprep.subr.mxu0 0.0
      %904 = vmatpush1.msra.mxu0 0.0
      %905 = vmatprep.subr.mxu0 0.0
      %906 = vmatpush1.msra.mxu0 0.0
      %907 = vmatprep.subr.mxu0 0.0
      %908 = vmatpush1.msra.mxu0 0.0
      %909 = vmatprep.subr.mxu0 0.0
      %910 = vmatpush1.msra.mxu0 0.0
      %911 = vmatprep.mubr.f32.mxu0 0.0
      %912 = vmatmul.mubr.f32.gmra.mrb[0].mxu0 %v842
      %v913 = vpop.f32.mrb[0].mxu0
      %v914 = vadd.f32 %v683, %v913
      %v915 = vpop.f32.mrb[0].mxu0
      %916 = vmatprep.mubr.f32.mxu0 0.0
      %917 = vmatmul.mubr.f32.gmra.mrb[0].mxu0 %v845
      %v918 = vpop.f32.mrb[0].mxu0
      %v919 = vadd.f32 %v688, %v918
      %v920 = vpop.f32.mrb[0].mxu0
      %921 = vmatprep.mubr.f32.mxu0 0.0
      %922 = vmatmul.mubr.f32.gmra.mrb[0].mxu0 %v521
      %v923 = vpop.f32.mrb[0].mxu0
      %v924 = vadd.f32 %v693, %v923
      %v925 = vpop.f32.mrb[0].mxu0
      %926 = vmatprep.mubr.f32.mxu0 0.0
      %927 = vmatmul.mubr.f32.gmra.mrb[0].mxu0 %v524
      %v928 = vpop.f32.mrb[0].mxu0
      %v929 = vadd.f32 %v698, %v928
      %v930 = vpop.f32.mrb[0].mxu0
      %931 = vmatprep.mubr.f32.mxu0 0.0
      %932 = vmatmul.mubr.f32.gmra.mrb[0].mxu0 %v527
      %v933 = vpop.f32.mrb[0].mxu0
      %v934 = vadd.f32 %v703, %v933
      %v935 = vpop.f32.mrb[0].mxu0
      %936 = vmatprep.mubr.f32.mxu0 0.0
      %937 = vmatmul.mubr.f32.gmra.mrb[0].mxu0 %v530
      %v938 = vpop.f32.mrb[0].mxu0
      %v939 = vadd.f32 %v708, %v938
      %v940 = vpop.f32.mrb[0].mxu0
      %941 = vmatprep.mubr.f32.mxu0 0.0
      %942 = vmatmul.mubr.f32.gmra.mrb[0].mxu0 %v533
      %v943 = vpop.f32.mrb[0].mxu0
      %v944 = vadd.f32 %v713, %v943
      %v945 = vpop.f32.mrb[0].mxu0
      %946 = vmatprep.mubr.f32.mxu0 0.0
      %947 = vmatmul.mubr.f32.gmra.mrb[0].mxu0 %v536
      %v948 = vpop.f32.mrb[0].mxu0
      %v949 = vadd.f32 %v718, %v948
      %v950 = vpop.f32.mrb[0].mxu0
      %951 = vmatprep.mubr.f32.mxu0 0.0
      %952 = vmatmul.mubr.f32.gmra.mrb[0].mxu0 %v539
      %v953 = vpop.f32.mrb[0].mxu0
      %v954 = vadd.f32 %v723, %v953
      %v955 = vpop.f32.mrb[0].mxu0
      %956 = vmatprep.mubr.f32.mxu0 0.0
      %957 = vmatmul.mubr.f32.gmra.mrb[0].mxu0 %v542
      %v958 = vpop.f32.mrb[0].mxu0
      %v959 = vadd.f32 %v728, %v958
      %v960 = vpop.f32.mrb[0].mxu0
      %961 = vmatprep.mubr.f32.mxu0 0.0
      %962 = vmatmul.mubr.f32.gmra.mrb[0].mxu0 %v545
      %v963 = vpop.f32.mrb[0].mxu0
      %v964 = vadd.f32 %v733, %v963
      %v965 = vpop.f32.mrb[0].mxu0
      %966 = vmatprep.mubr.f32.mxu0 0.0
      %967 = vmatmul.mubr.f32.gmra.mrb[0].mxu0 %v548
      %v968 = vpop.f32.mrb[0].mxu0
      %v969 = vadd.f32 %v738, %v968
      %v970 = vpop.f32.mrb[0].mxu0
      %971 = vmatprep.mubr.f32.mxu0 0.0
      %972 = vmatmul.mubr.f32.gmra.mrb[0].mxu0 %v551
      %v973 = vpop.f32.mrb[0].mxu0
      %v974 = vadd.f32 %v743, %v973
      %v975 = vpop.f32.mrb[0].mxu0
      %976 = vmatprep.mubr.f32.mxu0 0.0
      %977 = vmatmul.mubr.f32.gmra.mrb[0].mxu0 %v554
      %v978 = vpop.f32.mrb[0].mxu0
      %v979 = vadd.f32 %v748, %v978
      %v980 = vpop.f32.mrb[0].mxu0
      %981 = vmatprep.mubr.f32.mxu0 0.0
      %982 = vmatmul.mubr.f32.gmra.mrb[0].mxu0 %v557
      %v983 = vpop.f32.mrb[0].mxu0
      %v984 = vadd.f32 %v753, %v983
      %v985 = vpop.f32.mrb[0].mxu0
      %986 = vmatprep.mubr.f32.mxu0 0.0
      %987 = vmatmul.mubr.f32.gmra.mrb[0].mxu0 %v560
      %v988 = vpop.f32.mrb[0].mxu0
      %v989 = vadd.f32 %v758, %v988
      %v990 = vpop.f32.mrb[0].mxu0
      %991 = vmatprep.mubr.f32.mxu0 0.0
      %992 = vmatmul.mubr.f32.gmra.mrb[0].mxu0 %v563
      %v993 = vpop.f32.mrb[0].mxu0
      %v994 = vadd.f32 %v763, %v993
      %v995 = vpop.f32.mrb[0].mxu0
      %996 = vmatprep.mubr.f32.mxu0 0.0
      %997 = vmatmul.mubr.f32.gmra.mrb[0].mxu0 %v566
      %v998 = vpop.f32.mrb[0].mxu0
      %v999 = vadd.f32 %v768, %v998
      %v1000 = vpop.f32.mrb[0].mxu0
      %1001 = vmatprep.mubr.f32.mxu0 0.0
      %1002 = vmatmul.mubr.f32.gmra.mrb[0].mxu0 %v569
      %v1003 = vpop.f32.mrb[0].mxu0
      %v1004 = vadd.f32 %v773, %v1003
      %v1005 = vpop.f32.mrb[0].mxu0
      %1006 = vmatprep.mubr.f32.mxu0 0.0
      %1007 = vmatmul.mubr.f32.gmra.mrb[0].mxu0 %v572
      %v1008 = vpop.f32.mrb[0].mxu0
      %v1009 = vadd.f32 %v778, %v1008
      %v1010 = vpop.f32.mrb[0].mxu0
      %1011 = vmatprep.mubr.f32.mxu0 0.0
      %1012 = vmatmul.mubr.f32.gmra.mrb[0].mxu0 %v575
      %v1013 = vpop.f32.mrb[0].mxu0
      %v1014 = vadd.f32 %v783, %v1013
      %v1015 = vpop.f32.mrb[0].mxu0
      %1016 = vmatprep.mubr.f32.mxu0 0.0
      %1017 = vmatmul.mubr.f32.gmra.mrb[0].mxu0 %v578
      %v1018 = vpop.f32.mrb[0].mxu0
      %v1019 = vadd.f32 %v788, %v1018
      %v1020 = vpop.f32.mrb[0].mxu0
      %1021 = vmatprep.mubr.f32.mxu0 0.0
      %1022 = vmatmul.mubr.f32.gmra.mrb[0].mxu0 %v581
      %v1023 = vpop.f32.mrb[0].mxu0
      %v1024 = vadd.f32 %v793, %v1023
      %v1025 = vpop.f32.mrb[0].mxu0
      %1026 = vmatprep.mubr.f32.mxu0 0.0
      %1027 = vmatmul.mubr.f32.gmra.mrb[0].mxu0 %v584
      %v1028 = vpop.f32.mrb[0].mxu0
      %v1029 = vadd.f32 %v798, %v1028
      %v1030 = vpop.f32.mrb[0].mxu0
      %1031 = vmatprep.mubr.f32.mxu0 0.0
      %1032 = vmatmul.mubr.f32.gmra.mrb[0].mxu0 %v587
      %v1033 = vpop.f32.mrb[0].mxu0
      %v1034 = vadd.f32 %v803, %v1033
      %v1035 = vpop.f32.mrb[0].mxu0
      %1036 = vmatprep.mubr.f32.mxu0 0.0
      %1037 = vmatmul.mubr.f32.gmra.mrb[0].mxu0 %v590
      %v1038 = vpop.f32.mrb[0].mxu0
      %v1039 = vadd.f32 %v808, %v1038
      %v1040 = vpop.f32.mrb[0].mxu0
      %1041 = vmatprep.mubr.f32.mxu0 0.0
      %1042 = vmatmul.mubr.f32.gmra.mrb[0].mxu0 %v593
      %v1043 = vpop.f32.mrb[0].mxu0
      %v1044 = vadd.f32 %v813, %v1043
      %v1045 = vpop.f32.mrb[0].mxu0
      %1046 = vmatprep.mubr.f32.mxu0 0.0
      %1047 = vmatmul.mubr.f32.gmra.mrb[0].mxu0 %v596
      %v1048 = vpop.f32.mrb[0].mxu0
      %v1049 = vadd.f32 %v818, %v1048
      %v1050 = vpop.f32.mrb[0].mxu0
      %1051 = vmatprep.mubr.f32.mxu0 0.0
      %1052 = vmatmul.mubr.f32.gmra.mrb[0].mxu0 %v599
      %v1053 = vpop.f32.mrb[0].mxu0
      %v1054 = vadd.f32 %v823, %v1053
      %v1055 = vpop.f32.mrb[0].mxu0
      %1056 = vmatprep.mubr.f32.mxu0 0.0
      %1057 = vmatmul.mubr.f32.gmra.mrb[0].mxu0 %v602
      %v1058 = vpop.f32.mrb[0].mxu0
      %v1059 = vadd.f32 %v828, %v1058
      %v1060 = vpop.f32.mrb[0].mxu0
      %1061 = vmatprep.mubr.f32.mxu0 0.0
      %1062 = vmatmul.mubr.f32.gmra.mrb[0].mxu0 %v605
      %v1063 = vpop.f32.mrb[0].mxu0
      %v1064 = vadd.f32 %v833, %v1063
      %v1065 = vpop.f32.mrb[0].mxu0
      %1066 = vmatprep.mubr.f32.mxu0 0.0
      %1067 = vmatmul.mubr.f32.gmra.mrb[0].mxu0 %v608
      %v1068 = vpop.f32.mrb[0].mxu0
      %v1069 = vadd.f32 %v838, %v1068
      %v1070 = vpop.f32.mrb[0].mxu0
      %1071 = vdwg.mxu0
      %v1073 = vlaneseq
      %v1074 = vshrl.u32 %v1073, 7
      %v1075 = vsub.s32 0, %v1074
      %v1076 = vrot.slane %v225, %v1075
      %v1078 = vadd.f32 %v914, %v1076
      %v1079 = vadd.f32 %v919, %v1076
      %v1080 = vadd.f32 %v924, %v1076
      %v1081 = vadd.f32 %v929, %v1076
      %v1082 = vadd.f32 %v934, %v1076
      %v1083 = vadd.f32 %v939, %v1076
      %v1084 = vadd.f32 %v944, %v1076
      %v1085 = vadd.f32 %v949, %v1076
      %v1086 = vadd.f32 %v954, %v1076
      %v1087 = vadd.f32 %v959, %v1076
      %v1088 = vadd.f32 %v964, %v1076
      %v1089 = vadd.f32 %v969, %v1076
      %v1090 = vadd.f32 %v974, %v1076
      %v1091 = vadd.f32 %v979, %v1076
      %v1092 = vadd.f32 %v984, %v1076
      %v1093 = vadd.f32 %v989, %v1076
      %v1094 = vadd.f32 %v994, %v1076
      %v1095 = vadd.f32 %v999, %v1076
      %v1096 = vadd.f32 %v1004, %v1076
      %v1097 = vadd.f32 %v1009, %v1076
      %v1098 = vadd.f32 %v1014, %v1076
      %v1099 = vadd.f32 %v1019, %v1076
      %v1100 = vadd.f32 %v1024, %v1076
      %v1101 = vadd.f32 %v1029, %v1076
      %v1102 = vadd.f32 %v1034, %v1076
      %v1103 = vadd.f32 %v1039, %v1076
      %v1104 = vadd.f32 %v1044, %v1076
      %v1105 = vadd.f32 %v1049, %v1076
      %v1106 = vadd.f32 %v1054, %v1076
      %v1107 = vadd.f32 %v1059, %v1076
      %v1108 = vadd.f32 %v1064, %v1076
      %v1109 = vadd.f32 %v1069, %v1076
      %1110 = vxpose.xlu0.b32.start [1/16] %v1078, 128
      %1111 = vxpose.xlu0.b32.cont [2/16] %v1079, 128
      %1112 = vxpose.xlu0.b32.cont [3/16] %v1080, 128
      %1113 = vxpose.xlu0.b32.cont [4/16] %v1081, 128
      %1114 = vxpose.xlu0.b32.cont [5/16] %v1082, 128
      %1115 = vxpose.xlu0.b32.cont [6/16] %v1083, 128
      %1116 = vxpose.xlu0.b32.cont [7/16] %v1084, 128
      %1117 = vxpose.xlu0.b32.cont [8/16] %v1085, 128
      %1118 = vxpose.xlu0.b32.cont [9/16] %v1086, 128
      %1119 = vxpose.xlu0.b32.cont [10/16] %v1087, 128
      %1120 = vxpose.xlu0.b32.cont [11/16] %v1088, 128
      %1121 = vxpose.xlu0.b32.cont [12/16] %v1089, 128
      %1122 = vxpose.xlu0.b32.cont [13/16] %v1090, 128
      %1123 = vxpose.xlu0.b32.cont [14/16] %v1091, 128
      %1124 = vxpose.xlu0.b32.cont [15/16] %v1092, 128
      %1125 = vxpose.xlu0.b32.end [16/16] %v1093, 128
      %v1126 = vpop.trf.xlu0
      %v1127 = vpop.trf.xlu0
      %v1128 = vpop.trf.xlu0
      %v1129 = vpop.trf.xlu0
      %v1130 = vpop.trf.xlu0
      %v1131 = vpop.trf.xlu0
      %v1132 = vpop.trf.xlu0
      %v1133 = vpop.trf.xlu0
      %v1134 = vpop.trf.xlu0
      %v1135 = vpop.trf.xlu0
      %v1136 = vpop.trf.xlu0
      %v1137 = vpop.trf.xlu0
      %v1138 = vpop.trf.xlu0
      %v1139 = vpop.trf.xlu0
      %v1140 = vpop.trf.xlu0
      %v1141 = vpop.trf.xlu0
      %1142 = vxpose.xlu0.b32.start [1/16] %v1094, 128
      %1143 = vxpose.xlu0.b32.cont [2/16] %v1095, 128
      %1144 = vxpose.xlu0.b32.cont [3/16] %v1096, 128
      %1145 = vxpose.xlu0.b32.cont [4/16] %v1097, 128
      %1146 = vxpose.xlu0.b32.cont [5/16] %v1098, 128
      %1147 = vxpose.xlu0.b32.cont [6/16] %v1099, 128
      %1148 = vxpose.xlu0.b32.cont [7/16] %v1100, 128
      %1149 = vxpose.xlu0.b32.cont [8/16] %v1101, 128
      %1150 = vxpose.xlu0.b32.cont [9/16] %v1102, 128
      %1151 = vxpose.xlu0.b32.cont [10/16] %v1103, 128
      %1152 = vxpose.xlu0.b32.cont [11/16] %v1104, 128
      %1153 = vxpose.xlu0.b32.cont [12/16] %v1105, 128
      %1154 = vxpose.xlu0.b32.cont [13/16] %v1106, 128
      %1155 = vxpose.xlu0.b32.cont [14/16] %v1107, 128
      %1156 = vxpose.xlu0.b32.cont [15/16] %v1108, 128
      %1157 = vxpose.xlu0.b32.end [16/16] %v1109, 128
      %v1158 = vpop.trf.xlu0
      %v1159 = vpop.trf.xlu0
      %v1160 = vpop.trf.xlu0
      %v1161 = vpop.trf.xlu0
      %v1162 = vpop.trf.xlu0
      %v1163 = vpop.trf.xlu0
      %v1164 = vpop.trf.xlu0
      %v1165 = vpop.trf.xlu0
      %v1166 = vpop.trf.xlu0
      %v1167 = vpop.trf.xlu0
      %v1168 = vpop.trf.xlu0
      %v1169 = vpop.trf.xlu0
      %v1170 = vpop.trf.xlu0
      %v1171 = vpop.trf.xlu0
      %v1172 = vpop.trf.xlu0
      %v1173 = vpop.trf.xlu0
      %v1176 = vcombine.low %v1126, %v1158
      %1178 = vst [vmem:[%s170] sm:$0xff] %v1176
      %s1179 = scalar_lea.vmem %s1, 32
      %v1180 = vld [vmem:[%s1179] sm:$0xff]
      %s1181 = scalar_lea.vmem %s1, 40
      %v1182 = vld [vmem:[%s1181] sm:$0xff]
      %v1184 = vsel %vm519, %v514, 0
      %v1187 = vsel %vm519, %v515, 0
      %1189 = vmatprep.subr.mxu0 0.0
      %1190 = vmatpush1.msra.mxu0 %v1182
      %1191 = vmatprep.subr.mxu0 0.0
      %1192 = vmatpush1.msra.mxu0 0.0
      %1193 = vmatprep.subr.mxu0 0.0
      %1194 = vmatpush1.msra.mxu0 0.0
      %1195 = vmatprep.subr.mxu0 0.0
      %1196 = vmatpush1.msra.mxu0 0.0
      %1197 = vmatprep.subr.mxu0 0.0
      %1198 = vmatpush1.msra.mxu0 0.0
      %1199 = vmatprep.subr.mxu0 0.0
      %1200 = vmatpush1.msra.mxu0 0.0
      %1201 = vmatprep.subr.mxu0 0.0
      %1202 = vmatpush1.msra.mxu0 0.0
      %1203 = vmatprep.subr.mxu0 0.0
      %1204 = vmatpush1.msra.mxu0 0.0
      %1205 = vmatprep.subr.mxu0 0.0
      %1206 = vmatpush1.msra.mxu0 0.0
      %1207 = vmatprep.subr.mxu0 0.0
      %1208 = vmatpush1.msra.mxu0 0.0
      %1209 = vmatprep.subr.mxu0 0.0
      %1210 = vmatpush1.msra.mxu0 0.0
      %1211 = vmatprep.subr.mxu0 0.0
      %1212 = vmatpush1.msra.mxu0 0.0
      %1213 = vmatprep.subr.mxu0 0.0
      %1214 = vmatpush1.msra.mxu0 0.0
      %1215 = vmatprep.subr.mxu0 0.0
      %1216 = vmatpush1.msra.mxu0 0.0
      %1217 = vmatprep.subr.mxu0 0.0
      %1218 = vmatpush1.msra.mxu0 0.0
      %1219 = vmatprep.subr.mxu0 0.0
      %1220 = vmatpush1.msra.mxu0 0.0
      %1221 = vmatprep.subr.mxu0 0.0
      %1222 = vmatpush1.msra.mxu0 0.0
      %1223 = vmatprep.subr.mxu0 0.0
      %1224 = vmatpush1.msra.mxu0 0.0
      %1225 = vmatprep.subr.mxu0 0.0
      %1226 = vmatpush1.msra.mxu0 0.0
      %1227 = vmatprep.subr.mxu0 0.0
      %1228 = vmatpush1.msra.mxu0 0.0
      %1229 = vmatprep.subr.mxu0 0.0
      %1230 = vmatpush1.msra.mxu0 0.0
      %1231 = vmatprep.subr.mxu0 0.0
      %1232 = vmatpush1.msra.mxu0 0.0
      %1233 = vmatprep.subr.mxu0 0.0
      %1234 = vmatpush1.msra.mxu0 0.0
      %1235 = vmatprep.subr.mxu0 0.0
      %1236 = vmatpush1.msra.mxu0 0.0
      %1237 = vmatprep.subr.mxu0 0.0
      %1238 = vmatpush1.msra.mxu0 0.0
      %1239 = vmatprep.subr.mxu0 0.0
      %1240 = vmatpush1.msra.mxu0 0.0
      %1241 = vmatprep.subr.mxu0 0.0
      %1242 = vmatpush1.msra.mxu0 0.0
      %1243 = vmatprep.subr.mxu0 0.0
      %1244 = vmatpush1.msra.mxu0 0.0
      %1245 = vmatprep.subr.mxu0 0.0
      %1246 = vmatpush1.msra.mxu0 0.0
      %1247 = vmatprep.subr.mxu0 0.0
      %1248 = vmatpush1.msra.mxu0 0.0
      %1249 = vmatprep.subr.mxu0 0.0
      %1250 = vmatpush1.msra.mxu0 0.0
      %1251 = vmatprep.subr.mxu0 0.0
      %1252 = vmatpush1.msra.mxu0 0.0
      %1253 = vmatprep.mubr.f32.mxu0 0.0
      %1254 = vmatmul.mubr.f32.gmra.mrb[0].mxu0 %v527
      %v1255 = vpop.f32.mrb[0].mxu0
      %v1256 = vadd.f32 0.0, %v1255
      %v1257 = vpop.f32.mrb[0].mxu0
      %1258 = vmatprep.mubr.f32.mxu0 0.0
      %1259 = vmatmul.mubr.f32.gmra.mrb[0].mxu0 %v530
      %v1260 = vpop.f32.mrb[0].mxu0
      %v1261 = vadd.f32 0.0, %v1260
      %v1262 = vpop.f32.mrb[0].mxu0
      %1263 = vmatprep.mubr.f32.mxu0 0.0
      %1264 = vmatmul.mubr.f32.gmra.mrb[0].mxu0 %v533
      %v1265 = vpop.f32.mrb[0].mxu0
      %v1266 = vadd.f32 0.0, %v1265
      %v1267 = vpop.f32.mrb[0].mxu0
      %1268 = vmatprep.mubr.f32.mxu0 0.0
      %1269 = vmatmul.mubr.f32.gmra.mrb[0].mxu0 %v536
      %v1270 = vpop.f32.mrb[0].mxu0
      %v1271 = vadd.f32 0.0, %v1270
      %v1272 = vpop.f32.mrb[0].mxu0
      %1273 = vmatprep.mubr.f32.mxu0 0.0
      %1274 = vmatmul.mubr.f32.gmra.mrb[0].mxu0 %v539
      %v1275 = vpop.f32.mrb[0].mxu0
      %v1276 = vadd.f32 0.0, %v1275
      %v1277 = vpop.f32.mrb[0].mxu0
      %1278 = vmatprep.mubr.f32.mxu0 0.0
      %1279 = vmatmul.mubr.f32.gmra.mrb[0].mxu0 %v542
      %v1280 = vpop.f32.mrb[0].mxu0
      %v1281 = vadd.f32 0.0, %v1280
      %v1282 = vpop.f32.mrb[0].mxu0
      %1283 = vmatprep.mubr.f32.mxu0 0.0
      %1284 = vmatmul.mubr.f32.gmra.mrb[0].mxu0 %v545
      %v1285 = vpop.f32.mrb[0].mxu0
      %v1286 = vadd.f32 0.0, %v1285
      %v1287 = vpop.f32.mrb[0].mxu0
      %1288 = vmatprep.mubr.f32.mxu0 0.0
      %1289 = vmatmul.mubr.f32.gmra.mrb[0].mxu0 %v548
      %v1290 = vpop.f32.mrb[0].mxu0
      %v1291 = vadd.f32 0.0, %v1290
      %v1292 = vpop.f32.mrb[0].mxu0
      %1293 = vmatprep.mubr.f32.mxu0 0.0
      %1294 = vmatmul.mubr.f32.gmra.mrb[0].mxu0 %v551
      %v1295 = vpop.f32.mrb[0].mxu0
      %v1296 = vadd.f32 0.0, %v1295
      %v1297 = vpop.f32.mrb[0].mxu0
      %1298 = vmatprep.mubr.f32.mxu0 0.0
      %1299 = vmatmul.mubr.f32.gmra.mrb[0].mxu0 %v554
      %v1300 = vpop.f32.mrb[0].mxu0
      %v1301 = vadd.f32 0.0, %v1300
      %v1302 = vpop.f32.mrb[0].mxu0
      %1303 = vmatprep.mubr.f32.mxu0 0.0
      %1304 = vmatmul.mubr.f32.gmra.mrb[0].mxu0 %v557
      %v1305 = vpop.f32.mrb[0].mxu0
      %v1306 = vadd.f32 0.0, %v1305
      %v1307 = vpop.f32.mrb[0].mxu0
      %1308 = vmatprep.mubr.f32.mxu0 0.0
      %1309 = vmatmul.mubr.f32.gmra.mrb[0].mxu0 %v560
      %v1310 = vpop.f32.mrb[0].mxu0
      %v1311 = vadd.f32 0.0, %v1310
      %v1312 = vpop.f32.mrb[0].mxu0
      %1313 = vmatprep.mubr.f32.mxu0 0.0
      %1314 = vmatmul.mubr.f32.gmra.mrb[0].mxu0 %v563
      %v1315 = vpop.f32.mrb[0].mxu0
      %v1316 = vadd.f32 0.0, %v1315
      %v1317 = vpop.f32.mrb[0].mxu0
      %1318 = vmatprep.mubr.f32.mxu0 0.0
      %1319 = vmatmul.mubr.f32.gmra.mrb[0].mxu0 %v566
      %v1320 = vpop.f32.mrb[0].mxu0
      %v1321 = vadd.f32 0.0, %v1320
      %v1322 = vpop.f32.mrb[0].mxu0
      %1323 = vmatprep.mubr.f32.mxu0 0.0
      %1324 = vmatmul.mubr.f32.gmra.mrb[0].mxu0 %v569
      %v1325 = vpop.f32.mrb[0].mxu0
      %v1326 = vadd.f32 0.0, %v1325
      %v1327 = vpop.f32.mrb[0].mxu0
      %1328 = vmatprep.mubr.f32.mxu0 0.0
      %1329 = vmatmul.mubr.f32.gmra.mrb[0].mxu0 %v572
      %v1330 = vpop.f32.mrb[0].mxu0
      %v1331 = vadd.f32 0.0, %v1330
      %v1332 = vpop.f32.mrb[0].mxu0
      %1333 = vmatprep.mubr.f32.mxu0 0.0
      %1334 = vmatmul.mubr.f32.gmra.mrb[0].mxu0 %v575
      %v1335 = vpop.f32.mrb[0].mxu0
      %v1336 = vadd.f32 0.0, %v1335
      %v1337 = vpop.f32.mrb[0].mxu0
      %1338 = vmatprep.mubr.f32.mxu0 0.0
      %1339 = vmatmul.mubr.f32.gmra.mrb[0].mxu0 %v578
      %v1340 = vpop.f32.mrb[0].mxu0
      %v1341 = vadd.f32 0.0, %v1340
      %v1342 = vpop.f32.mrb[0].mxu0
      %1343 = vmatprep.mubr.f32.mxu0 0.0
      %1344 = vmatmul.mubr.f32.gmra.mrb[0].mxu0 %v581
      %v1345 = vpop.f32.mrb[0].mxu0
      %v1346 = vadd.f32 0.0, %v1345
      %v1347 = vpop.f32.mrb[0].mxu0
      %1348 = vmatprep.mubr.f32.mxu0 0.0
      %1349 = vmatmul.mubr.f32.gmra.mrb[0].mxu0 %v584
      %v1350 = vpop.f32.mrb[0].mxu0
      %v1351 = vadd.f32 0.0, %v1350
      %v1352 = vpop.f32.mrb[0].mxu0
      %1353 = vmatprep.mubr.f32.mxu0 0.0
      %1354 = vmatmul.mubr.f32.gmra.mrb[0].mxu0 %v587
      %v1355 = vpop.f32.mrb[0].mxu0
      %v1356 = vadd.f32 0.0, %v1355
      %v1357 = vpop.f32.mrb[0].mxu0
      %1358 = vmatprep.mubr.f32.mxu0 0.0
      %1359 = vmatmul.mubr.f32.gmra.mrb[0].mxu0 %v590
      %v1360 = vpop.f32.mrb[0].mxu0
      %v1361 = vadd.f32 0.0, %v1360
      %v1362 = vpop.f32.mrb[0].mxu0
      %1363 = vmatprep.mubr.f32.mxu0 0.0
      %1364 = vmatmul.mubr.f32.gmra.mrb[0].mxu0 %v593
      %v1365 = vpop.f32.mrb[0].mxu0
      %v1366 = vadd.f32 0.0, %v1365
      %v1367 = vpop.f32.mrb[0].mxu0
      %1368 = vmatprep.mubr.f32.mxu0 0.0
      %1369 = vmatmul.mubr.f32.gmra.mrb[0].mxu0 %v596
      %v1370 = vpop.f32.mrb[0].mxu0
      %v1371 = vadd.f32 0.0, %v1370
      %v1372 = vpop.f32.mrb[0].mxu0
      %1373 = vmatprep.mubr.f32.mxu0 0.0
      %1374 = vmatmul.mubr.f32.gmra.mrb[0].mxu0 %v599
      %v1375 = vpop.f32.mrb[0].mxu0
      %v1376 = vadd.f32 0.0, %v1375
      %v1377 = vpop.f32.mrb[0].mxu0
      %1378 = vmatprep.mubr.f32.mxu0 0.0
      %1379 = vmatmul.mubr.f32.gmra.mrb[0].mxu0 %v602
      %v1380 = vpop.f32.mrb[0].mxu0
      %v1381 = vadd.f32 0.0, %v1380
      %v1382 = vpop.f32.mrb[0].mxu0
      %1383 = vmatprep.mubr.f32.mxu0 0.0
      %1384 = vmatmul.mubr.f32.gmra.mrb[0].mxu0 %v605
      %v1385 = vpop.f32.mrb[0].mxu0
      %v1386 = vadd.f32 0.0, %v1385
      %v1387 = vpop.f32.mrb[0].mxu0
      %1388 = vmatprep.mubr.f32.mxu0 0.0
      %1389 = vmatmul.mubr.f32.gmra.mrb[0].mxu0 %v608
      %v1390 = vpop.f32.mrb[0].mxu0
      %v1391 = vadd.f32 0.0, %v1390
      %v1392 = vpop.f32.mrb[0].mxu0
      %1393 = vmatprep.mubr.f32.mxu0 0.0
      %1394 = vmatmul.mubr.f32.gmra.mrb[0].mxu0 %v611
      %v1395 = vpop.f32.mrb[0].mxu0
      %v1396 = vadd.f32 0.0, %v1395
      %v1397 = vpop.f32.mrb[0].mxu0
      %1398 = vmatprep.mubr.f32.mxu0 0.0
      %1399 = vmatmul.mubr.f32.gmra.mrb[0].mxu0 %v614
      %v1400 = vpop.f32.mrb[0].mxu0
      %v1401 = vadd.f32 0.0, %v1400
      %v1402 = vpop.f32.mrb[0].mxu0
      %1403 = vmatprep.mubr.f32.mxu0 0.0
      %1404 = vmatmul.mubr.f32.gmra.mrb[0].mxu0 %v1184
      %v1405 = vpop.f32.mrb[0].mxu0
      %v1406 = vadd.f32 0.0, %v1405
      %v1407 = vpop.f32.mrb[0].mxu0
      %1408 = vmatprep.mubr.f32.mxu0 0.0
      %1409 = vmatmul.mubr.f32.gmra.mrb[0].mxu0 %v1187
      %v1410 = vpop.f32.mrb[0].mxu0
      %v1411 = vadd.f32 0.0, %v1410
      %v1412 = vpop.f32.mrb[0].mxu0
      %1413 = vdwg.mxu0
      %1414 = vmatprep.subr.mxu0 0.0
      %1415 = vmatpush1.msra.mxu0 %v1180
      %1416 = vmatprep.subr.mxu0 0.0
      %1417 = vmatpush1.msra.mxu0 0.0
      %1418 = vmatprep.subr.mxu0 0.0
      %1419 = vmatpush1.msra.mxu0 0.0
      %1420 = vmatprep.subr.mxu0 0.0
      %1421 = vmatpush1.msra.mxu0 0.0
      %1422 = vmatprep.subr.mxu0 0.0
      %1423 = vmatpush1.msra.mxu0 0.0
      %1424 = vmatprep.subr.mxu0 0.0
      %1425 = vmatpush1.msra.mxu0 0.0
      %1426 = vmatprep.subr.mxu0 0.0
      %1427 = vmatpush1.msra.mxu0 0.0
      %1428 = vmatprep.subr.mxu0 0.0
      %1429 = vmatpush1.msra.mxu0 0.0
      %1430 = vmatprep.subr.mxu0 0.0
      %1431 = vmatpush1.msra.mxu0 0.0
      %1432 = vmatprep.subr.mxu0 0.0
      %1433 = vmatpush1.msra.mxu0 0.0
      %1434 = vmatprep.subr.mxu0 0.0
      %1435 = vmatpush1.msra.mxu0 0.0
      %1436 = vmatprep.subr.mxu0 0.0
      %1437 = vmatpush1.msra.mxu0 0.0
      %1438 = vmatprep.subr.mxu0 0.0
      %1439 = vmatpush1.msra.mxu0 0.0
      %1440 = vmatprep.subr.mxu0 0.0
      %1441 = vmatpush1.msra.mxu0 0.0
      %1442 = vmatprep.subr.mxu0 0.0
      %1443 = vmatpush1.msra.mxu0 0.0
      %1444 = vmatprep.subr.mxu0 0.0
      %1445 = vmatpush1.msra.mxu0 0.0
      %1446 = vmatprep.subr.mxu0 0.0
      %1447 = vmatpush1.msra.mxu0 0.0
      %1448 = vmatprep.subr.mxu0 0.0
      %1449 = vmatpush1.msra.mxu0 0.0
      %1450 = vmatprep.subr.mxu0 0.0
      %1451 = vmatpush1.msra.mxu0 0.0
      %1452 = vmatprep.subr.mxu0 0.0
      %1453 = vmatpush1.msra.mxu0 0.0
      %1454 = vmatprep.subr.mxu0 0.0
      %1455 = vmatpush1.msra.mxu0 0.0
      %1456 = vmatprep.subr.mxu0 0.0
      %1457 = vmatpush1.msra.mxu0 0.0
      %1458 = vmatprep.subr.mxu0 0.0
      %1459 = vmatpush1.msra.mxu0 0.0
      %1460 = vmatprep.subr.mxu0 0.0
      %1461 = vmatpush1.msra.mxu0 0.0
      %1462 = vmatprep.subr.mxu0 0.0
      %1463 = vmatpush1.msra.mxu0 0.0
      %1464 = vmatprep.subr.mxu0 0.0
      %1465 = vmatpush1.msra.mxu0 0.0
      %1466 = vmatprep.subr.mxu0 0.0
      %1467 = vmatpush1.msra.mxu0 0.0
      %1468 = vmatprep.subr.mxu0 0.0
      %1469 = vmatpush1.msra.mxu0 0.0
      %1470 = vmatprep.subr.mxu0 0.0
      %1471 = vmatpush1.msra.mxu0 0.0
      %1472 = vmatprep.subr.mxu0 0.0
      %1473 = vmatpush1.msra.mxu0 0.0
      %1474 = vmatprep.subr.mxu0 0.0
      %1475 = vmatpush1.msra.mxu0 0.0
      %1476 = vmatprep.subr.mxu0 0.0
      %1477 = vmatpush1.msra.mxu0 0.0
      %1478 = vmatprep.mubr.f32.mxu0 0.0
      %1479 = vmatmul.mubr.f32.gmra.mrb[0].mxu0 %v521
      %v1480 = vpop.f32.mrb[0].mxu0
      %v1481 = vadd.f32 %v1256, %v1480
      %v1482 = vpop.f32.mrb[0].mxu0
      %1483 = vmatprep.mubr.f32.mxu0 0.0
      %1484 = vmatmul.mubr.f32.gmra.mrb[0].mxu0 %v524
      %v1485 = vpop.f32.mrb[0].mxu0
      %v1486 = vadd.f32 %v1261, %v1485
      %v1487 = vpop.f32.mrb[0].mxu0
      %1488 = vmatprep.mubr.f32.mxu0 0.0
      %1489 = vmatmul.mubr.f32.gmra.mrb[0].mxu0 %v527
      %v1490 = vpop.f32.mrb[0].mxu0
      %v1491 = vadd.f32 %v1266, %v1490
      %v1492 = vpop.f32.mrb[0].mxu0
      %1493 = vmatprep.mubr.f32.mxu0 0.0
      %1494 = vmatmul.mubr.f32.gmra.mrb[0].mxu0 %v530
      %v1495 = vpop.f32.mrb[0].mxu0
      %v1496 = vadd.f32 %v1271, %v1495
      %v1497 = vpop.f32.mrb[0].mxu0
      %1498 = vmatprep.mubr.f32.mxu0 0.0
      %1499 = vmatmul.mubr.f32.gmra.mrb[0].mxu0 %v533
      %v1500 = vpop.f32.mrb[0].mxu0
      %v1501 = vadd.f32 %v1276, %v1500
      %v1502 = vpop.f32.mrb[0].mxu0
      %1503 = vmatprep.mubr.f32.mxu0 0.0
      %1504 = vmatmul.mubr.f32.gmra.mrb[0].mxu0 %v536
      %v1505 = vpop.f32.mrb[0].mxu0
      %v1506 = vadd.f32 %v1281, %v1505
      %v1507 = vpop.f32.mrb[0].mxu0
      %1508 = vmatprep.mubr.f32.mxu0 0.0
      %1509 = vmatmul.mubr.f32.gmra.mrb[0].mxu0 %v539
      %v1510 = vpop.f32.mrb[0].mxu0
      %v1511 = vadd.f32 %v1286, %v1510
      %v1512 = vpop.f32.mrb[0].mxu0
      %1513 = vmatprep.mubr.f32.mxu0 0.0
      %1514 = vmatmul.mubr.f32.gmra.mrb[0].mxu0 %v542
      %v1515 = vpop.f32.mrb[0].mxu0
      %v1516 = vadd.f32 %v1291, %v1515
      %v1517 = vpop.f32.mrb[0].mxu0
      %1518 = vmatprep.mubr.f32.mxu0 0.0
      %1519 = vmatmul.mubr.f32.gmra.mrb[0].mxu0 %v545
      %v1520 = vpop.f32.mrb[0].mxu0
      %v1521 = vadd.f32 %v1296, %v1520
      %v1522 = vpop.f32.mrb[0].mxu0
      %1523 = vmatprep.mubr.f32.mxu0 0.0
      %1524 = vmatmul.mubr.f32.gmra.mrb[0].mxu0 %v548
      %v1525 = vpop.f32.mrb[0].mxu0
      %v1526 = vadd.f32 %v1301, %v1525
      %v1527 = vpop.f32.mrb[0].mxu0
      %1528 = vmatprep.mubr.f32.mxu0 0.0
      %1529 = vmatmul.mubr.f32.gmra.mrb[0].mxu0 %v551
      %v1530 = vpop.f32.mrb[0].mxu0
      %v1531 = vadd.f32 %v1306, %v1530
      %v1532 = vpop.f32.mrb[0].mxu0
      %1533 = vmatprep.mubr.f32.mxu0 0.0
      %1534 = vmatmul.mubr.f32.gmra.mrb[0].mxu0 %v554
      %v1535 = vpop.f32.mrb[0].mxu0
      %v1536 = vadd.f32 %v1311, %v1535
      %v1537 = vpop.f32.mrb[0].mxu0
      %1538 = vmatprep.mubr.f32.mxu0 0.0
      %1539 = vmatmul.mubr.f32.gmra.mrb[0].mxu0 %v557
      %v1540 = vpop.f32.mrb[0].mxu0
      %v1541 = vadd.f32 %v1316, %v1540
      %v1542 = vpop.f32.mrb[0].mxu0
      %1543 = vmatprep.mubr.f32.mxu0 0.0
      %1544 = vmatmul.mubr.f32.gmra.mrb[0].mxu0 %v560
      %v1545 = vpop.f32.mrb[0].mxu0
      %v1546 = vadd.f32 %v1321, %v1545
      %v1547 = vpop.f32.mrb[0].mxu0
      %1548 = vmatprep.mubr.f32.mxu0 0.0
      %1549 = vmatmul.mubr.f32.gmra.mrb[0].mxu0 %v563
      %v1550 = vpop.f32.mrb[0].mxu0
      %v1551 = vadd.f32 %v1326, %v1550
      %v1552 = vpop.f32.mrb[0].mxu0
      %1553 = vmatprep.mubr.f32.mxu0 0.0
      %1554 = vmatmul.mubr.f32.gmra.mrb[0].mxu0 %v566
      %v1555 = vpop.f32.mrb[0].mxu0
      %v1556 = vadd.f32 %v1331, %v1555
      %v1557 = vpop.f32.mrb[0].mxu0
      %1558 = vmatprep.mubr.f32.mxu0 0.0
      %1559 = vmatmul.mubr.f32.gmra.mrb[0].mxu0 %v569
      %v1560 = vpop.f32.mrb[0].mxu0
      %v1561 = vadd.f32 %v1336, %v1560
      %v1562 = vpop.f32.mrb[0].mxu0
      %1563 = vmatprep.mubr.f32.mxu0 0.0
      %1564 = vmatmul.mubr.f32.gmra.mrb[0].mxu0 %v572
      %v1565 = vpop.f32.mrb[0].mxu0
      %v1566 = vadd.f32 %v1341, %v1565
      %v1567 = vpop.f32.mrb[0].mxu0
      %1568 = vmatprep.mubr.f32.mxu0 0.0
      %1569 = vmatmul.mubr.f32.gmra.mrb[0].mxu0 %v575
      %v1570 = vpop.f32.mrb[0].mxu0
      %v1571 = vadd.f32 %v1346, %v1570
      %v1572 = vpop.f32.mrb[0].mxu0
      %1573 = vmatprep.mubr.f32.mxu0 0.0
      %1574 = vmatmul.mubr.f32.gmra.mrb[0].mxu0 %v578
      %v1575 = vpop.f32.mrb[0].mxu0
      %v1576 = vadd.f32 %v1351, %v1575
      %v1577 = vpop.f32.mrb[0].mxu0
      %1578 = vmatprep.mubr.f32.mxu0 0.0
      %1579 = vmatmul.mubr.f32.gmra.mrb[0].mxu0 %v581
      %v1580 = vpop.f32.mrb[0].mxu0
      %v1581 = vadd.f32 %v1356, %v1580
      %v1582 = vpop.f32.mrb[0].mxu0
      %1583 = vmatprep.mubr.f32.mxu0 0.0
      %1584 = vmatmul.mubr.f32.gmra.mrb[0].mxu0 %v584
      %v1585 = vpop.f32.mrb[0].mxu0
      %v1586 = vadd.f32 %v1361, %v1585
      %v1587 = vpop.f32.mrb[0].mxu0
      %1588 = vmatprep.mubr.f32.mxu0 0.0
      %1589 = vmatmul.mubr.f32.gmra.mrb[0].mxu0 %v587
      %v1590 = vpop.f32.mrb[0].mxu0
      %v1591 = vadd.f32 %v1366, %v1590
      %v1592 = vpop.f32.mrb[0].mxu0
      %1593 = vmatprep.mubr.f32.mxu0 0.0
      %1594 = vmatmul.mubr.f32.gmra.mrb[0].mxu0 %v590
      %v1595 = vpop.f32.mrb[0].mxu0
      %v1596 = vadd.f32 %v1371, %v1595
      %v1597 = vpop.f32.mrb[0].mxu0
      %1598 = vmatprep.mubr.f32.mxu0 0.0
      %1599 = vmatmul.mubr.f32.gmra.mrb[0].mxu0 %v593
      %v1600 = vpop.f32.mrb[0].mxu0
      %v1601 = vadd.f32 %v1376, %v1600
      %v1602 = vpop.f32.mrb[0].mxu0
      %1603 = vmatprep.mubr.f32.mxu0 0.0
      %1604 = vmatmul.mubr.f32.gmra.mrb[0].mxu0 %v596
      %v1605 = vpop.f32.mrb[0].mxu0
      %v1606 = vadd.f32 %v1381, %v1605
      %v1607 = vpop.f32.mrb[0].mxu0
      %1608 = vmatprep.mubr.f32.mxu0 0.0
      %1609 = vmatmul.mubr.f32.gmra.mrb[0].mxu0 %v599
      %v1610 = vpop.f32.mrb[0].mxu0
      %v1611 = vadd.f32 %v1386, %v1610
      %v1612 = vpop.f32.mrb[0].mxu0
      %1613 = vmatprep.mubr.f32.mxu0 0.0
      %1614 = vmatmul.mubr.f32.gmra.mrb[0].mxu0 %v602
      %v1615 = vpop.f32.mrb[0].mxu0
      %v1616 = vadd.f32 %v1391, %v1615
      %v1617 = vpop.f32.mrb[0].mxu0
      %1618 = vmatprep.mubr.f32.mxu0 0.0
      %1619 = vmatmul.mubr.f32.gmra.mrb[0].mxu0 %v605
      %v1620 = vpop.f32.mrb[0].mxu0
      %v1621 = vadd.f32 %v1396, %v1620
      %v1622 = vpop.f32.mrb[0].mxu0
      %1623 = vmatprep.mubr.f32.mxu0 0.0
      %1624 = vmatmul.mubr.f32.gmra.mrb[0].mxu0 %v608
      %v1625 = vpop.f32.mrb[0].mxu0
      %v1626 = vadd.f32 %v1401, %v1625
      %v1627 = vpop.f32.mrb[0].mxu0
      %1628 = vmatprep.mubr.f32.mxu0 0.0
      %1629 = vmatmul.mubr.f32.gmra.mrb[0].mxu0 %v611
      %v1630 = vpop.f32.mrb[0].mxu0
      %v1631 = vadd.f32 %v1406, %v1630
      %v1632 = vpop.f32.mrb[0].mxu0
      %1633 = vmatprep.mubr.f32.mxu0 0.0
      %1634 = vmatmul.mubr.f32.gmra.mrb[0].mxu0 %v614
      %v1635 = vpop.f32.mrb[0].mxu0
      %v1636 = vadd.f32 %v1411, %v1635
      %v1637 = vpop.f32.mrb[0].mxu0
      %1638 = vdwg.mxu0
      %v1639 = vadd.f32 %v1481, %v1076
      %v1640 = vadd.f32 %v1486, %v1076
      %v1641 = vadd.f32 %v1491, %v1076
      %v1642 = vadd.f32 %v1496, %v1076
      %v1643 = vadd.f32 %v1501, %v1076
      %v1644 = vadd.f32 %v1506, %v1076
      %v1645 = vadd.f32 %v1511, %v1076
      %v1646 = vadd.f32 %v1516, %v1076
      %v1647 = vadd.f32 %v1521, %v1076
      %v1648 = vadd.f32 %v1526, %v1076
      %v1649 = vadd.f32 %v1531, %v1076
      %v1650 = vadd.f32 %v1536, %v1076
      %v1651 = vadd.f32 %v1541, %v1076
      %v1652 = vadd.f32 %v1546, %v1076
      %v1653 = vadd.f32 %v1551, %v1076
      %v1654 = vadd.f32 %v1556, %v1076
      %v1655 = vadd.f32 %v1561, %v1076
      %v1656 = vadd.f32 %v1566, %v1076
      %v1657 = vadd.f32 %v1571, %v1076
      %v1658 = vadd.f32 %v1576, %v1076
      %v1659 = vadd.f32 %v1581, %v1076
      %v1660 = vadd.f32 %v1586, %v1076
      %v1661 = vadd.f32 %v1591, %v1076
      %v1662 = vadd.f32 %v1596, %v1076
      %v1663 = vadd.f32 %v1601, %v1076
      %v1664 = vadd.f32 %v1606, %v1076
      %v1665 = vadd.f32 %v1611, %v1076
      %v1666 = vadd.f32 %v1616, %v1076
      %v1667 = vadd.f32 %v1621, %v1076
      %v1668 = vadd.f32 %v1626, %v1076
      %v1669 = vadd.f32 %v1631, %v1076
      %v1670 = vadd.f32 %v1636, %v1076
      %1671 = vxpose.xlu0.b32.start [1/16] %v1639, 128
      %1672 = vxpose.xlu0.b32.cont [2/16] %v1640, 128
      %1673 = vxpose.xlu0.b32.cont [3/16] %v1641, 128
      %1674 = vxpose.xlu0.b32.cont [4/16] %v1642, 128
      %1675 = vxpose.xlu0.b32.cont [5/16] %v1643, 128
      %1676 = vxpose.xlu0.b32.cont [6/16] %v1644, 128
      %1677 = vxpose.xlu0.b32.cont [7/16] %v1645, 128
      %1678 = vxpose.xlu0.b32.cont [8/16] %v1646, 128
      %1679 = vxpose.xlu0.b32.cont [9/16] %v1647, 128
      %1680 = vxpose.xlu0.b32.cont [10/16] %v1648, 128
      %1681 = vxpose.xlu0.b32.cont [11/16] %v1649, 128
      %1682 = vxpose.xlu0.b32.cont [12/16] %v1650, 128
      %1683 = vxpose.xlu0.b32.cont [13/16] %v1651, 128
      %1684 = vxpose.xlu0.b32.cont [14/16] %v1652, 128
      %1685 = vxpose.xlu0.b32.cont [15/16] %v1653, 128
      %1686 = vxpose.xlu0.b32.end [16/16] %v1654, 128
      %v1687 = vpop.trf.xlu0
      %v1688 = vpop.trf.xlu0
      %v1689 = vpop.trf.xlu0
      %v1690 = vpop.trf.xlu0
      %v1691 = vpop.trf.xlu0
      %v1692 = vpop.trf.xlu0
      %v1693 = vpop.trf.xlu0
      %v1694 = vpop.trf.xlu0
      %v1695 = vpop.trf.xlu0
      %v1696 = vpop.trf.xlu0
      %v1697 = vpop.trf.xlu0
      %v1698 = vpop.trf.xlu0
      %v1699 = vpop.trf.xlu0
      %v1700 = vpop.trf.xlu0
      %v1701 = vpop.trf.xlu0
      %v1702 = vpop.trf.xlu0
      %1703 = vxpose.xlu0.b32.start [1/16] %v1655, 128
      %1704 = vxpose.xlu0.b32.cont [2/16] %v1656, 128
      %1705 = vxpose.xlu0.b32.cont [3/16] %v1657, 128
      %1706 = vxpose.xlu0.b32.cont [4/16] %v1658, 128
      %1707 = vxpose.xlu0.b32.cont [5/16] %v1659, 128
      %1708 = vxpose.xlu0.b32.cont [6/16] %v1660, 128
      %1709 = vxpose.xlu0.b32.cont [7/16] %v1661, 128
      %1710 = vxpose.xlu0.b32.cont [8/16] %v1662, 128
      %1711 = vxpose.xlu0.b32.cont [9/16] %v1663, 128
      %1712 = vxpose.xlu0.b32.cont [10/16] %v1664, 128
      %1713 = vxpose.xlu0.b32.cont [11/16] %v1665, 128
      %1714 = vxpose.xlu0.b32.cont [12/16] %v1666, 128
      %1715 = vxpose.xlu0.b32.cont [13/16] %v1667, 128
      %1716 = vxpose.xlu0.b32.cont [14/16] %v1668, 128
      %1717 = vxpose.xlu0.b32.cont [15/16] %v1669, 128
      %1718 = vxpose.xlu0.b32.end [16/16] %v1670, 128
      %v1719 = vpop.trf.xlu0
      %v1720 = vpop.trf.xlu0
      %v1721 = vpop.trf.xlu0
      %v1722 = vpop.trf.xlu0
      %v1723 = vpop.trf.xlu0
      %v1724 = vpop.trf.xlu0
      %v1725 = vpop.trf.xlu0
      %v1726 = vpop.trf.xlu0
      %v1727 = vpop.trf.xlu0
      %v1728 = vpop.trf.xlu0
      %v1729 = vpop.trf.xlu0
      %v1730 = vpop.trf.xlu0
      %v1731 = vpop.trf.xlu0
      %v1732 = vpop.trf.xlu0
      %v1733 = vpop.trf.xlu0
      %v1734 = vpop.trf.xlu0
      %v1737 = vcombine.low %v1687, %v1719
      %s1739 = scalar_lea.vmem %s170, 16
      %1740 = vst [vmem:[%s1739] sm:$0xff] %v1737
      %1741 = vrot.lane.b32.xlu0 %v284, 4
      %v1742 = vpop.permute.xlu0 %1741
      %1743 = vrot.lane.b32.xlu0 %v289, 4
      %v1744 = vpop.permute.xlu0 %1743
      %1745 = vrot.lane.b32.xlu0 %v294, 4
      %v1746 = vpop.permute.xlu0 %1745
      %1747 = vrot.lane.b32.xlu0 %v299, 4
      %v1748 = vpop.permute.xlu0 %1747
      %1749 = vrot.lane.b32.xlu0 %v304, 4
      %v1750 = vpop.permute.xlu0 %1749
      %1751 = vrot.lane.b32.xlu0 %v309, 4
      %v1752 = vpop.permute.xlu0 %1751
      %1753 = vrot.lane.b32.xlu0 %v314, 4
      %v1754 = vpop.permute.xlu0 %1753
      %1755 = vrot.lane.b32.xlu0 %v319, 4
      %v1756 = vpop.permute.xlu0 %1755
      %1757 = vrot.lane.b32.xlu0 %v324, 4
      %v1758 = vpop.permute.xlu0 %1757
      %1759 = vrot.lane.b32.xlu0 %v329, 4
      %v1760 = vpop.permute.xlu0 %1759
      %1761 = vrot.lane.b32.xlu0 %v334, 4
      %v1762 = vpop.permute.xlu0 %1761
      %1763 = vrot.lane.b32.xlu0 %v339, 4
      %v1764 = vpop.permute.xlu0 %1763
      %1765 = vrot.lane.b32.xlu0 %v344, 4
      %v1766 = vpop.permute.xlu0 %1765
      %1767 = vrot.lane.b32.xlu0 %v349, 4
      %v1768 = vpop.permute.xlu0 %1767
      %1769 = vrot.lane.b32.xlu0 %v354, 4
      %v1770 = vpop.permute.xlu0 %1769
      %1771 = vrot.lane.b32.xlu0 %v359, 4
      %v1772 = vpop.permute.xlu0 %1771
      %1773 = vrot.lane.b32.xlu0 %v364, 4
      %v1774 = vpop.permute.xlu0 %1773
      %1775 = vrot.lane.b32.xlu0 %v369, 4
      %v1776 = vpop.permute.xlu0 %1775
      %v1795 = vsel %vm479, %v173, %v1742
      %v1796 = vsel %vm479, %v176, %v1744
      %v1797 = vsel %vm479, %v179, %v1746
      %v1798 = vsel %vm479, %v182, %v1748
      %v1799 = vsel %vm479, %v185, %v1750
      %v1800 = vsel %vm479, %v188, %v1752
      %v1801 = vsel %vm479, %v191, %v1754
      %v1802 = vsel %vm479, %v194, %v1756
      %v1803 = vsel %vm479, %v197, %v1758
      %v1804 = vsel %vm479, %v200, %v1760
      %v1805 = vsel %vm479, %v203, %v1762
      %v1806 = vsel %vm479, %v206, %v1764
      %v1807 = vsel %vm479, %v209, %v1766
      %v1808 = vsel %vm479, %v212, %v1768
      %v1809 = vsel %vm479, %v215, %v1770
      %v1810 = vsel %vm479, %v218, %v1772
      %v1811 = vsel %vm479, %v221, %v1774
      %v1812 = vsel %vm479, %v224, %v1776
      %v1831 = vrot.slane %v480, 1
      %v1832 = vrot.slane %v481, 1
      %v1833 = vsel %vm280, %v1831, %v1832
      %v1834 = vrot.slane %v1795, 1
      %v1835 = vsel %vm280, %v1832, %v1834
      %v1836 = vrot.slane %v482, 1
      %v1837 = vrot.slane %v483, 1
      %v1838 = vsel %vm280, %v1836, %v1837
      %v1839 = vrot.slane %v1796, 1
      %v1840 = vsel %vm280, %v1837, %v1839
      %v1841 = vrot.slane %v484, 1
      %v1842 = vrot.slane %v485, 1
      %v1843 = vsel %vm280, %v1841, %v1842
      %v1844 = vrot.slane %v1797, 1
      %v1845 = vsel %vm280, %v1842, %v1844
      %v1846 = vrot.slane %v486, 1
      %v1847 = vrot.slane %v487, 1
      %v1848 = vsel %vm280, %v1846, %v1847
      %v1849 = vrot.slane %v1798, 1
      %v1850 = vsel %vm280, %v1847, %v1849
      %v1851 = vrot.slane %v488, 1
      %v1852 = vrot.slane %v489, 1
      %v1853 = vsel %vm280, %v1851, %v1852
      %v1854 = vrot.slane %v1799, 1
      %v1855 = vsel %vm280, %v1852, %v1854
      %v1856 = vrot.slane %v490, 1
      %v1857 = vrot.slane %v491, 1
      %v1858 = vsel %vm280, %v1856, %v1857
      %v1859 = vrot.slane %v1800, 1
      %v1860 = vsel %vm280, %v1857, %v1859
      %v1861 = vrot.slane %v492, 1
      %v1862 = vrot.slane %v493, 1
      %v1863 = vsel %vm280, %v1861, %v1862
      %v1864 = vrot.slane %v1801, 1
      %v1865 = vsel %vm280, %v1862, %v1864
      %v1866 = vrot.slane %v494, 1
      %v1867 = vrot.slane %v495, 1
      %v1868 = vsel %vm280, %v1866, %v1867
      %v1869 = vrot.slane %v1802, 1
      %v1870 = vsel %vm280, %v1867, %v1869
      %v1871 = vrot.slane %v496, 1
      %v1872 = vrot.slane %v497, 1
      %v1873 = vsel %vm280, %v1871, %v1872
      %v1874 = vrot.slane %v1803, 1
      %v1875 = vsel %vm280, %v1872, %v1874
      %v1876 = vrot.slane %v498, 1
      %v1877 = vrot.slane %v499, 1
      %v1878 = vsel %vm280, %v1876, %v1877
      %v1879 = vrot.slane %v1804, 1
      %v1880 = vsel %vm280, %v1877, %v1879
      %v1881 = vrot.slane %v500, 1
      %v1882 = vrot.slane %v501, 1
      %v1883 = vsel %vm280, %v1881, %v1882
      %v1884 = vrot.slane %v1805, 1
      %v1885 = vsel %vm280, %v1882, %v1884
      %v1886 = vrot.slane %v502, 1
      %v1887 = vrot.slane %v503, 1
      %v1888 = vsel %vm280, %v1886, %v1887
      %v1889 = vrot.slane %v1806, 1
      %v1890 = vsel %vm280, %v1887, %v1889
      %v1891 = vrot.slane %v504, 1
      %v1892 = vrot.slane %v505, 1
      %v1893 = vsel %vm280, %v1891, %v1892
      %v1894 = vrot.slane %v1807, 1
      %v1895 = vsel %vm280, %v1892, %v1894
      %v1896 = vrot.slane %v506, 1
      %v1897 = vrot.slane %v507, 1
      %v1898 = vsel %vm280, %v1896, %v1897
      %v1899 = vrot.slane %v1808, 1
      %v1900 = vsel %vm280, %v1897, %v1899
      %v1901 = vrot.slane %v508, 1
      %v1902 = vrot.slane %v509, 1
      %v1903 = vsel %vm280, %v1901, %v1902
      %v1904 = vrot.slane %v1809, 1
      %v1905 = vsel %vm280, %v1902, %v1904
      %v1906 = vrot.slane %v510, 1
      %v1907 = vrot.slane %v511, 1
      %v1908 = vsel %vm280, %v1906, %v1907
      %v1909 = vrot.slane %v1810, 1
      %v1910 = vsel %vm280, %v1907, %v1909
      %v1911 = vrot.slane %v512, 1
      %v1912 = vrot.slane %v513, 1
      %v1913 = vsel %vm280, %v1911, %v1912
      %v1914 = vrot.slane %v1811, 1
      %v1915 = vsel %vm280, %v1912, %v1914
      %v1916 = vrot.slane %v514, 1
      %v1917 = vrot.slane %v515, 1
      %v1918 = vsel %vm280, %v1916, %v1917
      %v1919 = vrot.slane %v1812, 1
      %v1920 = vsel %vm280, %v1917, %v1919
      %s1921 = scalar_lea.vmem %s1, 16
      %v1922 = vld [vmem:[%s1921] sm:$0xff]
      %s1923 = scalar_lea.vmem %s1, 24
      %v1924 = vld [vmem:[%s1923] sm:$0xff]
      %v1925 = vsel %vm519, %v1838, 0
      %v1927 = vsel %vm519, %v1840, 0
      %v1929 = vsel %vm519, %v1843, 0
      %v1931 = vsel %vm519, %v1845, 0
      %v1933 = vsel %vm519, %v1848, 0
      %v1935 = vsel %vm519, %v1850, 0
      %v1937 = vsel %vm519, %v1853, 0
      %v1939 = vsel %vm519, %v1855, 0
      %v1941 = vsel %vm519, %v1858, 0
      %v1943 = vsel %vm519, %v1860, 0
      %v1945 = vsel %vm519, %v1863, 0
      %v1947 = vsel %vm519, %v1865, 0
      %v1949 = vsel %vm519, %v1868, 0
      %v1951 = vsel %vm519, %v1870, 0
      %v1953 = vsel %vm519, %v1873, 0
      %v1955 = vsel %vm519, %v1875, 0
      %v1957 = vsel %vm519, %v1878, 0
      %v1959 = vsel %vm519, %v1880, 0
      %v1961 = vsel %vm519, %v1883, 0
      %v1963 = vsel %vm519, %v1885, 0
      %v1965 = vsel %vm519, %v1888, 0
      %v1967 = vsel %vm519, %v1890, 0
      %v1969 = vsel %vm519, %v1893, 0
      %v1971 = vsel %vm519, %v1895, 0
      %v1973 = vsel %vm519, %v1898, 0
      %v1975 = vsel %vm519, %v1900, 0
      %v1977 = vsel %vm519, %v1903, 0
      %v1979 = vsel %vm519, %v1905, 0
      %v1981 = vsel %vm519, %v1908, 0
      %v1983 = vsel %vm519, %v1910, 0
      %v1985 = vsel %vm519, %v1913, 0
      %v1987 = vsel %vm519, %v1915, 0
      %1989 = vmatprep.subr.mxu0 0.0
      %1990 = vmatpush1.msra.mxu0 %v1924
      %1991 = vmatprep.subr.mxu0 0.0
      %1992 = vmatpush1.msra.mxu0 0.0
      %1993 = vmatprep.subr.mxu0 0.0
      %1994 = vmatpush1.msra.mxu0 0.0
      %1995 = vmatprep.subr.mxu0 0.0
      %1996 = vmatpush1.msra.mxu0 0.0
      %1997 = vmatprep.subr.mxu0 0.0
      %1998 = vmatpush1.msra.mxu0 0.0
      %1999 = vmatprep.subr.mxu0 0.0
      %2000 = vmatpush1.msra.mxu0 0.0
      %2001 = vmatprep.subr.mxu0 0.0
      %2002 = vmatpush1.msra.mxu0 0.0
      %2003 = vmatprep.subr.mxu0 0.0
      %2004 = vmatpush1.msra.mxu0 0.0
      %2005 = vmatprep.subr.mxu0 0.0
      %2006 = vmatpush1.msra.mxu0 0.0
      %2007 = vmatprep.subr.mxu0 0.0
      %2008 = vmatpush1.msra.mxu0 0.0
      %2009 = vmatprep.subr.mxu0 0.0
      %2010 = vmatpush1.msra.mxu0 0.0
      %2011 = vmatprep.subr.mxu0 0.0
      %2012 = vmatpush1.msra.mxu0 0.0
      %2013 = vmatprep.subr.mxu0 0.0
      %2014 = vmatpush1.msra.mxu0 0.0
      %2015 = vmatprep.subr.mxu0 0.0
      %2016 = vmatpush1.msra.mxu0 0.0
      %2017 = vmatprep.subr.mxu0 0.0
      %2018 = vmatpush1.msra.mxu0 0.0
      %2019 = vmatprep.subr.mxu0 0.0
      %2020 = vmatpush1.msra.mxu0 0.0
      %2021 = vmatprep.subr.mxu0 0.0
      %2022 = vmatpush1.msra.mxu0 0.0
      %2023 = vmatprep.subr.mxu0 0.0
      %2024 = vmatpush1.msra.mxu0 0.0
      %2025 = vmatprep.subr.mxu0 0.0
      %2026 = vmatpush1.msra.mxu0 0.0
      %2027 = vmatprep.subr.mxu0 0.0
      %2028 = vmatpush1.msra.mxu0 0.0
      %2029 = vmatprep.subr.mxu0 0.0
      %2030 = vmatpush1.msra.mxu0 0.0
      %2031 = vmatprep.subr.mxu0 0.0
      %2032 = vmatpush1.msra.mxu0 0.0
      %2033 = vmatprep.subr.mxu0 0.0
      %2034 = vmatpush1.msra.mxu0 0.0
      %2035 = vmatprep.subr.mxu0 0.0
      %2036 = vmatpush1.msra.mxu0 0.0
      %2037 = vmatprep.subr.mxu0 0.0
      %2038 = vmatpush1.msra.mxu0 0.0
      %2039 = vmatprep.subr.mxu0 0.0
      %2040 = vmatpush1.msra.mxu0 0.0
      %2041 = vmatprep.subr.mxu0 0.0
      %2042 = vmatpush1.msra.mxu0 0.0
      %2043 = vmatprep.subr.mxu0 0.0
      %2044 = vmatpush1.msra.mxu0 0.0
      %2045 = vmatprep.subr.mxu0 0.0
      %2046 = vmatpush1.msra.mxu0 0.0
      %2047 = vmatprep.subr.mxu0 0.0
      %2048 = vmatpush1.msra.mxu0 0.0
      %2049 = vmatprep.subr.mxu0 0.0
      %2050 = vmatpush1.msra.mxu0 0.0
      %2051 = vmatprep.subr.mxu0 0.0
      %2052 = vmatpush1.msra.mxu0 0.0
      %2053 = vmatprep.mubr.f32.mxu0 0.0
      %2054 = vmatmul.mubr.f32.gmra.mrb[0].mxu0 %v1925
      %v2055 = vpop.f32.mrb[0].mxu0
      %v2056 = vadd.f32 0.0, %v2055
      %v2057 = vpop.f32.mrb[0].mxu0
      %2058 = vmatprep.mubr.f32.mxu0 0.0
      %2059 = vmatmul.mubr.f32.gmra.mrb[0].mxu0 %v1927
      %v2060 = vpop.f32.mrb[0].mxu0
      %v2061 = vadd.f32 0.0, %v2060
      %v2062 = vpop.f32.mrb[0].mxu0
      %2063 = vmatprep.mubr.f32.mxu0 0.0
      %2064 = vmatmul.mubr.f32.gmra.mrb[0].mxu0 %v1929
      %v2065 = vpop.f32.mrb[0].mxu0
      %v2066 = vadd.f32 0.0, %v2065
      %v2067 = vpop.f32.mrb[0].mxu0
      %2068 = vmatprep.mubr.f32.mxu0 0.0
      %2069 = vmatmul.mubr.f32.gmra.mrb[0].mxu0 %v1931
      %v2070 = vpop.f32.mrb[0].mxu0
      %v2071 = vadd.f32 0.0, %v2070
      %v2072 = vpop.f32.mrb[0].mxu0
      %2073 = vmatprep.mubr.f32.mxu0 0.0
      %2074 = vmatmul.mubr.f32.gmra.mrb[0].mxu0 %v1933
      %v2075 = vpop.f32.mrb[0].mxu0
      %v2076 = vadd.f32 0.0, %v2075
      %v2077 = vpop.f32.mrb[0].mxu0
      %2078 = vmatprep.mubr.f32.mxu0 0.0
      %2079 = vmatmul.mubr.f32.gmra.mrb[0].mxu0 %v1935
      %v2080 = vpop.f32.mrb[0].mxu0
      %v2081 = vadd.f32 0.0, %v2080
      %v2082 = vpop.f32.mrb[0].mxu0
      %2083 = vmatprep.mubr.f32.mxu0 0.0
      %2084 = vmatmul.mubr.f32.gmra.mrb[0].mxu0 %v1937
      %v2085 = vpop.f32.mrb[0].mxu0
      %v2086 = vadd.f32 0.0, %v2085
      %v2087 = vpop.f32.mrb[0].mxu0
      %2088 = vmatprep.mubr.f32.mxu0 0.0
      %2089 = vmatmul.mubr.f32.gmra.mrb[0].mxu0 %v1939
      %v2090 = vpop.f32.mrb[0].mxu0
      %v2091 = vadd.f32 0.0, %v2090
      %v2092 = vpop.f32.mrb[0].mxu0
      %2093 = vmatprep.mubr.f32.mxu0 0.0
      %2094 = vmatmul.mubr.f32.gmra.mrb[0].mxu0 %v1941
      %v2095 = vpop.f32.mrb[0].mxu0
      %v2096 = vadd.f32 0.0, %v2095
      %v2097 = vpop.f32.mrb[0].mxu0
      %2098 = vmatprep.mubr.f32.mxu0 0.0
      %2099 = vmatmul.mubr.f32.gmra.mrb[0].mxu0 %v1943
      %v2100 = vpop.f32.mrb[0].mxu0
      %v2101 = vadd.f32 0.0, %v2100
      %v2102 = vpop.f32.mrb[0].mxu0
      %2103 = vmatprep.mubr.f32.mxu0 0.0
      %2104 = vmatmul.mubr.f32.gmra.mrb[0].mxu0 %v1945
      %v2105 = vpop.f32.mrb[0].mxu0
      %v2106 = vadd.f32 0.0, %v2105
      %v2107 = vpop.f32.mrb[0].mxu0
      %2108 = vmatprep.mubr.f32.mxu0 0.0
      %2109 = vmatmul.mubr.f32.gmra.mrb[0].mxu0 %v1947
      %v2110 = vpop.f32.mrb[0].mxu0
      %v2111 = vadd.f32 0.0, %v2110
      %v2112 = vpop.f32.mrb[0].mxu0
      %2113 = vmatprep.mubr.f32.mxu0 0.0
      %2114 = vmatmul.mubr.f32.gmra.mrb[0].mxu0 %v1949
      %v2115 = vpop.f32.mrb[0].mxu0
      %v2116 = vadd.f32 0.0, %v2115
      %v2117 = vpop.f32.mrb[0].mxu0
      %2118 = vmatprep.mubr.f32.mxu0 0.0
      %2119 = vmatmul.mubr.f32.gmra.mrb[0].mxu0 %v1951
      %v2120 = vpop.f32.mrb[0].mxu0
      %v2121 = vadd.f32 0.0, %v2120
      %v2122 = vpop.f32.mrb[0].mxu0
      %2123 = vmatprep.mubr.f32.mxu0 0.0
      %2124 = vmatmul.mubr.f32.gmra.mrb[0].mxu0 %v1953
      %v2125 = vpop.f32.mrb[0].mxu0
      %v2126 = vadd.f32 0.0, %v2125
      %v2127 = vpop.f32.mrb[0].mxu0
      %2128 = vmatprep.mubr.f32.mxu0 0.0
      %2129 = vmatmul.mubr.f32.gmra.mrb[0].mxu0 %v1955
      %v2130 = vpop.f32.mrb[0].mxu0
      %v2131 = vadd.f32 0.0, %v2130
      %v2132 = vpop.f32.mrb[0].mxu0
      %2133 = vmatprep.mubr.f32.mxu0 0.0
      %2134 = vmatmul.mubr.f32.gmra.mrb[0].mxu0 %v1957
      %v2135 = vpop.f32.mrb[0].mxu0
      %v2136 = vadd.f32 0.0, %v2135
      %v2137 = vpop.f32.mrb[0].mxu0
      %2138 = vmatprep.mubr.f32.mxu0 0.0
      %2139 = vmatmul.mubr.f32.gmra.mrb[0].mxu0 %v1959
      %v2140 = vpop.f32.mrb[0].mxu0
      %v2141 = vadd.f32 0.0, %v2140
      %v2142 = vpop.f32.mrb[0].mxu0
      %2143 = vmatprep.mubr.f32.mxu0 0.0
      %2144 = vmatmul.mubr.f32.gmra.mrb[0].mxu0 %v1961
      %v2145 = vpop.f32.mrb[0].mxu0
      %v2146 = vadd.f32 0.0, %v2145
      %v2147 = vpop.f32.mrb[0].mxu0
      %2148 = vmatprep.mubr.f32.mxu0 0.0
      %2149 = vmatmul.mubr.f32.gmra.mrb[0].mxu0 %v1963
      %v2150 = vpop.f32.mrb[0].mxu0
      %v2151 = vadd.f32 0.0, %v2150
      %v2152 = vpop.f32.mrb[0].mxu0
      %2153 = vmatprep.mubr.f32.mxu0 0.0
      %2154 = vmatmul.mubr.f32.gmra.mrb[0].mxu0 %v1965
      %v2155 = vpop.f32.mrb[0].mxu0
      %v2156 = vadd.f32 0.0, %v2155
      %v2157 = vpop.f32.mrb[0].mxu0
      %2158 = vmatprep.mubr.f32.mxu0 0.0
      %2159 = vmatmul.mubr.f32.gmra.mrb[0].mxu0 %v1967
      %v2160 = vpop.f32.mrb[0].mxu0
      %v2161 = vadd.f32 0.0, %v2160
      %v2162 = vpop.f32.mrb[0].mxu0
      %2163 = vmatprep.mubr.f32.mxu0 0.0
      %2164 = vmatmul.mubr.f32.gmra.mrb[0].mxu0 %v1969
      %v2165 = vpop.f32.mrb[0].mxu0
      %v2166 = vadd.f32 0.0, %v2165
      %v2167 = vpop.f32.mrb[0].mxu0
      %2168 = vmatprep.mubr.f32.mxu0 0.0
      %2169 = vmatmul.mubr.f32.gmra.mrb[0].mxu0 %v1971
      %v2170 = vpop.f32.mrb[0].mxu0
      %v2171 = vadd.f32 0.0, %v2170
      %v2172 = vpop.f32.mrb[0].mxu0
      %2173 = vmatprep.mubr.f32.mxu0 0.0
      %2174 = vmatmul.mubr.f32.gmra.mrb[0].mxu0 %v1973
      %v2175 = vpop.f32.mrb[0].mxu0
      %v2176 = vadd.f32 0.0, %v2175
      %v2177 = vpop.f32.mrb[0].mxu0
      %2178 = vmatprep.mubr.f32.mxu0 0.0
      %2179 = vmatmul.mubr.f32.gmra.mrb[0].mxu0 %v1975
      %v2180 = vpop.f32.mrb[0].mxu0
      %v2181 = vadd.f32 0.0, %v2180
      %v2182 = vpop.f32.mrb[0].mxu0
      %2183 = vmatprep.mubr.f32.mxu0 0.0
      %2184 = vmatmul.mubr.f32.gmra.mrb[0].mxu0 %v1977
      %v2185 = vpop.f32.mrb[0].mxu0
      %v2186 = vadd.f32 0.0, %v2185
      %v2187 = vpop.f32.mrb[0].mxu0
      %2188 = vmatprep.mubr.f32.mxu0 0.0
      %2189 = vmatmul.mubr.f32.gmra.mrb[0].mxu0 %v1979
      %v2190 = vpop.f32.mrb[0].mxu0
      %v2191 = vadd.f32 0.0, %v2190
      %v2192 = vpop.f32.mrb[0].mxu0
      %2193 = vmatprep.mubr.f32.mxu0 0.0
      %2194 = vmatmul.mubr.f32.gmra.mrb[0].mxu0 %v1981
      %v2195 = vpop.f32.mrb[0].mxu0
      %v2196 = vadd.f32 0.0, %v2195
      %v2197 = vpop.f32.mrb[0].mxu0
      %2198 = vmatprep.mubr.f32.mxu0 0.0
      %2199 = vmatmul.mubr.f32.gmra.mrb[0].mxu0 %v1983
      %v2200 = vpop.f32.mrb[0].mxu0
      %v2201 = vadd.f32 0.0, %v2200
      %v2202 = vpop.f32.mrb[0].mxu0
      %2203 = vmatprep.mubr.f32.mxu0 0.0
      %2204 = vmatmul.mubr.f32.gmra.mrb[0].mxu0 %v1985
      %v2205 = vpop.f32.mrb[0].mxu0
      %v2206 = vadd.f32 0.0, %v2205
      %v2207 = vpop.f32.mrb[0].mxu0
      %2208 = vmatprep.mubr.f32.mxu0 0.0
      %2209 = vmatmul.mubr.f32.gmra.mrb[0].mxu0 %v1987
      %v2210 = vpop.f32.mrb[0].mxu0
      %v2211 = vadd.f32 0.0, %v2210
      %v2212 = vpop.f32.mrb[0].mxu0
      %2213 = vdwg.mxu0
      %v2214 = vsel %vm519, %v1833, 0
      %v2216 = vsel %vm519, %v1835, 0
      %2218 = vmatprep.subr.mxu0 0.0
      %2219 = vmatpush1.msra.mxu0 %v1922
      %2220 = vmatprep.subr.mxu0 0.0
      %2221 = vmatpush1.msra.mxu0 0.0
      %2222 = vmatprep.subr.mxu0 0.0
      %2223 = vmatpush1.msra.mxu0 0.0
      %2224 = vmatprep.subr.mxu0 0.0
      %2225 = vmatpush1.msra.mxu0 0.0
      %2226 = vmatprep.subr.mxu0 0.0
      %2227 = vmatpush1.msra.mxu0 0.0
      %2228 = vmatprep.subr.mxu0 0.0
      %2229 = vmatpush1.msra.mxu0 0.0
      %2230 = vmatprep.subr.mxu0 0.0
      %2231 = vmatpush1.msra.mxu0 0.0
      %2232 = vmatprep.subr.mxu0 0.0
      %2233 = vmatpush1.msra.mxu0 0.0
      %2234 = vmatprep.subr.mxu0 0.0
      %2235 = vmatpush1.msra.mxu0 0.0
      %2236 = vmatprep.subr.mxu0 0.0
      %2237 = vmatpush1.msra.mxu0 0.0
      %2238 = vmatprep.subr.mxu0 0.0
      %2239 = vmatpush1.msra.mxu0 0.0
      %2240 = vmatprep.subr.mxu0 0.0
      %2241 = vmatpush1.msra.mxu0 0.0
      %2242 = vmatprep.subr.mxu0 0.0
      %2243 = vmatpush1.msra.mxu0 0.0
      %2244 = vmatprep.subr.mxu0 0.0
      %2245 = vmatpush1.msra.mxu0 0.0
      %2246 = vmatprep.subr.mxu0 0.0
      %2247 = vmatpush1.msra.mxu0 0.0
      %2248 = vmatprep.subr.mxu0 0.0
      %2249 = vmatpush1.msra.mxu0 0.0
      %2250 = vmatprep.subr.mxu0 0.0
      %2251 = vmatpush1.msra.mxu0 0.0
      %2252 = vmatprep.subr.mxu0 0.0
      %2253 = vmatpush1.msra.mxu0 0.0
      %2254 = vmatprep.subr.mxu0 0.0
      %2255 = vmatpush1.msra.mxu0 0.0
      %2256 = vmatprep.subr.mxu0 0.0
      %2257 = vmatpush1.msra.mxu0 0.0
      %2258 = vmatprep.subr.mxu0 0.0
      %2259 = vmatpush1.msra.mxu0 0.0
      %2260 = vmatprep.subr.mxu0 0.0
      %2261 = vmatpush1.msra.mxu0 0.0
      %2262 = vmatprep.subr.mxu0 0.0
      %2263 = vmatpush1.msra.mxu0 0.0
      %2264 = vmatprep.subr.mxu0 0.0
      %2265 = vmatpush1.msra.mxu0 0.0
      %2266 = vmatprep.subr.mxu0 0.0
      %2267 = vmatpush1.msra.mxu0 0.0
      %2268 = vmatprep.subr.mxu0 0.0
      %2269 = vmatpush1.msra.mxu0 0.0
      %2270 = vmatprep.subr.mxu0 0.0
      %2271 = vmatpush1.msra.mxu0 0.0
      %2272 = vmatprep.subr.mxu0 0.0
      %2273 = vmatpush1.msra.mxu0 0.0
      %2274 = vmatprep.subr.mxu0 0.0
      %2275 = vmatpush1.msra.mxu0 0.0
      %2276 = vmatprep.subr.mxu0 0.0
      %2277 = vmatpush1.msra.mxu0 0.0
      %2278 = vmatprep.subr.mxu0 0.0
      %2279 = vmatpush1.msra.mxu0 0.0
      %2280 = vmatprep.subr.mxu0 0.0
      %2281 = vmatpush1.msra.mxu0 0.0
      %2282 = vmatprep.mubr.f32.mxu0 0.0
      %2283 = vmatmul.mubr.f32.gmra.mrb[0].mxu0 %v2214
      %v2284 = vpop.f32.mrb[0].mxu0
      %v2285 = vadd.f32 %v2056, %v2284
      %v2286 = vpop.f32.mrb[0].mxu0
      %2287 = vmatprep.mubr.f32.mxu0 0.0
      %2288 = vmatmul.mubr.f32.gmra.mrb[0].mxu0 %v2216
      %v2289 = vpop.f32.mrb[0].mxu0
      %v2290 = vadd.f32 %v2061, %v2289
      %v2291 = vpop.f32.mrb[0].mxu0
      %2292 = vmatprep.mubr.f32.mxu0 0.0
      %2293 = vmatmul.mubr.f32.gmra.mrb[0].mxu0 %v1925
      %v2294 = vpop.f32.mrb[0].mxu0
      %v2295 = vadd.f32 %v2066, %v2294
      %v2296 = vpop.f32.mrb[0].mxu0
      %2297 = vmatprep.mubr.f32.mxu0 0.0
      %2298 = vmatmul.mubr.f32.gmra.mrb[0].mxu0 %v1927
      %v2299 = vpop.f32.mrb[0].mxu0
      %v2300 = vadd.f32 %v2071, %v2299
      %v2301 = vpop.f32.mrb[0].mxu0
      %2302 = vmatprep.mubr.f32.mxu0 0.0
      %2303 = vmatmul.mubr.f32.gmra.mrb[0].mxu0 %v1929
      %v2304 = vpop.f32.mrb[0].mxu0
      %v2305 = vadd.f32 %v2076, %v2304
      %v2306 = vpop.f32.mrb[0].mxu0
      %2307 = vmatprep.mubr.f32.mxu0 0.0
      %2308 = vmatmul.mubr.f32.gmra.mrb[0].mxu0 %v1931
      %v2309 = vpop.f32.mrb[0].mxu0
      %v2310 = vadd.f32 %v2081, %v2309
      %v2311 = vpop.f32.mrb[0].mxu0
      %2312 = vmatprep.mubr.f32.mxu0 0.0
      %2313 = vmatmul.mubr.f32.gmra.mrb[0].mxu0 %v1933
      %v2314 = vpop.f32.mrb[0].mxu0
      %v2315 = vadd.f32 %v2086, %v2314
      %v2316 = vpop.f32.mrb[0].mxu0
      %2317 = vmatprep.mubr.f32.mxu0 0.0
      %2318 = vmatmul.mubr.f32.gmra.mrb[0].mxu0 %v1935
      %v2319 = vpop.f32.mrb[0].mxu0
      %v2320 = vadd.f32 %v2091, %v2319
      %v2321 = vpop.f32.mrb[0].mxu0
      %2322 = vmatprep.mubr.f32.mxu0 0.0
      %2323 = vmatmul.mubr.f32.gmra.mrb[0].mxu0 %v1937
      %v2324 = vpop.f32.mrb[0].mxu0
      %v2325 = vadd.f32 %v2096, %v2324
      %v2326 = vpop.f32.mrb[0].mxu0
      %2327 = vmatprep.mubr.f32.mxu0 0.0
      %2328 = vmatmul.mubr.f32.gmra.mrb[0].mxu0 %v1939
      %v2329 = vpop.f32.mrb[0].mxu0
      %v2330 = vadd.f32 %v2101, %v2329
      %v2331 = vpop.f32.mrb[0].mxu0
      %2332 = vmatprep.mubr.f32.mxu0 0.0
      %2333 = vmatmul.mubr.f32.gmra.mrb[0].mxu0 %v1941
      %v2334 = vpop.f32.mrb[0].mxu0
      %v2335 = vadd.f32 %v2106, %v2334
      %v2336 = vpop.f32.mrb[0].mxu0
      %2337 = vmatprep.mubr.f32.mxu0 0.0
      %2338 = vmatmul.mubr.f32.gmra.mrb[0].mxu0 %v1943
      %v2339 = vpop.f32.mrb[0].mxu0
      %v2340 = vadd.f32 %v2111, %v2339
      %v2341 = vpop.f32.mrb[0].mxu0
      %2342 = vmatprep.mubr.f32.mxu0 0.0
      %2343 = vmatmul.mubr.f32.gmra.mrb[0].mxu0 %v1945
      %v2344 = vpop.f32.mrb[0].mxu0
      %v2345 = vadd.f32 %v2116, %v2344
      %v2346 = vpop.f32.mrb[0].mxu0
      %2347 = vmatprep.mubr.f32.mxu0 0.0
      %2348 = vmatmul.mubr.f32.gmra.mrb[0].mxu0 %v1947
      %v2349 = vpop.f32.mrb[0].mxu0
      %v2350 = vadd.f32 %v2121, %v2349
      %v2351 = vpop.f32.mrb[0].mxu0
      %2352 = vmatprep.mubr.f32.mxu0 0.0
      %2353 = vmatmul.mubr.f32.gmra.mrb[0].mxu0 %v1949
      %v2354 = vpop.f32.mrb[0].mxu0
      %v2355 = vadd.f32 %v2126, %v2354
      %v2356 = vpop.f32.mrb[0].mxu0
      %2357 = vmatprep.mubr.f32.mxu0 0.0
      %2358 = vmatmul.mubr.f32.gmra.mrb[0].mxu0 %v1951
      %v2359 = vpop.f32.mrb[0].mxu0
      %v2360 = vadd.f32 %v2131, %v2359
      %v2361 = vpop.f32.mrb[0].mxu0
      %2362 = vmatprep.mubr.f32.mxu0 0.0
      %2363 = vmatmul.mubr.f32.gmra.mrb[0].mxu0 %v1953
      %v2364 = vpop.f32.mrb[0].mxu0
      %v2365 = vadd.f32 %v2136, %v2364
      %v2366 = vpop.f32.mrb[0].mxu0
      %2367 = vmatprep.mubr.f32.mxu0 0.0
      %2368 = vmatmul.mubr.f32.gmra.mrb[0].mxu0 %v1955
      %v2369 = vpop.f32.mrb[0].mxu0
      %v2370 = vadd.f32 %v2141, %v2369
      %v2371 = vpop.f32.mrb[0].mxu0
      %2372 = vmatprep.mubr.f32.mxu0 0.0
      %2373 = vmatmul.mubr.f32.gmra.mrb[0].mxu0 %v1957
      %v2374 = vpop.f32.mrb[0].mxu0
      %v2375 = vadd.f32 %v2146, %v2374
      %v2376 = vpop.f32.mrb[0].mxu0
      %2377 = vmatprep.mubr.f32.mxu0 0.0
      %2378 = vmatmul.mubr.f32.gmra.mrb[0].mxu0 %v1959
      %v2379 = vpop.f32.mrb[0].mxu0
      %v2380 = vadd.f32 %v2151, %v2379
      %v2381 = vpop.f32.mrb[0].mxu0
      %2382 = vmatprep.mubr.f32.mxu0 0.0
      %2383 = vmatmul.mubr.f32.gmra.mrb[0].mxu0 %v1961
      %v2384 = vpop.f32.mrb[0].mxu0
      %v2385 = vadd.f32 %v2156, %v2384
      %v2386 = vpop.f32.mrb[0].mxu0
      %2387 = vmatprep.mubr.f32.mxu0 0.0
      %2388 = vmatmul.mubr.f32.gmra.mrb[0].mxu0 %v1963
      %v2389 = vpop.f32.mrb[0].mxu0
      %v2390 = vadd.f32 %v2161, %v2389
      %v2391 = vpop.f32.mrb[0].mxu0
      %2392 = vmatprep.mubr.f32.mxu0 0.0
      %2393 = vmatmul.mubr.f32.gmra.mrb[0].mxu0 %v1965
      %v2394 = vpop.f32.mrb[0].mxu0
      %v2395 = vadd.f32 %v2166, %v2394
      %v2396 = vpop.f32.mrb[0].mxu0
      %2397 = vmatprep.mubr.f32.mxu0 0.0
      %2398 = vmatmul.mubr.f32.gmra.mrb[0].mxu0 %v1967
      %v2399 = vpop.f32.mrb[0].mxu0
      %v2400 = vadd.f32 %v2171, %v2399
      %v2401 = vpop.f32.mrb[0].mxu0
      %2402 = vmatprep.mubr.f32.mxu0 0.0
      %2403 = vmatmul.mubr.f32.gmra.mrb[0].mxu0 %v1969
      %v2404 = vpop.f32.mrb[0].mxu0
      %v2405 = vadd.f32 %v2176, %v2404
      %v2406 = vpop.f32.mrb[0].mxu0
      %2407 = vmatprep.mubr.f32.mxu0 0.0
      %2408 = vmatmul.mubr.f32.gmra.mrb[0].mxu0 %v1971
      %v2409 = vpop.f32.mrb[0].mxu0
      %v2410 = vadd.f32 %v2181, %v2409
      %v2411 = vpop.f32.mrb[0].mxu0
      %2412 = vmatprep.mubr.f32.mxu0 0.0
      %2413 = vmatmul.mubr.f32.gmra.mrb[0].mxu0 %v1973
      %v2414 = vpop.f32.mrb[0].mxu0
      %v2415 = vadd.f32 %v2186, %v2414
      %v2416 = vpop.f32.mrb[0].mxu0
      %2417 = vmatprep.mubr.f32.mxu0 0.0
      %2418 = vmatmul.mubr.f32.gmra.mrb[0].mxu0 %v1975
      %v2419 = vpop.f32.mrb[0].mxu0
      %v2420 = vadd.f32 %v2191, %v2419
      %v2421 = vpop.f32.mrb[0].mxu0
      %2422 = vmatprep.mubr.f32.mxu0 0.0
      %2423 = vmatmul.mubr.f32.gmra.mrb[0].mxu0 %v1977
      %v2424 = vpop.f32.mrb[0].mxu0
      %v2425 = vadd.f32 %v2196, %v2424
      %v2426 = vpop.f32.mrb[0].mxu0
      %2427 = vmatprep.mubr.f32.mxu0 0.0
      %2428 = vmatmul.mubr.f32.gmra.mrb[0].mxu0 %v1979
      %v2429 = vpop.f32.mrb[0].mxu0
      %v2430 = vadd.f32 %v2201, %v2429
      %v2431 = vpop.f32.mrb[0].mxu0
      %2432 = vmatprep.mubr.f32.mxu0 0.0
      %2433 = vmatmul.mubr.f32.gmra.mrb[0].mxu0 %v1981
      %v2434 = vpop.f32.mrb[0].mxu0
      %v2435 = vadd.f32 %v2206, %v2434
      %v2436 = vpop.f32.mrb[0].mxu0
      %2437 = vmatprep.mubr.f32.mxu0 0.0
      %2438 = vmatmul.mubr.f32.gmra.mrb[0].mxu0 %v1983
      %v2439 = vpop.f32.mrb[0].mxu0
      %v2440 = vadd.f32 %v2211, %v2439
      %v2441 = vpop.f32.mrb[0].mxu0
      %2442 = vdwg.mxu0
      %v2443 = vadd.f32 %v2285, %v1076
      %v2444 = vadd.f32 %v2290, %v1076
      %v2445 = vadd.f32 %v2295, %v1076
      %v2446 = vadd.f32 %v2300, %v1076
      %v2447 = vadd.f32 %v2305, %v1076
      %v2448 = vadd.f32 %v2310, %v1076
      %v2449 = vadd.f32 %v2315, %v1076
      %v2450 = vadd.f32 %v2320, %v1076
      %v2451 = vadd.f32 %v2325, %v1076
      %v2452 = vadd.f32 %v2330, %v1076
      %v2453 = vadd.f32 %v2335, %v1076
      %v2454 = vadd.f32 %v2340, %v1076
      %v2455 = vadd.f32 %v2345, %v1076
      %v2456 = vadd.f32 %v2350, %v1076
      %v2457 = vadd.f32 %v2355, %v1076
      %v2458 = vadd.f32 %v2360, %v1076
      %v2459 = vadd.f32 %v2365, %v1076
      %v2460 = vadd.f32 %v2370, %v1076
      %v2461 = vadd.f32 %v2375, %v1076
      %v2462 = vadd.f32 %v2380, %v1076
      %v2463 = vadd.f32 %v2385, %v1076
      %v2464 = vadd.f32 %v2390, %v1076
      %v2465 = vadd.f32 %v2395, %v1076
      %v2466 = vadd.f32 %v2400, %v1076
      %v2467 = vadd.f32 %v2405, %v1076
      %v2468 = vadd.f32 %v2410, %v1076
      %v2469 = vadd.f32 %v2415, %v1076
      %v2470 = vadd.f32 %v2420, %v1076
      %v2471 = vadd.f32 %v2425, %v1076
      %v2472 = vadd.f32 %v2430, %v1076
      %v2473 = vadd.f32 %v2435, %v1076
      %v2474 = vadd.f32 %v2440, %v1076
      %2475 = vxpose.xlu0.b32.start [1/16] %v2443, 128
      %2476 = vxpose.xlu0.b32.cont [2/16] %v2444, 128
      %2477 = vxpose.xlu0.b32.cont [3/16] %v2445, 128
      %2478 = vxpose.xlu0.b32.cont [4/16] %v2446, 128
      %2479 = vxpose.xlu0.b32.cont [5/16] %v2447, 128
      %2480 = vxpose.xlu0.b32.cont [6/16] %v2448, 128
      %2481 = vxpose.xlu0.b32.cont [7/16] %v2449, 128
      %2482 = vxpose.xlu0.b32.cont [8/16] %v2450, 128
      %2483 = vxpose.xlu0.b32.cont [9/16] %v2451, 128
      %2484 = vxpose.xlu0.b32.cont [10/16] %v2452, 128
      %2485 = vxpose.xlu0.b32.cont [11/16] %v2453, 128
      %2486 = vxpose.xlu0.b32.cont [12/16] %v2454, 128
      %2487 = vxpose.xlu0.b32.cont [13/16] %v2455, 128
      %2488 = vxpose.xlu0.b32.cont [14/16] %v2456, 128
      %2489 = vxpose.xlu0.b32.cont [15/16] %v2457, 128
      %2490 = vxpose.xlu0.b32.end [16/16] %v2458, 128
      %v2491 = vpop.trf.xlu0
      %v2492 = vpop.trf.xlu0
      %v2493 = vpop.trf.xlu0
      %v2494 = vpop.trf.xlu0
      %v2495 = vpop.trf.xlu0
      %v2496 = vpop.trf.xlu0
      %v2497 = vpop.trf.xlu0
      %v2498 = vpop.trf.xlu0
      %v2499 = vpop.trf.xlu0
      %v2500 = vpop.trf.xlu0
      %v2501 = vpop.trf.xlu0
      %v2502 = vpop.trf.xlu0
      %v2503 = vpop.trf.xlu0
      %v2504 = vpop.trf.xlu0
      %v2505 = vpop.trf.xlu0
      %v2506 = vpop.trf.xlu0
      %2507 = vxpose.xlu0.b32.start [1/16] %v2459, 128
      %2508 = vxpose.xlu0.b32.cont [2/16] %v2460, 128
      %2509 = vxpose.xlu0.b32.cont [3/16] %v2461, 128
      %2510 = vxpose.xlu0.b32.cont [4/16] %v2462, 128
      %2511 = vxpose.xlu0.b32.cont [5/16] %v2463, 128
      %2512 = vxpose.xlu0.b32.cont [6/16] %v2464, 128
      %2513 = vxpose.xlu0.b32.cont [7/16] %v2465, 128
      %2514 = vxpose.xlu0.b32.cont [8/16] %v2466, 128
      %2515 = vxpose.xlu0.b32.cont [9/16] %v2467, 128
      %2516 = vxpose.xlu0.b32.cont [10/16] %v2468, 128
      %2517 = vxpose.xlu0.b32.cont [11/16] %v2469, 128
      %2518 = vxpose.xlu0.b32.cont [12/16] %v2470, 128
      %2519 = vxpose.xlu0.b32.cont [13/16] %v2471, 128
      %2520 = vxpose.xlu0.b32.cont [14/16] %v2472, 128
      %2521 = vxpose.xlu0.b32.cont [15/16] %v2473, 128
      %2522 = vxpose.xlu0.b32.end [16/16] %v2474, 128
      %v2523 = vpop.trf.xlu0
      %v2524 = vpop.trf.xlu0
      %v2525 = vpop.trf.xlu0
      %v2526 = vpop.trf.xlu0
      %v2527 = vpop.trf.xlu0
      %v2528 = vpop.trf.xlu0
      %v2529 = vpop.trf.xlu0
      %v2530 = vpop.trf.xlu0
      %v2531 = vpop.trf.xlu0
      %v2532 = vpop.trf.xlu0
      %v2533 = vpop.trf.xlu0
      %v2534 = vpop.trf.xlu0
      %v2535 = vpop.trf.xlu0
      %v2536 = vpop.trf.xlu0
      %v2537 = vpop.trf.xlu0
      %v2538 = vpop.trf.xlu0
      %v2541 = vcombine.low %v2491, %v2523
      %s2543 = scalar_lea.vmem %s170, 8
      %2544 = vst [vmem:[%s2543] sm:$0xff] %v2541
      %s2545 = scalar_lea.vmem %s1, 48
      %v2546 = vld [vmem:[%s2545] sm:$0xff]
      %s2547 = scalar_lea.vmem %s1, 56
      %v2548 = vld [vmem:[%s2547] sm:$0xff]
      %v2549 = vsel %vm519, %v1918, 0
      %v2551 = vsel %vm519, %v1920, 0
      %2553 = vmatprep.subr.mxu0 0.0
      %2554 = vmatpush1.msra.mxu0 %v2548
      %2555 = vmatprep.subr.mxu0 0.0
      %2556 = vmatpush1.msra.mxu0 0.0
      %2557 = vmatprep.subr.mxu0 0.0
      %2558 = vmatpush1.msra.mxu0 0.0
      %2559 = vmatprep.subr.mxu0 0.0
      %2560 = vmatpush1.msra.mxu0 0.0
      %2561 = vmatprep.subr.mxu0 0.0
      %2562 = vmatpush1.msra.mxu0 0.0
      %2563 = vmatprep.subr.mxu0 0.0
      %2564 = vmatpush1.msra.mxu0 0.0
      %2565 = vmatprep.subr.mxu0 0.0
      %2566 = vmatpush1.msra.mxu0 0.0
      %2567 = vmatprep.subr.mxu0 0.0
      %2568 = vmatpush1.msra.mxu0 0.0
      %2569 = vmatprep.subr.mxu0 0.0
      %2570 = vmatpush1.msra.mxu0 0.0
      %2571 = vmatprep.subr.mxu0 0.0
      %2572 = vmatpush1.msra.mxu0 0.0
      %2573 = vmatprep.subr.mxu0 0.0
      %2574 = vmatpush1.msra.mxu0 0.0
      %2575 = vmatprep.subr.mxu0 0.0
      %2576 = vmatpush1.msra.mxu0 0.0
      %2577 = vmatprep.subr.mxu0 0.0
      %2578 = vmatpush1.msra.mxu0 0.0
      %2579 = vmatprep.subr.mxu0 0.0
      %2580 = vmatpush1.msra.mxu0 0.0
      %2581 = vmatprep.subr.mxu0 0.0
      %2582 = vmatpush1.msra.mxu0 0.0
      %2583 = vmatprep.subr.mxu0 0.0
      %2584 = vmatpush1.msra.mxu0 0.0
      %2585 = vmatprep.subr.mxu0 0.0
      %2586 = vmatpush1.msra.mxu0 0.0
      %2587 = vmatprep.subr.mxu0 0.0
      %2588 = vmatpush1.msra.mxu0 0.0
      %2589 = vmatprep.subr.mxu0 0.0
      %2590 = vmatpush1.msra.mxu0 0.0
      %2591 = vmatprep.subr.mxu0 0.0
      %2592 = vmatpush1.msra.mxu0 0.0
      %2593 = vmatprep.subr.mxu0 0.0
      %2594 = vmatpush1.msra.mxu0 0.0
      %2595 = vmatprep.subr.mxu0 0.0
      %2596 = vmatpush1.msra.mxu0 0.0
      %2597 = vmatprep.subr.mxu0 0.0
      %2598 = vmatpush1.msra.mxu0 0.0
      %2599 = vmatprep.subr.mxu0 0.0
      %2600 = vmatpush1.msra.mxu0 0.0
      %2601 = vmatprep.subr.mxu0 0.0
      %2602 = vmatpush1.msra.mxu0 0.0
      %2603 = vmatprep.subr.mxu0 0.0
      %2604 = vmatpush1.msra.mxu0 0.0
      %2605 = vmatprep.subr.mxu0 0.0
      %2606 = vmatpush1.msra.mxu0 0.0
      %2607 = vmatprep.subr.mxu0 0.0
      %2608 = vmatpush1.msra.mxu0 0.0
      %2609 = vmatprep.subr.mxu0 0.0
      %2610 = vmatpush1.msra.mxu0 0.0
      %2611 = vmatprep.subr.mxu0 0.0
      %2612 = vmatpush1.msra.mxu0 0.0
      %2613 = vmatprep.subr.mxu0 0.0
      %2614 = vmatpush1.msra.mxu0 0.0
      %2615 = vmatprep.subr.mxu0 0.0
      %2616 = vmatpush1.msra.mxu0 0.0
      %2617 = vmatprep.mubr.f32.mxu0 0.0
      %2618 = vmatmul.mubr.f32.gmra.mrb[0].mxu0 %v1929
      %v2619 = vpop.f32.mrb[0].mxu0
      %v2620 = vadd.f32 0.0, %v2619
      %v2621 = vpop.f32.mrb[0].mxu0
      %2622 = vmatprep.mubr.f32.mxu0 0.0
      %2623 = vmatmul.mubr.f32.gmra.mrb[0].mxu0 %v1931
      %v2624 = vpop.f32.mrb[0].mxu0
      %v2625 = vadd.f32 0.0, %v2624
      %v2626 = vpop.f32.mrb[0].mxu0
      %2627 = vmatprep.mubr.f32.mxu0 0.0
      %2628 = vmatmul.mubr.f32.gmra.mrb[0].mxu0 %v1933
      %v2629 = vpop.f32.mrb[0].mxu0
      %v2630 = vadd.f32 0.0, %v2629
      %v2631 = vpop.f32.mrb[0].mxu0
      %2632 = vmatprep.mubr.f32.mxu0 0.0
      %2633 = vmatmul.mubr.f32.gmra.mrb[0].mxu0 %v1935
      %v2634 = vpop.f32.mrb[0].mxu0
      %v2635 = vadd.f32 0.0, %v2634
      %v2636 = vpop.f32.mrb[0].mxu0
      %2637 = vmatprep.mubr.f32.mxu0 0.0
      %2638 = vmatmul.mubr.f32.gmra.mrb[0].mxu0 %v1937
      %v2639 = vpop.f32.mrb[0].mxu0
      %v2640 = vadd.f32 0.0, %v2639
      %v2641 = vpop.f32.mrb[0].mxu0
      %2642 = vmatprep.mubr.f32.mxu0 0.0
      %2643 = vmatmul.mubr.f32.gmra.mrb[0].mxu0 %v1939
      %v2644 = vpop.f32.mrb[0].mxu0
      %v2645 = vadd.f32 0.0, %v2644
      %v2646 = vpop.f32.mrb[0].mxu0
      %2647 = vmatprep.mubr.f32.mxu0 0.0
      %2648 = vmatmul.mubr.f32.gmra.mrb[0].mxu0 %v1941
      %v2649 = vpop.f32.mrb[0].mxu0
      %v2650 = vadd.f32 0.0, %v2649
      %v2651 = vpop.f32.mrb[0].mxu0
      %2652 = vmatprep.mubr.f32.mxu0 0.0
      %2653 = vmatmul.mubr.f32.gmra.mrb[0].mxu0 %v1943
      %v2654 = vpop.f32.mrb[0].mxu0
      %v2655 = vadd.f32 0.0, %v2654
      %v2656 = vpop.f32.mrb[0].mxu0
      %2657 = vmatprep.mubr.f32.mxu0 0.0
      %2658 = vmatmul.mubr.f32.gmra.mrb[0].mxu0 %v1945
      %v2659 = vpop.f32.mrb[0].mxu0
      %v2660 = vadd.f32 0.0, %v2659
      %v2661 = vpop.f32.mrb[0].mxu0
      %2662 = vmatprep.mubr.f32.mxu0 0.0
      %2663 = vmatmul.mubr.f32.gmra.mrb[0].mxu0 %v1947
      %v2664 = vpop.f32.mrb[0].mxu0
      %v2665 = vadd.f32 0.0, %v2664
      %v2666 = vpop.f32.mrb[0].mxu0
      %2667 = vmatprep.mubr.f32.mxu0 0.0
      %2668 = vmatmul.mubr.f32.gmra.mrb[0].mxu0 %v1949
      %v2669 = vpop.f32.mrb[0].mxu0
      %v2670 = vadd.f32 0.0, %v2669
      %v2671 = vpop.f32.mrb[0].mxu0
      %2672 = vmatprep.mubr.f32.mxu0 0.0
      %2673 = vmatmul.mubr.f32.gmra.mrb[0].mxu0 %v1951
      %v2674 = vpop.f32.mrb[0].mxu0
      %v2675 = vadd.f32 0.0, %v2674
      %v2676 = vpop.f32.mrb[0].mxu0
      %2677 = vmatprep.mubr.f32.mxu0 0.0
      %2678 = vmatmul.mubr.f32.gmra.mrb[0].mxu0 %v1953
      %v2679 = vpop.f32.mrb[0].mxu0
      %v2680 = vadd.f32 0.0, %v2679
      %v2681 = vpop.f32.mrb[0].mxu0
      %2682 = vmatprep.mubr.f32.mxu0 0.0
      %2683 = vmatmul.mubr.f32.gmra.mrb[0].mxu0 %v1955
      %v2684 = vpop.f32.mrb[0].mxu0
      %v2685 = vadd.f32 0.0, %v2684
      %v2686 = vpop.f32.mrb[0].mxu0
      %2687 = vmatprep.mubr.f32.mxu0 0.0
      %2688 = vmatmul.mubr.f32.gmra.mrb[0].mxu0 %v1957
      %v2689 = vpop.f32.mrb[0].mxu0
      %v2690 = vadd.f32 0.0, %v2689
      %v2691 = vpop.f32.mrb[0].mxu0
      %2692 = vmatprep.mubr.f32.mxu0 0.0
      %2693 = vmatmul.mubr.f32.gmra.mrb[0].mxu0 %v1959
      %v2694 = vpop.f32.mrb[0].mxu0
      %v2695 = vadd.f32 0.0, %v2694
      %v2696 = vpop.f32.mrb[0].mxu0
      %2697 = vmatprep.mubr.f32.mxu0 0.0
      %2698 = vmatmul.mubr.f32.gmra.mrb[0].mxu0 %v1961
      %v2699 = vpop.f32.mrb[0].mxu0
      %v2700 = vadd.f32 0.0, %v2699
      %v2701 = vpop.f32.mrb[0].mxu0
      %2702 = vmatprep.mubr.f32.mxu0 0.0
      %2703 = vmatmul.mubr.f32.gmra.mrb[0].mxu0 %v1963
      %v2704 = vpop.f32.mrb[0].mxu0
      %v2705 = vadd.f32 0.0, %v2704
      %v2706 = vpop.f32.mrb[0].mxu0
      %2707 = vmatprep.mubr.f32.mxu0 0.0
      %2708 = vmatmul.mubr.f32.gmra.mrb[0].mxu0 %v1965
      %v2709 = vpop.f32.mrb[0].mxu0
      %v2710 = vadd.f32 0.0, %v2709
      %v2711 = vpop.f32.mrb[0].mxu0
      %2712 = vmatprep.mubr.f32.mxu0 0.0
      %2713 = vmatmul.mubr.f32.gmra.mrb[0].mxu0 %v1967
      %v2714 = vpop.f32.mrb[0].mxu0
      %v2715 = vadd.f32 0.0, %v2714
      %v2716 = vpop.f32.mrb[0].mxu0
      %2717 = vmatprep.mubr.f32.mxu0 0.0
      %2718 = vmatmul.mubr.f32.gmra.mrb[0].mxu0 %v1969
      %v2719 = vpop.f32.mrb[0].mxu0
      %v2720 = vadd.f32 0.0, %v2719
      %v2721 = vpop.f32.mrb[0].mxu0
      %2722 = vmatprep.mubr.f32.mxu0 0.0
      %2723 = vmatmul.mubr.f32.gmra.mrb[0].mxu0 %v1971
      %v2724 = vpop.f32.mrb[0].mxu0
      %v2725 = vadd.f32 0.0, %v2724
      %v2726 = vpop.f32.mrb[0].mxu0
      %2727 = vmatprep.mubr.f32.mxu0 0.0
      %2728 = vmatmul.mubr.f32.gmra.mrb[0].mxu0 %v1973
      %v2729 = vpop.f32.mrb[0].mxu0
      %v2730 = vadd.f32 0.0, %v2729
      %v2731 = vpop.f32.mrb[0].mxu0
      %2732 = vmatprep.mubr.f32.mxu0 0.0
      %2733 = vmatmul.mubr.f32.gmra.mrb[0].mxu0 %v1975
      %v2734 = vpop.f32.mrb[0].mxu0
      %v2735 = vadd.f32 0.0, %v2734
      %v2736 = vpop.f32.mrb[0].mxu0
      %2737 = vmatprep.mubr.f32.mxu0 0.0
      %2738 = vmatmul.mubr.f32.gmra.mrb[0].mxu0 %v1977
      %v2739 = vpop.f32.mrb[0].mxu0
      %v2740 = vadd.f32 0.0, %v2739
      %v2741 = vpop.f32.mrb[0].mxu0
      %2742 = vmatprep.mubr.f32.mxu0 0.0
      %2743 = vmatmul.mubr.f32.gmra.mrb[0].mxu0 %v1979
      %v2744 = vpop.f32.mrb[0].mxu0
      %v2745 = vadd.f32 0.0, %v2744
      %v2746 = vpop.f32.mrb[0].mxu0
      %2747 = vmatprep.mubr.f32.mxu0 0.0
      %2748 = vmatmul.mubr.f32.gmra.mrb[0].mxu0 %v1981
      %v2749 = vpop.f32.mrb[0].mxu0
      %v2750 = vadd.f32 0.0, %v2749
      %v2751 = vpop.f32.mrb[0].mxu0
      %2752 = vmatprep.mubr.f32.mxu0 0.0
      %2753 = vmatmul.mubr.f32.gmra.mrb[0].mxu0 %v1983
      %v2754 = vpop.f32.mrb[0].mxu0
      %v2755 = vadd.f32 0.0, %v2754
      %v2756 = vpop.f32.mrb[0].mxu0
      %2757 = vmatprep.mubr.f32.mxu0 0.0
      %2758 = vmatmul.mubr.f32.gmra.mrb[0].mxu0 %v1985
      %v2759 = vpop.f32.mrb[0].mxu0
      %v2760 = vadd.f32 0.0, %v2759
      %v2761 = vpop.f32.mrb[0].mxu0
      %2762 = vmatprep.mubr.f32.mxu0 0.0
      %2763 = vmatmul.mubr.f32.gmra.mrb[0].mxu0 %v1987
      %v2764 = vpop.f32.mrb[0].mxu0
      %v2765 = vadd.f32 0.0, %v2764
      %v2766 = vpop.f32.mrb[0].mxu0
      %2767 = vmatprep.mubr.f32.mxu0 0.0
      %2768 = vmatmul.mubr.f32.gmra.mrb[0].mxu0 %v2549
      %v2769 = vpop.f32.mrb[0].mxu0
      %v2770 = vadd.f32 0.0, %v2769
      %v2771 = vpop.f32.mrb[0].mxu0
      %2772 = vmatprep.mubr.f32.mxu0 0.0
      %2773 = vmatmul.mubr.f32.gmra.mrb[0].mxu0 %v2551
      %v2774 = vpop.f32.mrb[0].mxu0
      %v2775 = vadd.f32 0.0, %v2774
      %v2776 = vpop.f32.mrb[0].mxu0
      %2777 = vdwg.mxu0
      %2778 = vmatprep.subr.mxu0 0.0
      %2779 = vmatpush1.msra.mxu0 %v2546
      %2780 = vmatprep.subr.mxu0 0.0
      %2781 = vmatpush1.msra.mxu0 0.0
      %2782 = vmatprep.subr.mxu0 0.0
      %2783 = vmatpush1.msra.mxu0 0.0
      %2784 = vmatprep.subr.mxu0 0.0
      %2785 = vmatpush1.msra.mxu0 0.0
      %2786 = vmatprep.subr.mxu0 0.0
      %2787 = vmatpush1.msra.mxu0 0.0
      %2788 = vmatprep.subr.mxu0 0.0
      %2789 = vmatpush1.msra.mxu0 0.0
      %2790 = vmatprep.subr.mxu0 0.0
      %2791 = vmatpush1.msra.mxu0 0.0
      %2792 = vmatprep.subr.mxu0 0.0
      %2793 = vmatpush1.msra.mxu0 0.0
      %2794 = vmatprep.subr.mxu0 0.0
      %2795 = vmatpush1.msra.mxu0 0.0
      %2796 = vmatprep.subr.mxu0 0.0
      %2797 = vmatpush1.msra.mxu0 0.0
      %2798 = vmatprep.subr.mxu0 0.0
      %2799 = vmatpush1.msra.mxu0 0.0
      %2800 = vmatprep.subr.mxu0 0.0
      %2801 = vmatpush1.msra.mxu0 0.0
      %2802 = vmatprep.subr.mxu0 0.0
      %2803 = vmatpush1.msra.mxu0 0.0
      %2804 = vmatprep.subr.mxu0 0.0
      %2805 = vmatpush1.msra.mxu0 0.0
      %2806 = vmatprep.subr.mxu0 0.0
      %2807 = vmatpush1.msra.mxu0 0.0
      %2808 = vmatprep.subr.mxu0 0.0
      %2809 = vmatpush1.msra.mxu0 0.0
      %2810 = vmatprep.subr.mxu0 0.0
      %2811 = vmatpush1.msra.mxu0 0.0
      %2812 = vmatprep.subr.mxu0 0.0
      %2813 = vmatpush1.msra.mxu0 0.0
      %2814 = vmatprep.subr.mxu0 0.0
      %2815 = vmatpush1.msra.mxu0 0.0
      %2816 = vmatprep.subr.mxu0 0.0
      %2817 = vmatpush1.msra.mxu0 0.0
      %2818 = vmatprep.subr.mxu0 0.0
      %2819 = vmatpush1.msra.mxu0 0.0
      %2820 = vmatprep.subr.mxu0 0.0
      %2821 = vmatpush1.msra.mxu0 0.0
      %2822 = vmatprep.subr.mxu0 0.0
      %2823 = vmatpush1.msra.mxu0 0.0
      %2824 = vmatprep.subr.mxu0 0.0
      %2825 = vmatpush1.msra.mxu0 0.0
      %2826 = vmatprep.subr.mxu0 0.0
      %2827 = vmatpush1.msra.mxu0 0.0
      %2828 = vmatprep.subr.mxu0 0.0
      %2829 = vmatpush1.msra.mxu0 0.0
      %2830 = vmatprep.subr.mxu0 0.0
      %2831 = vmatpush1.msra.mxu0 0.0
      %2832 = vmatprep.subr.mxu0 0.0
      %2833 = vmatpush1.msra.mxu0 0.0
      %2834 = vmatprep.subr.mxu0 0.0
      %2835 = vmatpush1.msra.mxu0 0.0
      %2836 = vmatprep.subr.mxu0 0.0
      %2837 = vmatpush1.msra.mxu0 0.0
      %2838 = vmatprep.subr.mxu0 0.0
      %2839 = vmatpush1.msra.mxu0 0.0
      %2840 = vmatprep.subr.mxu0 0.0
      %2841 = vmatpush1.msra.mxu0 0.0
      %2842 = vmatprep.mubr.f32.mxu0 0.0
      %2843 = vmatmul.mubr.f32.gmra.mrb[0].mxu0 %v1925
      %v2844 = vpop.f32.mrb[0].mxu0
      %v2845 = vadd.f32 %v2620, %v2844
      %v2846 = vpop.f32.mrb[0].mxu0
      %2847 = vmatprep.mubr.f32.mxu0 0.0
      %2848 = vmatmul.mubr.f32.gmra.mrb[0].mxu0 %v1927
      %v2849 = vpop.f32.mrb[0].mxu0
      %v2850 = vadd.f32 %v2625, %v2849
      %v2851 = vpop.f32.mrb[0].mxu0
      %2852 = vmatprep.mubr.f32.mxu0 0.0
      %2853 = vmatmul.mubr.f32.gmra.mrb[0].mxu0 %v1929
      %v2854 = vpop.f32.mrb[0].mxu0
      %v2855 = vadd.f32 %v2630, %v2854
      %v2856 = vpop.f32.mrb[0].mxu0
      %2857 = vmatprep.mubr.f32.mxu0 0.0
      %2858 = vmatmul.mubr.f32.gmra.mrb[0].mxu0 %v1931
      %v2859 = vpop.f32.mrb[0].mxu0
      %v2860 = vadd.f32 %v2635, %v2859
      %v2861 = vpop.f32.mrb[0].mxu0
      %2862 = vmatprep.mubr.f32.mxu0 0.0
      %2863 = vmatmul.mubr.f32.gmra.mrb[0].mxu0 %v1933
      %v2864 = vpop.f32.mrb[0].mxu0
      %v2865 = vadd.f32 %v2640, %v2864
      %v2866 = vpop.f32.mrb[0].mxu0
      %2867 = vmatprep.mubr.f32.mxu0 0.0
      %2868 = vmatmul.mubr.f32.gmra.mrb[0].mxu0 %v1935
      %v2869 = vpop.f32.mrb[0].mxu0
      %v2870 = vadd.f32 %v2645, %v2869
      %v2871 = vpop.f32.mrb[0].mxu0
      %2872 = vmatprep.mubr.f32.mxu0 0.0
      %2873 = vmatmul.mubr.f32.gmra.mrb[0].mxu0 %v1937
      %v2874 = vpop.f32.mrb[0].mxu0
      %v2875 = vadd.f32 %v2650, %v2874
      %v2876 = vpop.f32.mrb[0].mxu0
      %2877 = vmatprep.mubr.f32.mxu0 0.0
      %2878 = vmatmul.mubr.f32.gmra.mrb[0].mxu0 %v1939
      %v2879 = vpop.f32.mrb[0].mxu0
      %v2880 = vadd.f32 %v2655, %v2879
      %v2881 = vpop.f32.mrb[0].mxu0
      %2882 = vmatprep.mubr.f32.mxu0 0.0
      %2883 = vmatmul.mubr.f32.gmra.mrb[0].mxu0 %v1941
      %v2884 = vpop.f32.mrb[0].mxu0
      %v2885 = vadd.f32 %v2660, %v2884
      %v2886 = vpop.f32.mrb[0].mxu0
      %2887 = vmatprep.mubr.f32.mxu0 0.0
      %2888 = vmatmul.mubr.f32.gmra.mrb[0].mxu0 %v1943
      %v2889 = vpop.f32.mrb[0].mxu0
      %v2890 = vadd.f32 %v2665, %v2889
      %v2891 = vpop.f32.mrb[0].mxu0
      %2892 = vmatprep.mubr.f32.mxu0 0.0
      %2893 = vmatmul.mubr.f32.gmra.mrb[0].mxu0 %v1945
      %v2894 = vpop.f32.mrb[0].mxu0
      %v2895 = vadd.f32 %v2670, %v2894
      %v2896 = vpop.f32.mrb[0].mxu0
      %2897 = vmatprep.mubr.f32.mxu0 0.0
      %2898 = vmatmul.mubr.f32.gmra.mrb[0].mxu0 %v1947
      %v2899 = vpop.f32.mrb[0].mxu0
      %v2900 = vadd.f32 %v2675, %v2899
      %v2901 = vpop.f32.mrb[0].mxu0
      %2902 = vmatprep.mubr.f32.mxu0 0.0
      %2903 = vmatmul.mubr.f32.gmra.mrb[0].mxu0 %v1949
      %v2904 = vpop.f32.mrb[0].mxu0
      %v2905 = vadd.f32 %v2680, %v2904
      %v2906 = vpop.f32.mrb[0].mxu0
      %2907 = vmatprep.mubr.f32.mxu0 0.0
      %2908 = vmatmul.mubr.f32.gmra.mrb[0].mxu0 %v1951
      %v2909 = vpop.f32.mrb[0].mxu0
      %v2910 = vadd.f32 %v2685, %v2909
      %v2911 = vpop.f32.mrb[0].mxu0
      %2912 = vmatprep.mubr.f32.mxu0 0.0
      %2913 = vmatmul.mubr.f32.gmra.mrb[0].mxu0 %v1953
      %v2914 = vpop.f32.mrb[0].mxu0
      %v2915 = vadd.f32 %v2690, %v2914
      %v2916 = vpop.f32.mrb[0].mxu0
      %2917 = vmatprep.mubr.f32.mxu0 0.0
      %2918 = vmatmul.mubr.f32.gmra.mrb[0].mxu0 %v1955
      %v2919 = vpop.f32.mrb[0].mxu0
      %v2920 = vadd.f32 %v2695, %v2919
      %v2921 = vpop.f32.mrb[0].mxu0
      %2922 = vmatprep.mubr.f32.mxu0 0.0
      %2923 = vmatmul.mubr.f32.gmra.mrb[0].mxu0 %v1957
      %v2924 = vpop.f32.mrb[0].mxu0
      %v2925 = vadd.f32 %v2700, %v2924
      %v2926 = vpop.f32.mrb[0].mxu0
      %2927 = vmatprep.mubr.f32.mxu0 0.0
      %2928 = vmatmul.mubr.f32.gmra.mrb[0].mxu0 %v1959
      %v2929 = vpop.f32.mrb[0].mxu0
      %v2930 = vadd.f32 %v2705, %v2929
      %v2931 = vpop.f32.mrb[0].mxu0
      %2932 = vmatprep.mubr.f32.mxu0 0.0
      %2933 = vmatmul.mubr.f32.gmra.mrb[0].mxu0 %v1961
      %v2934 = vpop.f32.mrb[0].mxu0
      %v2935 = vadd.f32 %v2710, %v2934
      %v2936 = vpop.f32.mrb[0].mxu0
      %2937 = vmatprep.mubr.f32.mxu0 0.0
      %2938 = vmatmul.mubr.f32.gmra.mrb[0].mxu0 %v1963
      %v2939 = vpop.f32.mrb[0].mxu0
      %v2940 = vadd.f32 %v2715, %v2939
      %v2941 = vpop.f32.mrb[0].mxu0
      %2942 = vmatprep.mubr.f32.mxu0 0.0
      %2943 = vmatmul.mubr.f32.gmra.mrb[0].mxu0 %v1965
      %v2944 = vpop.f32.mrb[0].mxu0
      %v2945 = vadd.f32 %v2720, %v2944
      %v2946 = vpop.f32.mrb[0].mxu0
      %2947 = vmatprep.mubr.f32.mxu0 0.0
      %2948 = vmatmul.mubr.f32.gmra.mrb[0].mxu0 %v1967
      %v2949 = vpop.f32.mrb[0].mxu0
      %v2950 = vadd.f32 %v2725, %v2949
      %v2951 = vpop.f32.mrb[0].mxu0
      %2952 = vmatprep.mubr.f32.mxu0 0.0
      %2953 = vmatmul.mubr.f32.gmra.mrb[0].mxu0 %v1969
      %v2954 = vpop.f32.mrb[0].mxu0
      %v2955 = vadd.f32 %v2730, %v2954
      %v2956 = vpop.f32.mrb[0].mxu0
      %2957 = vmatprep.mubr.f32.mxu0 0.0
      %2958 = vmatmul.mubr.f32.gmra.mrb[0].mxu0 %v1971
      %v2959 = vpop.f32.mrb[0].mxu0
      %v2960 = vadd.f32 %v2735, %v2959
      %v2961 = vpop.f32.mrb[0].mxu0
      %2962 = vmatprep.mubr.f32.mxu0 0.0
      %2963 = vmatmul.mubr.f32.gmra.mrb[0].mxu0 %v1973
      %v2964 = vpop.f32.mrb[0].mxu0
      %v2965 = vadd.f32 %v2740, %v2964
      %v2966 = vpop.f32.mrb[0].mxu0
      %2967 = vmatprep.mubr.f32.mxu0 0.0
      %2968 = vmatmul.mubr.f32.gmra.mrb[0].mxu0 %v1975
      %v2969 = vpop.f32.mrb[0].mxu0
      %v2970 = vadd.f32 %v2745, %v2969
      %v2971 = vpop.f32.mrb[0].mxu0
      %2972 = vmatprep.mubr.f32.mxu0 0.0
      %2973 = vmatmul.mubr.f32.gmra.mrb[0].mxu0 %v1977
      %v2974 = vpop.f32.mrb[0].mxu0
      %v2975 = vadd.f32 %v2750, %v2974
      %v2976 = vpop.f32.mrb[0].mxu0
      %2977 = vmatprep.mubr.f32.mxu0 0.0
      %2978 = vmatmul.mubr.f32.gmra.mrb[0].mxu0 %v1979
      %v2979 = vpop.f32.mrb[0].mxu0
      %v2980 = vadd.f32 %v2755, %v2979
      %v2981 = vpop.f32.mrb[0].mxu0
      %2982 = vmatprep.mubr.f32.mxu0 0.0
      %2983 = vmatmul.mubr.f32.gmra.mrb[0].mxu0 %v1981
      %v2984 = vpop.f32.mrb[0].mxu0
      %v2985 = vadd.f32 %v2760, %v2984
      %v2986 = vpop.f32.mrb[0].mxu0
      %2987 = vmatprep.mubr.f32.mxu0 0.0
      %2988 = vmatmul.mubr.f32.gmra.mrb[0].mxu0 %v1983
      %v2989 = vpop.f32.mrb[0].mxu0
      %v2990 = vadd.f32 %v2765, %v2989
      %v2991 = vpop.f32.mrb[0].mxu0
      %2992 = vmatprep.mubr.f32.mxu0 0.0
      %2993 = vmatmul.mubr.f32.gmra.mrb[0].mxu0 %v1985
      %v2994 = vpop.f32.mrb[0].mxu0
      %v2995 = vadd.f32 %v2770, %v2994
      %v2996 = vpop.f32.mrb[0].mxu0
      %2997 = vmatprep.mubr.f32.mxu0 0.0
      %2998 = vmatmul.mubr.f32.gmra.mrb[0].mxu0 %v1987
      %v2999 = vpop.f32.mrb[0].mxu0
      %v3000 = vadd.f32 %v2775, %v2999
      %v3001 = vpop.f32.mrb[0].mxu0
      %3002 = vdwg.mxu0
      %v3003 = vadd.f32 %v2845, %v1076
      %v3004 = vadd.f32 %v2850, %v1076
      %v3005 = vadd.f32 %v2855, %v1076
      %v3006 = vadd.f32 %v2860, %v1076
      %v3007 = vadd.f32 %v2865, %v1076
      %v3008 = vadd.f32 %v2870, %v1076
      %v3009 = vadd.f32 %v2875, %v1076
      %v3010 = vadd.f32 %v2880, %v1076
      %v3011 = vadd.f32 %v2885, %v1076
      %v3012 = vadd.f32 %v2890, %v1076
      %v3013 = vadd.f32 %v2895, %v1076
      %v3014 = vadd.f32 %v2900, %v1076
      %v3015 = vadd.f32 %v2905, %v1076
      %v3016 = vadd.f32 %v2910, %v1076
      %v3017 = vadd.f32 %v2915, %v1076
      %v3018 = vadd.f32 %v2920, %v1076
      %v3019 = vadd.f32 %v2925, %v1076
      %v3020 = vadd.f32 %v2930, %v1076
      %v3021 = vadd.f32 %v2935, %v1076
      %v3022 = vadd.f32 %v2940, %v1076
      %v3023 = vadd.f32 %v2945, %v1076
      %v3024 = vadd.f32 %v2950, %v1076
      %v3025 = vadd.f32 %v2955, %v1076
      %v3026 = vadd.f32 %v2960, %v1076
      %v3027 = vadd.f32 %v2965, %v1076
      %v3028 = vadd.f32 %v2970, %v1076
      %v3029 = vadd.f32 %v2975, %v1076
      %v3030 = vadd.f32 %v2980, %v1076
      %v3031 = vadd.f32 %v2985, %v1076
      %v3032 = vadd.f32 %v2990, %v1076
      %v3033 = vadd.f32 %v2995, %v1076
      %v3034 = vadd.f32 %v3000, %v1076
      %3035 = vxpose.xlu0.b32.start [1/16] %v3003, 128
      %3036 = vxpose.xlu0.b32.cont [2/16] %v3004, 128
      %3037 = vxpose.xlu0.b32.cont [3/16] %v3005, 128
      %3038 = vxpose.xlu0.b32.cont [4/16] %v3006, 128
      %3039 = vxpose.xlu0.b32.cont [5/16] %v3007, 128
      %3040 = vxpose.xlu0.b32.cont [6/16] %v3008, 128
      %3041 = vxpose.xlu0.b32.cont [7/16] %v3009, 128
      %3042 = vxpose.xlu0.b32.cont [8/16] %v3010, 128
      %3043 = vxpose.xlu0.b32.cont [9/16] %v3011, 128
      %3044 = vxpose.xlu0.b32.cont [10/16] %v3012, 128
      %3045 = vxpose.xlu0.b32.cont [11/16] %v3013, 128
      %3046 = vxpose.xlu0.b32.cont [12/16] %v3014, 128
      %3047 = vxpose.xlu0.b32.cont [13/16] %v3015, 128
      %3048 = vxpose.xlu0.b32.cont [14/16] %v3016, 128
      %3049 = vxpose.xlu0.b32.cont [15/16] %v3017, 128
      %3050 = vxpose.xlu0.b32.end [16/16] %v3018, 128
      %v3051 = vpop.trf.xlu0
      %v3052 = vpop.trf.xlu0
      %v3053 = vpop.trf.xlu0
      %v3054 = vpop.trf.xlu0
      %v3055 = vpop.trf.xlu0
      %v3056 = vpop.trf.xlu0
      %v3057 = vpop.trf.xlu0
      %v3058 = vpop.trf.xlu0
      %v3059 = vpop.trf.xlu0
      %v3060 = vpop.trf.xlu0
      %v3061 = vpop.trf.xlu0
      %v3062 = vpop.trf.xlu0
      %v3063 = vpop.trf.xlu0
      %v3064 = vpop.trf.xlu0
      %v3065 = vpop.trf.xlu0
      %v3066 = vpop.trf.xlu0
      %3067 = vxpose.xlu0.b32.start [1/16] %v3019, 128
      %3068 = vxpose.xlu0.b32.cont [2/16] %v3020, 128
      %3069 = vxpose.xlu0.b32.cont [3/16] %v3021, 128
      %3070 = vxpose.xlu0.b32.cont [4/16] %v3022, 128
      %3071 = vxpose.xlu0.b32.cont [5/16] %v3023, 128
      %3072 = vxpose.xlu0.b32.cont [6/16] %v3024, 128
      %3073 = vxpose.xlu0.b32.cont [7/16] %v3025, 128
      %3074 = vxpose.xlu0.b32.cont [8/16] %v3026, 128
      %3075 = vxpose.xlu0.b32.cont [9/16] %v3027, 128
      %3076 = vxpose.xlu0.b32.cont [10/16] %v3028, 128
      %3077 = vxpose.xlu0.b32.cont [11/16] %v3029, 128
      %3078 = vxpose.xlu0.b32.cont [12/16] %v3030, 128
      %3079 = vxpose.xlu0.b32.cont [13/16] %v3031, 128
      %3080 = vxpose.xlu0.b32.cont [14/16] %v3032, 128
      %3081 = vxpose.xlu0.b32.cont [15/16] %v3033, 128
      %3082 = vxpose.xlu0.b32.end [16/16] %v3034, 128
      %v3083 = vpop.trf.xlu0
      %v3084 = vpop.trf.xlu0
      %v3085 = vpop.trf.xlu0
      %v3086 = vpop.trf.xlu0
      %v3087 = vpop.trf.xlu0
      %v3088 = vpop.trf.xlu0
      %v3089 = vpop.trf.xlu0
      %v3090 = vpop.trf.xlu0
      %v3091 = vpop.trf.xlu0
      %v3092 = vpop.trf.xlu0
      %v3093 = vpop.trf.xlu0
      %v3094 = vpop.trf.xlu0
      %v3095 = vpop.trf.xlu0
      %v3096 = vpop.trf.xlu0
      %v3097 = vpop.trf.xlu0
      %v3098 = vpop.trf.xlu0
      %v3101 = vcombine.low %v3051, %v3083
      %s3103 = scalar_lea.vmem %s170, 24
      %3104 = vst [vmem:[%s3103] sm:$0xff] %v3101
      %p3105 = scmp.lt.s32.totalorder %s14, 1
      %s3106 = scalar_select %p3105, %s14, 1
      %s3107 = smul.addr %s3106, 8
      %s3108 = smul.addr %s3107, 4
      %s3109 = scalar_lea.vmem %s3, %s3108
      // Predicated region
      $region33: #{upsample_forward.1} parent=31 // pred_check
        %p3110 = pneg %p100
      $region34: #{upsample_forward.1} parent=31 // pred_check_branch
        %3112 = sbr.rel (%p3110) target = $region36
      $region35: #{upsample_forward.1} parent=31 // pred_region
        _
      $region36: #{upsample_forward.1} parent=31 // pred_fallthru
        _
    $region32: #{upsample_forward.1} parent=5 // pred_fallthru
      _
    %p3113 = scmp.le.s32.totalorder 2, %s9
    // Predicated region
    $region37: #{upsample_forward.1} parent=5 // pred_check
      %p3114 = pneg %p3113
    $region38: #{upsample_forward.1} parent=5 // pred_check_branch
      %3116 = sbr.rel (%p3114) target = $region40
    $region39: #{upsample_forward.1} parent=5 // pred_region
      %s3117 = ssub.s32 %s9, 2
      // Predicated region
      $region41: #{upsample_forward.1} parent=39 // pred_check
        %p3118 = pneg %p106
      $region42: #{upsample_forward.1} parent=39 // pred_check_branch
        %3120 = sbr.rel (%p3118) target = $region44
      $region43: #{upsample_forward.1} parent=39 // pred_region
        %p3121 = scmp.lt.s32.totalorder %s15, 1
        %s3122 = scalar_select %p3121, %s15, 1
        %s3123 = smul.addr %s3122, 8
        %s3124 = smul.addr %s3123, 4
        %s3125 = scalar_lea.vmem %s3, %s3124
      $region44: #{upsample_forward.1} parent=39 // pred_fallthru
        _
    $region40: #{upsample_forward.1} parent=5 // pred_fallthru
      _
  $region6: #{upsample_forward.1} parent=0 // loop_footer
    %s13 = sadd.s32 1, %s9
  $region7: #{upsample_forward.1} parent=0 // loop_footer_branch
    %8 = sbr.rel target = $region3
  $region8: #{upsample_forward.1} parent=0 // loop_exit
    _

</llo_original>
